<compile_context>
chip_gen: v5e
topology: v5e:2x2
jax: 0.10.0
libtpu: 0.0.40
codegen_flags: <defaults>
</compile_context>

<pallas_src>
import functools

import jax
import jax.numpy as jnp
from jax.experimental import pallas as pl
from jax.experimental.pallas import tpu as pltpu


def _leaky_relu(x, slope=0.2):
    return jnp.where(x > 0, x, slope * x)


def disc_kernel(x_ref, w0_ref, b0_ref, wa_ref, ba_ref, wb_ref, bb_ref,
                wl_ref, bl_ref, out_ref, *, num_blocks, matmul_dtype):
    tb, S, n_chars = x_ref.shape
    hidden = w0_ref.shape[-1]
    h4 = wa_ref.shape[-1]

    def shift_out(z, d):
        """result[:, s, :] == z[:, s + d, :], zero-filled outside [0, S)."""
        if d == 0:
            return z
        zeros = jnp.zeros((tb, abs(d), z.shape[-1]), z.dtype)
        if d > 0:
            return jnp.concatenate([z[:, d:, :], zeros], axis=1)
        return jnp.concatenate([zeros, z[:, :S + d, :]], axis=1)

    # ---- Input Conv1d(n_chars, hidden, kernel_size=1): one MXU matmul ----
    x2 = x_ref[...].astype(matmul_dtype).reshape(tb * S, n_chars)
    y = jnp.dot(x2, w0_ref[...].astype(matmul_dtype),
                preferred_element_type=jnp.float32) + b0_ref[...]
    y = y.reshape(tb, S, hidden)                 # f32 running activation

    # ---- 5x ResBlockD + CapsuleBlock (statically unrolled) ----
    for blk in range(num_blocks):
        # Conv A: hidden -> h4 (k=5, pad=2).  Per-tap matmuls on the unshifted
        # wide input; only the narrow (h4) outputs are shift-added.
        yb = y.astype(matmul_dtype).reshape(tb * S, hidden)
        acc_a = jnp.zeros((tb, S, h4), jnp.float32)
        for k in range(5):
            zk = jnp.dot(yb, wa_ref[blk, k].astype(matmul_dtype),
                         preferred_element_type=jnp.float32)
            acc_a = acc_a + shift_out(zk.reshape(tb, S, h4), k - 2)
        h = _leaky_relu(acc_a + ba_ref[blk])

        # Conv B: h4 -> hidden (k=5, pad=2).  Zero-pad the narrow input once,
        # take static sequence slices, accumulate wide outputs in f32.
        hb = h.astype(matmul_dtype)
        zpad = jnp.zeros((tb, 2, h4), matmul_dtype)
        h_pad = jnp.concatenate([zpad, hb, zpad], axis=1)     # (tb, S+4, h4)
        acc_b = jnp.zeros((tb * S, hidden), jnp.float32)
        for k in range(5):
            xk = h_pad[:, k:k + S, :].reshape(tb * S, h4)
            acc_b = acc_b + jnp.dot(xk, wb_ref[blk, k].astype(matmul_dtype),
                                    preferred_element_type=jnp.float32)
        h2 = _leaky_relu(acc_b.reshape(tb, S, hidden) + bb_ref[blk])

        y = y + 0.1 * h2                                      # residual (f32)

    # ---- Linear(seq_len*hidden, 1): lane reduce + sublane reduce (f32) ----
    t = jnp.sum(y * wl_ref[...][None, :, :], axis=2)          # (tb, S)
    out = jnp.sum(t, axis=1, keepdims=True) + bl_ref[0, 0]    # (tb, 1)
    out_ref[...] = out.astype(out_ref.dtype)


def discriminator_lang(x, params, *, matmul_dtype=jnp.bfloat16, batch_tile=None,
                       vmem_limit_bytes=48 * 1024 * 1024):
    """bf16 MXU operands by default (f32 accumulation / residual path).

    batch_tile: on v7x pick batch_tile = B // 2 (or smaller, even count) so the
    "parallel" grid axis shards across both TensorCores; on v5e/v6e leave None
    (one big tile) so tb*S is as deep as VMEM allows.  Raise vmem_limit_bytes
    toward ~96 MiB on v5e/v6e; keep <= ~56 MiB on v7x.
    """
    (w0, b0, wa, ba, wb, bb, wl, bl) = params
    B, S, n_chars = x.shape
    hidden = w0.shape[-1]
    num_blocks, _, _, h4 = wa.shape
    tb = B if batch_tile is None else batch_tile
    assert B % tb == 0, "batch_tile must divide batch"

    kernel = functools.partial(disc_kernel, num_blocks=num_blocks,
                               matmul_dtype=matmul_dtype)

    return pl.pallas_call(
        kernel,
        out_shape=jax.ShapeDtypeStruct((B, 1), jnp.float32),
        grid_spec=pltpu.PrefetchScalarGridSpec(
            num_scalar_prefetch=0,
            grid=(B // tb,),
            in_specs=[
                # activation tile: streamed per batch tile (double-buffered)
                pl.BlockSpec((tb, S, n_chars), lambda i: (i, 0, 0)),
                # weights/biases: constant index_map -> DMA'd once, VMEM-resident
                pl.BlockSpec((n_chars, hidden), lambda i: (0, 0)),              # w0
                pl.BlockSpec((1, hidden), lambda i: (0, 0)),                    # b0
                pl.BlockSpec((num_blocks, 5, hidden, h4), lambda i: (0, 0, 0, 0)),  # wa
                pl.BlockSpec((num_blocks, 1, h4), lambda i: (0, 0, 0)),         # ba
                pl.BlockSpec((num_blocks, 5, h4, hidden), lambda i: (0, 0, 0, 0)),  # wb
                pl.BlockSpec((num_blocks, 1, hidden), lambda i: (0, 0, 0)),     # bb
                pl.BlockSpec((S, hidden), lambda i: (0, 0)),                    # wl
                pl.BlockSpec((1, 1), lambda i: (0, 0)),                         # bl
            ],
            out_specs=pl.BlockSpec((tb, 1), lambda i: (i, 0)),
        ),
        compiler_params=pltpu.CompilerParams(
            dimension_semantics=("parallel",),
            vmem_limit_bytes=vmem_limit_bytes,
        ),
    )(x, w0, b0, wa, ba, wb, bb, wl, bl)


def init_params(key, n_chars, seq_len, hidden):
    """Deterministic synthetic parameters matching the PyTorch shapes,
    re-ordered to the kernel's per-tap layout."""
    nb = 6  # 5x ResBlockD + 1x CapsuleBlock
    h4 = hidden // 4
    keys = jax.random.split(key, 8)

    def u(k, shape, fan_in):
        bound = 1.0 / jnp.sqrt(float(fan_in))
        return jax.random.uniform(k, shape, jnp.float32, -bound, bound)

    # Conv1d(n_chars, hidden, 1): torch weight (hidden, n_chars, 1) -> (n_chars, hidden)
    w0 = u(keys[0], (n_chars, hidden), n_chars)
    b0 = u(keys[1], (1, hidden), n_chars)

    # Conv1d(hidden, h4, 5, padding=2): torch (h4, hidden, 5) -> (nb, 5, hidden, h4)
    wa = u(keys[2], (nb, 5, hidden, h4), hidden * 5)
    ba = u(keys[3], (nb, 1, h4), hidden * 5)

    # Conv1d(h4, hidden, 5, padding=2): torch (hidden, h4, 5) -> (nb, 5, h4, hidden)
    wb = u(keys[4], (nb, 5, h4, hidden), h4 * 5)
    bb = u(keys[5], (nb, 1, hidden), h4 * 5)

    # Linear(seq_len*hidden, 1): torch flatten is channel-major -> reorder to (seq, hidden)
    wl_t = u(keys[6], (1, seq_len * hidden), seq_len * hidden)
    wl = wl_t.reshape(hidden, seq_len).T
    bl = u(keys[7], (1, 1), seq_len * hidden)

    return (w0, b0, wa, ba, wb, bb, wl, bl)


def _reference(x, params):
    """Pure-JAX reference (same math, no Pallas) for the correctness check."""
    (w0, b0, wa, ba, wb, bb, wl, bl) = params
    B, S, _ = x.shape
    hp = jax.lax.Precision.HIGHEST
    y = jnp.einsum("bsc,cd->bsd", x, w0, precision=hp) + b0

    def conv5(z, w, b):                                   # w: (5, Cin, Cout)
        zp = jnp.pad(z, ((0, 0), (2, 2), (0, 0)))
        out = jnp.zeros(z.shape[:2] + (w.shape[-1],), jnp.float32) + b
        for k in range(5):
            out = out + jnp.einsum("bsc,cd->bsd", zp[:, k:k + S, :], w[k],
                                   precision=hp)
        return out

    lrelu = lambda v: jnp.where(v > 0, v, 0.2 * v)
    for i in range(wa.shape[0]):
        h = lrelu(conv5(y, wa[i], ba[i]))
        h = lrelu(conv5(h, wb[i], bb[i]))
        y = y + 0.1 * h
    return jnp.sum(y * wl[None, :, :], axis=(1, 2))[:, None] + bl[0, 0]


if __name__ == "__main__":
    n_chars, seq_len, batch, hidden = 4, 8, 2, 32

    key = jax.random.PRNGKey(0)
    kx, kp = jax.random.split(key)
    # forward() receives (batch, seq_len, n_chars) and transposes internally;
    # our layout already has channels last, so x is used as-is.
    x = jax.random.uniform(kx, (batch, seq_len, n_chars), jnp.float32)
    params = init_params(kp, n_chars, seq_len, hidden)
    ref = _reference(x, params)

    # f32 MXU operands: check of the math against the pure-JAX reference.
    out_f32 = jax.block_until_ready(
        discriminator_lang(x, params, matmul_dtype=jnp.float32))
    assert out_f32.shape == (batch, 1)
    err = float(jnp.max(jnp.abs(out_f32 - ref)))
    assert err < 1e-2, f"f32 mismatch vs reference: {err}"

    # Default path: bf16 MXU operands with f32 accumulation (looser tolerance).
    out_bf16 = jax.block_until_ready(discriminator_lang(x, params))
    err = float(jnp.max(jnp.abs(out_bf16 - ref)))
    assert err < 5e-2, f"bf16 mismatch vs reference: {err}"

    # Multi-batch-tile path: weights stay VMEM-resident across tiles and the
    # batch-tile axis is "parallel" (megacore sharding on v7x).
    xb = jax.random.uniform(jax.random.PRNGKey(1), (16, seq_len, n_chars),
                            jnp.float32)
    out_tiled = jax.block_until_ready(
        discriminator_lang(xb, params, batch_tile=8))
    err = float(jnp.max(jnp.abs(out_tiled - _reference(xb, params))))
    assert err < 5e-2, f"tiled bf16 mismatch vs reference: {err}"

    print("KERNEL_OK")
</pallas_src>

<mosaic_0001>
module attributes {stable_mosaic.version = 11 : i64} {
  func.func @disc_kernel(%arg0: i32, %arg1: memref<2x8x4xf32, #tpu.memory_space<vmem>>, %arg2: memref<4x32xf32, #tpu.memory_space<vmem>>, %arg3: memref<1x32xf32, #tpu.memory_space<vmem>>, %arg4: memref<6x5x32x8xf32, #tpu.memory_space<vmem>>, %arg5: memref<6x1x8xf32, #tpu.memory_space<vmem>>, %arg6: memref<6x5x8x32xf32, #tpu.memory_space<vmem>>, %arg7: memref<6x1x32xf32, #tpu.memory_space<vmem>>, %arg8: memref<8x32xf32, #tpu.memory_space<vmem>>, %arg9: memref<1x1xf32, #tpu.memory_space<vmem>>, %arg10: memref<2x1xf32, #tpu.memory_space<vmem>>) attributes {dimension_semantics = [#tpu.dimension_semantics<parallel>], iteration_bounds = array<i64: 1>, scalar_prefetch = 0 : i64, scratch_operands = 0 : i64, tpu.core_type = #tpu.core_type<tc>, window_params = [{transform_indices = @transform_0, window_bounds = array<i64: 2, 8, 4>}, {pipeline_mode = #tpu.pipeline_mode<synchronous>, transform_indices = @transform_1, window_bounds = array<i64: 4, 32>}, {pipeline_mode = #tpu.pipeline_mode<synchronous>, transform_indices = @transform_2, window_bounds = array<i64: 1, 32>}, {pipeline_mode = #tpu.pipeline_mode<synchronous>, transform_indices = @transform_3, window_bounds = array<i64: 6, 5, 32, 8>}, {pipeline_mode = #tpu.pipeline_mode<synchronous>, transform_indices = @transform_4, window_bounds = array<i64: 6, 1, 8>}, {pipeline_mode = #tpu.pipeline_mode<synchronous>, transform_indices = @transform_5, window_bounds = array<i64: 6, 5, 8, 32>}, {pipeline_mode = #tpu.pipeline_mode<synchronous>, transform_indices = @transform_6, window_bounds = array<i64: 6, 1, 32>}, {pipeline_mode = #tpu.pipeline_mode<synchronous>, transform_indices = @transform_7, window_bounds = array<i64: 8, 32>}, {pipeline_mode = #tpu.pipeline_mode<synchronous>, transform_indices = @transform_8, window_bounds = array<i64: 1, 1>}, {transform_indices = @transform_9, window_bounds = array<i64: 2, 1>}]} {
    %c0 = arith.constant 0 : index
    %c0_0 = arith.constant 0 : index
    %c0_1 = arith.constant 0 : index
    %0 = vector.load %arg1[%c0, %c0_0, %c0_1] : memref<2x8x4xf32, #tpu.memory_space<vmem>>, vector<2x8x4xf32>
    %1 = vector.shape_cast %0 : vector<2x8x4xf32> to vector<16x4xf32>
    %c0_2 = arith.constant 0 : index
    %c0_3 = arith.constant 0 : index
    %2 = vector.load %arg2[%c0_2, %c0_3] : memref<4x32xf32, #tpu.memory_space<vmem>>, vector<4x32xf32>
    %cst = arith.constant dense<0.000000e+00> : vector<16x32xf32>
    %3 = tpu.matmul %1, %2, %cst {dimension_numbers = #tpu.dot_dimension_numbers<[1], [0], [0], [1], [0, 0, 1, 1], [], []>} : vector<16x4xf32>, vector<4x32xf32>, vector<16x32xf32> -> vector<16x32xf32>
    %c0_4 = arith.constant 0 : index
    %c0_5 = arith.constant 0 : index
    %4 = vector.load %arg3[%c0_4, %c0_5] : memref<1x32xf32, #tpu.memory_space<vmem>>, vector<1x32xf32>
    %5 = vector.broadcast %4 : vector<1x32xf32> to vector<16x32xf32>
    %6 = arith.addf %3, %5 : vector<16x32xf32>
    %7 = vector.shape_cast %6 : vector<16x32xf32> to vector<2x8x32xf32>
    %8 = vector.shape_cast %7 : vector<2x8x32xf32> to vector<16x32xf32>
    %cst_6 = arith.constant 0.000000e+00 : f32
    %9 = vector.broadcast %cst_6 : f32 to vector<2x8x8xf32>
    %c0_7 = arith.constant 0 : index
    %c0_8 = arith.constant 0 : index
    %c0_9 = arith.constant 0 : index
    %c0_10 = arith.constant 0 : index
    %10 = vector.load %arg4[%c0_7, %c0_8, %c0_9, %c0_10] : memref<6x5x32x8xf32, #tpu.memory_space<vmem>>, vector<1x1x32x8xf32>
    %11 = vector.shape_cast %10 : vector<1x1x32x8xf32> to vector<32x8xf32>
    %cst_11 = arith.constant dense<0.000000e+00> : vector<16x8xf32>
    %12 = tpu.matmul %8, %11, %cst_11 {dimension_numbers = #tpu.dot_dimension_numbers<[1], [0], [0], [1], [0, 0, 1, 1], [], []>} : vector<16x32xf32>, vector<32x8xf32>, vector<16x8xf32> -> vector<16x8xf32>
    %13 = vector.shape_cast %12 : vector<16x8xf32> to vector<2x8x8xf32>
    %cst_12 = arith.constant 0.000000e+00 : f32
    %14 = vector.broadcast %cst_12 : f32 to vector<2x2x8xf32>
    %15 = vector.extract_strided_slice %13 {offsets = [0, 0, 0], sizes = [2, 6, 8], strides = [1, 1, 1]} : vector<2x8x8xf32> to vector<2x6x8xf32>
    %16 = tpu.concatenate %14, %15 in 1 : vector<2x2x8xf32>, vector<2x6x8xf32> -> vector<2x8x8xf32>
    %17 = arith.addf %9, %16 : vector<2x8x8xf32>
    %c0_13 = arith.constant 0 : index
    %c1 = arith.constant 1 : index
    %c0_14 = arith.constant 0 : index
    %c0_15 = arith.constant 0 : index
    %18 = vector.load %arg4[%c0_13, %c1, %c0_14, %c0_15] : memref<6x5x32x8xf32, #tpu.memory_space<vmem>>, vector<1x1x32x8xf32>
    %19 = vector.shape_cast %18 : vector<1x1x32x8xf32> to vector<32x8xf32>
    %cst_16 = arith.constant dense<0.000000e+00> : vector<16x8xf32>
    %20 = tpu.matmul %8, %19, %cst_16 {dimension_numbers = #tpu.dot_dimension_numbers<[1], [0], [0], [1], [0, 0, 1, 1], [], []>} : vector<16x32xf32>, vector<32x8xf32>, vector<16x8xf32> -> vector<16x8xf32>
    %21 = vector.shape_cast %20 : vector<16x8xf32> to vector<2x8x8xf32>
    %cst_17 = arith.constant 0.000000e+00 : f32
    %22 = vector.broadcast %cst_17 : f32 to vector<2x1x8xf32>
    %23 = vector.extract_strided_slice %21 {offsets = [0, 0, 0], sizes = [2, 7, 8], strides = [1, 1, 1]} : vector<2x8x8xf32> to vector<2x7x8xf32>
    %24 = tpu.concatenate %22, %23 in 1 : vector<2x1x8xf32>, vector<2x7x8xf32> -> vector<2x8x8xf32>
    %25 = arith.addf %17, %24 : vector<2x8x8xf32>
    %c0_18 = arith.constant 0 : index
    %c2 = arith.constant 2 : index
    %c0_19 = arith.constant 0 : index
    %c0_20 = arith.constant 0 : index
    %26 = vector.load %arg4[%c0_18, %c2, %c0_19, %c0_20] : memref<6x5x32x8xf32, #tpu.memory_space<vmem>>, vector<1x1x32x8xf32>
    %27 = vector.shape_cast %26 : vector<1x1x32x8xf32> to vector<32x8xf32>
    %cst_21 = arith.constant dense<0.000000e+00> : vector<16x8xf32>
    %28 = tpu.matmul %8, %27, %cst_21 {dimension_numbers = #tpu.dot_dimension_numbers<[1], [0], [0], [1], [0, 0, 1, 1], [], []>} : vector<16x32xf32>, vector<32x8xf32>, vector<16x8xf32> -> vector<16x8xf32>
    %29 = vector.shape_cast %28 : vector<16x8xf32> to vector<2x8x8xf32>
    %30 = arith.addf %25, %29 : vector<2x8x8xf32>
    %c0_22 = arith.constant 0 : index
    %c3 = arith.constant 3 : index
    %c0_23 = arith.constant 0 : index
    %c0_24 = arith.constant 0 : index
    %31 = vector.load %arg4[%c0_22, %c3, %c0_23, %c0_24] : memref<6x5x32x8xf32, #tpu.memory_space<vmem>>, vector<1x1x32x8xf32>
    %32 = vector.shape_cast %31 : vector<1x1x32x8xf32> to vector<32x8xf32>
    %cst_25 = arith.constant dense<0.000000e+00> : vector<16x8xf32>
    %33 = tpu.matmul %8, %32, %cst_25 {dimension_numbers = #tpu.dot_dimension_numbers<[1], [0], [0], [1], [0, 0, 1, 1], [], []>} : vector<16x32xf32>, vector<32x8xf32>, vector<16x8xf32> -> vector<16x8xf32>
    %34 = vector.shape_cast %33 : vector<16x8xf32> to vector<2x8x8xf32>
    %cst_26 = arith.constant 0.000000e+00 : f32
    %35 = vector.broadcast %cst_26 : f32 to vector<2x1x8xf32>
    %36 = vector.extract_strided_slice %34 {offsets = [0, 1, 0], sizes = [2, 7, 8], strides = [1, 1, 1]} : vector<2x8x8xf32> to vector<2x7x8xf32>
    %37 = tpu.concatenate %36, %35 in 1 : vector<2x7x8xf32>, vector<2x1x8xf32> -> vector<2x8x8xf32>
    %38 = arith.addf %30, %37 : vector<2x8x8xf32>
    %c0_27 = arith.constant 0 : index
    %c4 = arith.constant 4 : index
    %c0_28 = arith.constant 0 : index
    %c0_29 = arith.constant 0 : index
    %39 = vector.load %arg4[%c0_27, %c4, %c0_28, %c0_29] : memref<6x5x32x8xf32, #tpu.memory_space<vmem>>, vector<1x1x32x8xf32>
    %40 = vector.shape_cast %39 : vector<1x1x32x8xf32> to vector<32x8xf32>
    %cst_30 = arith.constant dense<0.000000e+00> : vector<16x8xf32>
    %41 = tpu.matmul %8, %40, %cst_30 {dimension_numbers = #tpu.dot_dimension_numbers<[1], [0], [0], [1], [0, 0, 1, 1], [], []>} : vector<16x32xf32>, vector<32x8xf32>, vector<16x8xf32> -> vector<16x8xf32>
    %42 = vector.shape_cast %41 : vector<16x8xf32> to vector<2x8x8xf32>
    %cst_31 = arith.constant 0.000000e+00 : f32
    %43 = vector.broadcast %cst_31 : f32 to vector<2x2x8xf32>
    %44 = vector.extract_strided_slice %42 {offsets = [0, 2, 0], sizes = [2, 6, 8], strides = [1, 1, 1]} : vector<2x8x8xf32> to vector<2x6x8xf32>
    %45 = tpu.concatenate %44, %43 in 1 : vector<2x6x8xf32>, vector<2x2x8xf32> -> vector<2x8x8xf32>
    %46 = arith.addf %38, %45 : vector<2x8x8xf32>
    %c0_32 = arith.constant 0 : index
    %c0_33 = arith.constant 0 : index
    %c0_34 = arith.constant 0 : index
    %47 = vector.load %arg5[%c0_32, %c0_33, %c0_34] : memref<6x1x8xf32, #tpu.memory_space<vmem>>, vector<1x1x8xf32>
    %48 = vector.shape_cast %47 : vector<1x1x8xf32> to vector<1x8xf32>
    %49 = vector.shape_cast %48 : vector<1x8xf32> to vector<1x1x8xf32>
    %50 = vector.broadcast %49 : vector<1x1x8xf32> to vector<2x8x8xf32>
    %51 = arith.addf %46, %50 : vector<2x8x8xf32>
    %cst_35 = arith.constant 0.000000e+00 : f32
    %52 = vector.broadcast %cst_35 : f32 to vector<2x8x8xf32>
    %53 = arith.cmpf ogt, %51, %52 : vector<2x8x8xf32>
    %cst_36 = arith.constant 2.000000e-01 : f32
    %54 = vector.broadcast %cst_36 : f32 to vector<2x8x8xf32>
    %55 = arith.mulf %54, %51 : vector<2x8x8xf32>
    %56 = arith.select %53, %51, %55 : vector<2x8x8xi1>, vector<2x8x8xf32>
    %cst_37 = arith.constant 0.000000e+00 : f32
    %57 = vector.broadcast %cst_37 : f32 to vector<2x2x8xf32>
    %58 = tpu.concatenate %57, %56, %57 in 1 : vector<2x2x8xf32>, vector<2x8x8xf32>, vector<2x2x8xf32> -> vector<2x12x8xf32>
    %cst_38 = arith.constant 0.000000e+00 : f32
    %59 = vector.broadcast %cst_38 : f32 to vector<16x32xf32>
    %60 = vector.extract_strided_slice %58 {offsets = [0, 0, 0], sizes = [2, 8, 8], strides = [1, 1, 1]} : vector<2x12x8xf32> to vector<2x8x8xf32>
    %61 = vector.shape_cast %60 : vector<2x8x8xf32> to vector<16x8xf32>
    %c0_39 = arith.constant 0 : index
    %c0_40 = arith.constant 0 : index
    %c0_41 = arith.constant 0 : index
    %c0_42 = arith.constant 0 : index
    %62 = vector.load %arg6[%c0_39, %c0_40, %c0_41, %c0_42] : memref<6x5x8x32xf32, #tpu.memory_space<vmem>>, vector<1x1x8x32xf32>
    %63 = vector.shape_cast %62 : vector<1x1x8x32xf32> to vector<8x32xf32>
    %cst_43 = arith.constant dense<0.000000e+00> : vector<16x32xf32>
    %64 = tpu.matmul %61, %63, %cst_43 {dimension_numbers = #tpu.dot_dimension_numbers<[1], [0], [0], [1], [0, 0, 1, 1], [], []>} : vector<16x8xf32>, vector<8x32xf32>, vector<16x32xf32> -> vector<16x32xf32>
    %65 = arith.addf %59, %64 : vector<16x32xf32>
    %66 = vector.extract_strided_slice %58 {offsets = [0, 1, 0], sizes = [2, 8, 8], strides = [1, 1, 1]} : vector<2x12x8xf32> to vector<2x8x8xf32>
    %67 = vector.shape_cast %66 : vector<2x8x8xf32> to vector<16x8xf32>
    %c0_44 = arith.constant 0 : index
    %c1_45 = arith.constant 1 : index
    %c0_46 = arith.constant 0 : index
    %c0_47 = arith.constant 0 : index
    %68 = vector.load %arg6[%c0_44, %c1_45, %c0_46, %c0_47] : memref<6x5x8x32xf32, #tpu.memory_space<vmem>>, vector<1x1x8x32xf32>
    %69 = vector.shape_cast %68 : vector<1x1x8x32xf32> to vector<8x32xf32>
    %cst_48 = arith.constant dense<0.000000e+00> : vector<16x32xf32>
    %70 = tpu.matmul %67, %69, %cst_48 {dimension_numbers = #tpu.dot_dimension_numbers<[1], [0], [0], [1], [0, 0, 1, 1], [], []>} : vector<16x8xf32>, vector<8x32xf32>, vector<16x32xf32> -> vector<16x32xf32>
    %71 = arith.addf %65, %70 : vector<16x32xf32>
    %72 = vector.extract_strided_slice %58 {offsets = [0, 2, 0], sizes = [2, 8, 8], strides = [1, 1, 1]} : vector<2x12x8xf32> to vector<2x8x8xf32>
    %73 = vector.shape_cast %72 : vector<2x8x8xf32> to vector<16x8xf32>
    %c0_49 = arith.constant 0 : index
    %c2_50 = arith.constant 2 : index
    %c0_51 = arith.constant 0 : index
    %c0_52 = arith.constant 0 : index
    %74 = vector.load %arg6[%c0_49, %c2_50, %c0_51, %c0_52] : memref<6x5x8x32xf32, #tpu.memory_space<vmem>>, vector<1x1x8x32xf32>
    %75 = vector.shape_cast %74 : vector<1x1x8x32xf32> to vector<8x32xf32>
    %cst_53 = arith.constant dense<0.000000e+00> : vector<16x32xf32>
    %76 = tpu.matmul %73, %75, %cst_53 {dimension_numbers = #tpu.dot_dimension_numbers<[1], [0], [0], [1], [0, 0, 1, 1], [], []>} : vector<16x8xf32>, vector<8x32xf32>, vector<16x32xf32> -> vector<16x32xf32>
    %77 = arith.addf %71, %76 : vector<16x32xf32>
    %78 = vector.extract_strided_slice %58 {offsets = [0, 3, 0], sizes = [2, 8, 8], strides = [1, 1, 1]} : vector<2x12x8xf32> to vector<2x8x8xf32>
    %79 = vector.shape_cast %78 : vector<2x8x8xf32> to vector<16x8xf32>
    %c0_54 = arith.constant 0 : index
    %c3_55 = arith.constant 3 : index
    %c0_56 = arith.constant 0 : index
    %c0_57 = arith.constant 0 : index
    %80 = vector.load %arg6[%c0_54, %c3_55, %c0_56, %c0_57] : memref<6x5x8x32xf32, #tpu.memory_space<vmem>>, vector<1x1x8x32xf32>
    %81 = vector.shape_cast %80 : vector<1x1x8x32xf32> to vector<8x32xf32>
    %cst_58 = arith.constant dense<0.000000e+00> : vector<16x32xf32>
    %82 = tpu.matmul %79, %81, %cst_58 {dimension_numbers = #tpu.dot_dimension_numbers<[1], [0], [0], [1], [0, 0, 1, 1], [], []>} : vector<16x8xf32>, vector<8x32xf32>, vector<16x32xf32> -> vector<16x32xf32>
    %83 = arith.addf %77, %82 : vector<16x32xf32>
    %84 = vector.extract_strided_slice %58 {offsets = [0, 4, 0], sizes = [2, 8, 8], strides = [1, 1, 1]} : vector<2x12x8xf32> to vector<2x8x8xf32>
    %85 = vector.shape_cast %84 : vector<2x8x8xf32> to vector<16x8xf32>
    %c0_59 = arith.constant 0 : index
    %c4_60 = arith.constant 4 : index
    %c0_61 = arith.constant 0 : index
    %c0_62 = arith.constant 0 : index
    %86 = vector.load %arg6[%c0_59, %c4_60, %c0_61, %c0_62] : memref<6x5x8x32xf32, #tpu.memory_space<vmem>>, vector<1x1x8x32xf32>
    %87 = vector.shape_cast %86 : vector<1x1x8x32xf32> to vector<8x32xf32>
    %cst_63 = arith.constant dense<0.000000e+00> : vector<16x32xf32>
    %88 = tpu.matmul %85, %87, %cst_63 {dimension_numbers = #tpu.dot_dimension_numbers<[1], [0], [0], [1], [0, 0, 1, 1], [], []>} : vector<16x8xf32>, vector<8x32xf32>, vector<16x32xf32> -> vector<16x32xf32>
    %89 = arith.addf %83, %88 : vector<16x32xf32>
    %90 = vector.shape_cast %89 : vector<16x32xf32> to vector<2x8x32xf32>
    %c0_64 = arith.constant 0 : index
    %c0_65 = arith.constant 0 : index
    %c0_66 = arith.constant 0 : index
    %91 = vector.load %arg7[%c0_64, %c0_65, %c0_66] : memref<6x1x32xf32, #tpu.memory_space<vmem>>, vector<1x1x32xf32>
    %92 = vector.shape_cast %91 : vector<1x1x32xf32> to vector<1x32xf32>
    %93 = vector.shape_cast %92 : vector<1x32xf32> to vector<1x1x32xf32>
    %94 = vector.broadcast %93 : vector<1x1x32xf32> to vector<2x8x32xf32>
    %95 = arith.addf %90, %94 : vector<2x8x32xf32>
    %cst_67 = arith.constant 0.000000e+00 : f32
    %96 = vector.broadcast %cst_67 : f32 to vector<2x8x32xf32>
    %97 = arith.cmpf ogt, %95, %96 : vector<2x8x32xf32>
    %cst_68 = arith.constant 2.000000e-01 : f32
    %98 = vector.broadcast %cst_68 : f32 to vector<2x8x32xf32>
    %99 = arith.mulf %98, %95 : vector<2x8x32xf32>
    %100 = arith.select %97, %95, %99 : vector<2x8x32xi1>, vector<2x8x32xf32>
    %cst_69 = arith.constant 1.000000e-01 : f32
    %101 = vector.broadcast %cst_69 : f32 to vector<2x8x32xf32>
    %102 = arith.mulf %101, %100 : vector<2x8x32xf32>
    %103 = arith.addf %7, %102 : vector<2x8x32xf32>
    %104 = vector.shape_cast %103 : vector<2x8x32xf32> to vector<16x32xf32>
    %cst_70 = arith.constant 0.000000e+00 : f32
    %105 = vector.broadcast %cst_70 : f32 to vector<2x8x8xf32>
    %c1_71 = arith.constant 1 : index
    %c0_72 = arith.constant 0 : index
    %c0_73 = arith.constant 0 : index
    %c0_74 = arith.constant 0 : index
    %106 = vector.load %arg4[%c1_71, %c0_72, %c0_73, %c0_74] : memref<6x5x32x8xf32, #tpu.memory_space<vmem>>, vector<1x1x32x8xf32>
    %107 = vector.shape_cast %106 : vector<1x1x32x8xf32> to vector<32x8xf32>
    %cst_75 = arith.constant dense<0.000000e+00> : vector<16x8xf32>
    %108 = tpu.matmul %104, %107, %cst_75 {dimension_numbers = #tpu.dot_dimension_numbers<[1], [0], [0], [1], [0, 0, 1, 1], [], []>} : vector<16x32xf32>, vector<32x8xf32>, vector<16x8xf32> -> vector<16x8xf32>
    %109 = vector.shape_cast %108 : vector<16x8xf32> to vector<2x8x8xf32>
    %cst_76 = arith.constant 0.000000e+00 : f32
    %110 = vector.broadcast %cst_76 : f32 to vector<2x2x8xf32>
    %111 = vector.extract_strided_slice %109 {offsets = [0, 0, 0], sizes = [2, 6, 8], strides = [1, 1, 1]} : vector<2x8x8xf32> to vector<2x6x8xf32>
    %112 = tpu.concatenate %110, %111 in 1 : vector<2x2x8xf32>, vector<2x6x8xf32> -> vector<2x8x8xf32>
    %113 = arith.addf %105, %112 : vector<2x8x8xf32>
    %c1_77 = arith.constant 1 : index
    %c1_78 = arith.constant 1 : index
    %c0_79 = arith.constant 0 : index
    %c0_80 = arith.constant 0 : index
    %114 = vector.load %arg4[%c1_77, %c1_78, %c0_79, %c0_80] : memref<6x5x32x8xf32, #tpu.memory_space<vmem>>, vector<1x1x32x8xf32>
    %115 = vector.shape_cast %114 : vector<1x1x32x8xf32> to vector<32x8xf32>
    %cst_81 = arith.constant dense<0.000000e+00> : vector<16x8xf32>
    %116 = tpu.matmul %104, %115, %cst_81 {dimension_numbers = #tpu.dot_dimension_numbers<[1], [0], [0], [1], [0, 0, 1, 1], [], []>} : vector<16x32xf32>, vector<32x8xf32>, vector<16x8xf32> -> vector<16x8xf32>
    %117 = vector.shape_cast %116 : vector<16x8xf32> to vector<2x8x8xf32>
    %cst_82 = arith.constant 0.000000e+00 : f32
    %118 = vector.broadcast %cst_82 : f32 to vector<2x1x8xf32>
    %119 = vector.extract_strided_slice %117 {offsets = [0, 0, 0], sizes = [2, 7, 8], strides = [1, 1, 1]} : vector<2x8x8xf32> to vector<2x7x8xf32>
    %120 = tpu.concatenate %118, %119 in 1 : vector<2x1x8xf32>, vector<2x7x8xf32> -> vector<2x8x8xf32>
    %121 = arith.addf %113, %120 : vector<2x8x8xf32>
    %c1_83 = arith.constant 1 : index
    %c2_84 = arith.constant 2 : index
    %c0_85 = arith.constant 0 : index
    %c0_86 = arith.constant 0 : index
    %122 = vector.load %arg4[%c1_83, %c2_84, %c0_85, %c0_86] : memref<6x5x32x8xf32, #tpu.memory_space<vmem>>, vector<1x1x32x8xf32>
    %123 = vector.shape_cast %122 : vector<1x1x32x8xf32> to vector<32x8xf32>
    %cst_87 = arith.constant dense<0.000000e+00> : vector<16x8xf32>
    %124 = tpu.matmul %104, %123, %cst_87 {dimension_numbers = #tpu.dot_dimension_numbers<[1], [0], [0], [1], [0, 0, 1, 1], [], []>} : vector<16x32xf32>, vector<32x8xf32>, vector<16x8xf32> -> vector<16x8xf32>
    %125 = vector.shape_cast %124 : vector<16x8xf32> to vector<2x8x8xf32>
    %126 = arith.addf %121, %125 : vector<2x8x8xf32>
    %c1_88 = arith.constant 1 : index
    %c3_89 = arith.constant 3 : index
    %c0_90 = arith.constant 0 : index
    %c0_91 = arith.constant 0 : index
    %127 = vector.load %arg4[%c1_88, %c3_89, %c0_90, %c0_91] : memref<6x5x32x8xf32, #tpu.memory_space<vmem>>, vector<1x1x32x8xf32>
    %128 = vector.shape_cast %127 : vector<1x1x32x8xf32> to vector<32x8xf32>
    %cst_92 = arith.constant dense<0.000000e+00> : vector<16x8xf32>
    %129 = tpu.matmul %104, %128, %cst_92 {dimension_numbers = #tpu.dot_dimension_numbers<[1], [0], [0], [1], [0, 0, 1, 1], [], []>} : vector<16x32xf32>, vector<32x8xf32>, vector<16x8xf32> -> vector<16x8xf32>
    %130 = vector.shape_cast %129 : vector<16x8xf32> to vector<2x8x8xf32>
    %cst_93 = arith.constant 0.000000e+00 : f32
    %131 = vector.broadcast %cst_93 : f32 to vector<2x1x8xf32>
    %132 = vector.extract_strided_slice %130 {offsets = [0, 1, 0], sizes = [2, 7, 8], strides = [1, 1, 1]} : vector<2x8x8xf32> to vector<2x7x8xf32>
    %133 = tpu.concatenate %132, %131 in 1 : vector<2x7x8xf32>, vector<2x1x8xf32> -> vector<2x8x8xf32>
    %134 = arith.addf %126, %133 : vector<2x8x8xf32>
    %c1_94 = arith.constant 1 : index
    %c4_95 = arith.constant 4 : index
    %c0_96 = arith.constant 0 : index
    %c0_97 = arith.constant 0 : index
    %135 = vector.load %arg4[%c1_94, %c4_95, %c0_96, %c0_97] : memref<6x5x32x8xf32, #tpu.memory_space<vmem>>, vector<1x1x32x8xf32>
    %136 = vector.shape_cast %135 : vector<1x1x32x8xf32> to vector<32x8xf32>
    %cst_98 = arith.constant dense<0.000000e+00> : vector<16x8xf32>
    %137 = tpu.matmul %104, %136, %cst_98 {dimension_numbers = #tpu.dot_dimension_numbers<[1], [0], [0], [1], [0, 0, 1, 1], [], []>} : vector<16x32xf32>, vector<32x8xf32>, vector<16x8xf32> -> vector<16x8xf32>
    %138 = vector.shape_cast %137 : vector<16x8xf32> to vector<2x8x8xf32>
    %cst_99 = arith.constant 0.000000e+00 : f32
    %139 = vector.broadcast %cst_99 : f32 to vector<2x2x8xf32>
    %140 = vector.extract_strided_slice %138 {offsets = [0, 2, 0], sizes = [2, 6, 8], strides = [1, 1, 1]} : vector<2x8x8xf32> to vector<2x6x8xf32>
    %141 = tpu.concatenate %140, %139 in 1 : vector<2x6x8xf32>, vector<2x2x8xf32> -> vector<2x8x8xf32>
    %142 = arith.addf %134, %141 : vector<2x8x8xf32>
    %c1_100 = arith.constant 1 : index
    %c0_101 = arith.constant 0 : index
    %c0_102 = arith.constant 0 : index
    %143 = vector.load %arg5[%c1_100, %c0_101, %c0_102] : memref<6x1x8xf32, #tpu.memory_space<vmem>>, vector<1x1x8xf32>
    %144 = vector.shape_cast %143 : vector<1x1x8xf32> to vector<1x8xf32>
    %145 = vector.shape_cast %144 : vector<1x8xf32> to vector<1x1x8xf32>
    %146 = vector.broadcast %145 : vector<1x1x8xf32> to vector<2x8x8xf32>
    %147 = arith.addf %142, %146 : vector<2x8x8xf32>
    %cst_103 = arith.constant 0.000000e+00 : f32
    %148 = vector.broadcast %cst_103 : f32 to vector<2x8x8xf32>
    %149 = arith.cmpf ogt, %147, %148 : vector<2x8x8xf32>
    %cst_104 = arith.constant 2.000000e-01 : f32
    %150 = vector.broadcast %cst_104 : f32 to vector<2x8x8xf32>
    %151 = arith.mulf %150, %147 : vector<2x8x8xf32>
    %152 = arith.select %149, %147, %151 : vector<2x8x8xi1>, vector<2x8x8xf32>
    %cst_105 = arith.constant 0.000000e+00 : f32
    %153 = vector.broadcast %cst_105 : f32 to vector<2x2x8xf32>
    %154 = tpu.concatenate %153, %152, %153 in 1 : vector<2x2x8xf32>, vector<2x8x8xf32>, vector<2x2x8xf32> -> vector<2x12x8xf32>
    %cst_106 = arith.constant 0.000000e+00 : f32
    %155 = vector.broadcast %cst_106 : f32 to vector<16x32xf32>
    %156 = vector.extract_strided_slice %154 {offsets = [0, 0, 0], sizes = [2, 8, 8], strides = [1, 1, 1]} : vector<2x12x8xf32> to vector<2x8x8xf32>
    %157 = vector.shape_cast %156 : vector<2x8x8xf32> to vector<16x8xf32>
    %c1_107 = arith.constant 1 : index
    %c0_108 = arith.constant 0 : index
    %c0_109 = arith.constant 0 : index
    %c0_110 = arith.constant 0 : index
    %158 = vector.load %arg6[%c1_107, %c0_108, %c0_109, %c0_110] : memref<6x5x8x32xf32, #tpu.memory_space<vmem>>, vector<1x1x8x32xf32>
    %159 = vector.shape_cast %158 : vector<1x1x8x32xf32> to vector<8x32xf32>
    %cst_111 = arith.constant dense<0.000000e+00> : vector<16x32xf32>
    %160 = tpu.matmul %157, %159, %cst_111 {dimension_numbers = #tpu.dot_dimension_numbers<[1], [0], [0], [1], [0, 0, 1, 1], [], []>} : vector<16x8xf32>, vector<8x32xf32>, vector<16x32xf32> -> vector<16x32xf32>
    %161 = arith.addf %155, %160 : vector<16x32xf32>
    %162 = vector.extract_strided_slice %154 {offsets = [0, 1, 0], sizes = [2, 8, 8], strides = [1, 1, 1]} : vector<2x12x8xf32> to vector<2x8x8xf32>
    %163 = vector.shape_cast %162 : vector<2x8x8xf32> to vector<16x8xf32>
    %c1_112 = arith.constant 1 : index
    %c1_113 = arith.constant 1 : index
    %c0_114 = arith.constant 0 : index
    %c0_115 = arith.constant 0 : index
    %164 = vector.load %arg6[%c1_112, %c1_113, %c0_114, %c0_115] : memref<6x5x8x32xf32, #tpu.memory_space<vmem>>, vector<1x1x8x32xf32>
    %165 = vector.shape_cast %164 : vector<1x1x8x32xf32> to vector<8x32xf32>
    %cst_116 = arith.constant dense<0.000000e+00> : vector<16x32xf32>
    %166 = tpu.matmul %163, %165, %cst_116 {dimension_numbers = #tpu.dot_dimension_numbers<[1], [0], [0], [1], [0, 0, 1, 1], [], []>} : vector<16x8xf32>, vector<8x32xf32>, vector<16x32xf32> -> vector<16x32xf32>
    %167 = arith.addf %161, %166 : vector<16x32xf32>
    %168 = vector.extract_strided_slice %154 {offsets = [0, 2, 0], sizes = [2, 8, 8], strides = [1, 1, 1]} : vector<2x12x8xf32> to vector<2x8x8xf32>
    %169 = vector.shape_cast %168 : vector<2x8x8xf32> to vector<16x8xf32>
    %c1_117 = arith.constant 1 : index
    %c2_118 = arith.constant 2 : index
    %c0_119 = arith.constant 0 : index
    %c0_120 = arith.constant 0 : index
    %170 = vector.load %arg6[%c1_117, %c2_118, %c0_119, %c0_120] : memref<6x5x8x32xf32, #tpu.memory_space<vmem>>, vector<1x1x8x32xf32>
    %171 = vector.shape_cast %170 : vector<1x1x8x32xf32> to vector<8x32xf32>
    %cst_121 = arith.constant dense<0.000000e+00> : vector<16x32xf32>
    %172 = tpu.matmul %169, %171, %cst_121 {dimension_numbers = #tpu.dot_dimension_numbers<[1], [0], [0], [1], [0, 0, 1, 1], [], []>} : vector<16x8xf32>, vector<8x32xf32>, vector<16x32xf32> -> vector<16x32xf32>
    %173 = arith.addf %167, %172 : vector<16x32xf32>
    %174 = vector.extract_strided_slice %154 {offsets = [0, 3, 0], sizes = [2, 8, 8], strides = [1, 1, 1]} : vector<2x12x8xf32> to vector<2x8x8xf32>
    %175 = vector.shape_cast %174 : vector<2x8x8xf32> to vector<16x8xf32>
    %c1_122 = arith.constant 1 : index
    %c3_123 = arith.constant 3 : index
    %c0_124 = arith.constant 0 : index
    %c0_125 = arith.constant 0 : index
    %176 = vector.load %arg6[%c1_122, %c3_123, %c0_124, %c0_125] : memref<6x5x8x32xf32, #tpu.memory_space<vmem>>, vector<1x1x8x32xf32>
    %177 = vector.shape_cast %176 : vector<1x1x8x32xf32> to vector<8x32xf32>
    %cst_126 = arith.constant dense<0.000000e+00> : vector<16x32xf32>
    %178 = tpu.matmul %175, %177, %cst_126 {dimension_numbers = #tpu.dot_dimension_numbers<[1], [0], [0], [1], [0, 0, 1, 1], [], []>} : vector<16x8xf32>, vector<8x32xf32>, vector<16x32xf32> -> vector<16x32xf32>
    %179 = arith.addf %173, %178 : vector<16x32xf32>
    %180 = vector.extract_strided_slice %154 {offsets = [0, 4, 0], sizes = [2, 8, 8], strides = [1, 1, 1]} : vector<2x12x8xf32> to vector<2x8x8xf32>
    %181 = vector.shape_cast %180 : vector<2x8x8xf32> to vector<16x8xf32>
    %c1_127 = arith.constant 1 : index
    %c4_128 = arith.constant 4 : index
    %c0_129 = arith.constant 0 : index
    %c0_130 = arith.constant 0 : index
    %182 = vector.load %arg6[%c1_127, %c4_128, %c0_129, %c0_130] : memref<6x5x8x32xf32, #tpu.memory_space<vmem>>, vector<1x1x8x32xf32>
    %183 = vector.shape_cast %182 : vector<1x1x8x32xf32> to vector<8x32xf32>
    %cst_131 = arith.constant dense<0.000000e+00> : vector<16x32xf32>
    %184 = tpu.matmul %181, %183, %cst_131 {dimension_numbers = #tpu.dot_dimension_numbers<[1], [0], [0], [1], [0, 0, 1, 1], [], []>} : vector<16x8xf32>, vector<8x32xf32>, vector<16x32xf32> -> vector<16x32xf32>
    %185 = arith.addf %179, %184 : vector<16x32xf32>
    %186 = vector.shape_cast %185 : vector<16x32xf32> to vector<2x8x32xf32>
    %c1_132 = arith.constant 1 : index
    %c0_133 = arith.constant 0 : index
    %c0_134 = arith.constant 0 : index
    %187 = vector.load %arg7[%c1_132, %c0_133, %c0_134] : memref<6x1x32xf32, #tpu.memory_space<vmem>>, vector<1x1x32xf32>
    %188 = vector.shape_cast %187 : vector<1x1x32xf32> to vector<1x32xf32>
    %189 = vector.shape_cast %188 : vector<1x32xf32> to vector<1x1x32xf32>
    %190 = vector.broadcast %189 : vector<1x1x32xf32> to vector<2x8x32xf32>
    %191 = arith.addf %186, %190 : vector<2x8x32xf32>
    %cst_135 = arith.constant 0.000000e+00 : f32
    %192 = vector.broadcast %cst_135 : f32 to vector<2x8x32xf32>
    %193 = arith.cmpf ogt, %191, %192 : vector<2x8x32xf32>
    %cst_136 = arith.constant 2.000000e-01 : f32
    %194 = vector.broadcast %cst_136 : f32 to vector<2x8x32xf32>
    %195 = arith.mulf %194, %191 : vector<2x8x32xf32>
    %196 = arith.select %193, %191, %195 : vector<2x8x32xi1>, vector<2x8x32xf32>
    %cst_137 = arith.constant 1.000000e-01 : f32
    %197 = vector.broadcast %cst_137 : f32 to vector<2x8x32xf32>
    %198 = arith.mulf %197, %196 : vector<2x8x32xf32>
    %199 = arith.addf %103, %198 : vector<2x8x32xf32>
    %200 = vector.shape_cast %199 : vector<2x8x32xf32> to vector<16x32xf32>
    %cst_138 = arith.constant 0.000000e+00 : f32
    %201 = vector.broadcast %cst_138 : f32 to vector<2x8x8xf32>
    %c2_139 = arith.constant 2 : index
    %c0_140 = arith.constant 0 : index
    %c0_141 = arith.constant 0 : index
    %c0_142 = arith.constant 0 : index
    %202 = vector.load %arg4[%c2_139, %c0_140, %c0_141, %c0_142] : memref<6x5x32x8xf32, #tpu.memory_space<vmem>>, vector<1x1x32x8xf32>
    %203 = vector.shape_cast %202 : vector<1x1x32x8xf32> to vector<32x8xf32>
    %cst_143 = arith.constant dense<0.000000e+00> : vector<16x8xf32>
    %204 = tpu.matmul %200, %203, %cst_143 {dimension_numbers = #tpu.dot_dimension_numbers<[1], [0], [0], [1], [0, 0, 1, 1], [], []>} : vector<16x32xf32>, vector<32x8xf32>, vector<16x8xf32> -> vector<16x8xf32>
    %205 = vector.shape_cast %204 : vector<16x8xf32> to vector<2x8x8xf32>
    %cst_144 = arith.constant 0.000000e+00 : f32
    %206 = vector.broadcast %cst_144 : f32 to vector<2x2x8xf32>
    %207 = vector.extract_strided_slice %205 {offsets = [0, 0, 0], sizes = [2, 6, 8], strides = [1, 1, 1]} : vector<2x8x8xf32> to vector<2x6x8xf32>
    %208 = tpu.concatenate %206, %207 in 1 : vector<2x2x8xf32>, vector<2x6x8xf32> -> vector<2x8x8xf32>
    %209 = arith.addf %201, %208 : vector<2x8x8xf32>
    %c2_145 = arith.constant 2 : index
    %c1_146 = arith.constant 1 : index
    %c0_147 = arith.constant 0 : index
    %c0_148 = arith.constant 0 : index
    %210 = vector.load %arg4[%c2_145, %c1_146, %c0_147, %c0_148] : memref<6x5x32x8xf32, #tpu.memory_space<vmem>>, vector<1x1x32x8xf32>
    %211 = vector.shape_cast %210 : vector<1x1x32x8xf32> to vector<32x8xf32>
    %cst_149 = arith.constant dense<0.000000e+00> : vector<16x8xf32>
    %212 = tpu.matmul %200, %211, %cst_149 {dimension_numbers = #tpu.dot_dimension_numbers<[1], [0], [0], [1], [0, 0, 1, 1], [], []>} : vector<16x32xf32>, vector<32x8xf32>, vector<16x8xf32> -> vector<16x8xf32>
    %213 = vector.shape_cast %212 : vector<16x8xf32> to vector<2x8x8xf32>
    %cst_150 = arith.constant 0.000000e+00 : f32
    %214 = vector.broadcast %cst_150 : f32 to vector<2x1x8xf32>
    %215 = vector.extract_strided_slice %213 {offsets = [0, 0, 0], sizes = [2, 7, 8], strides = [1, 1, 1]} : vector<2x8x8xf32> to vector<2x7x8xf32>
    %216 = tpu.concatenate %214, %215 in 1 : vector<2x1x8xf32>, vector<2x7x8xf32> -> vector<2x8x8xf32>
    %217 = arith.addf %209, %216 : vector<2x8x8xf32>
    %c2_151 = arith.constant 2 : index
    %c2_152 = arith.constant 2 : index
    %c0_153 = arith.constant 0 : index
    %c0_154 = arith.constant 0 : index
    %218 = vector.load %arg4[%c2_151, %c2_152, %c0_153, %c0_154] : memref<6x5x32x8xf32, #tpu.memory_space<vmem>>, vector<1x1x32x8xf32>
    %219 = vector.shape_cast %218 : vector<1x1x32x8xf32> to vector<32x8xf32>
    %cst_155 = arith.constant dense<0.000000e+00> : vector<16x8xf32>
    %220 = tpu.matmul %200, %219, %cst_155 {dimension_numbers = #tpu.dot_dimension_numbers<[1], [0], [0], [1], [0, 0, 1, 1], [], []>} : vector<16x32xf32>, vector<32x8xf32>, vector<16x8xf32> -> vector<16x8xf32>
    %221 = vector.shape_cast %220 : vector<16x8xf32> to vector<2x8x8xf32>
    %222 = arith.addf %217, %221 : vector<2x8x8xf32>
    %c2_156 = arith.constant 2 : index
    %c3_157 = arith.constant 3 : index
    %c0_158 = arith.constant 0 : index
    %c0_159 = arith.constant 0 : index
    %223 = vector.load %arg4[%c2_156, %c3_157, %c0_158, %c0_159] : memref<6x5x32x8xf32, #tpu.memory_space<vmem>>, vector<1x1x32x8xf32>
    %224 = vector.shape_cast %223 : vector<1x1x32x8xf32> to vector<32x8xf32>
    %cst_160 = arith.constant dense<0.000000e+00> : vector<16x8xf32>
    %225 = tpu.matmul %200, %224, %cst_160 {dimension_numbers = #tpu.dot_dimension_numbers<[1], [0], [0], [1], [0, 0, 1, 1], [], []>} : vector<16x32xf32>, vector<32x8xf32>, vector<16x8xf32> -> vector<16x8xf32>
    %226 = vector.shape_cast %225 : vector<16x8xf32> to vector<2x8x8xf32>
    %cst_161 = arith.constant 0.000000e+00 : f32
    %227 = vector.broadcast %cst_161 : f32 to vector<2x1x8xf32>
    %228 = vector.extract_strided_slice %226 {offsets = [0, 1, 0], sizes = [2, 7, 8], strides = [1, 1, 1]} : vector<2x8x8xf32> to vector<2x7x8xf32>
    %229 = tpu.concatenate %228, %227 in 1 : vector<2x7x8xf32>, vector<2x1x8xf32> -> vector<2x8x8xf32>
    %230 = arith.addf %222, %229 : vector<2x8x8xf32>
    %c2_162 = arith.constant 2 : index
    %c4_163 = arith.constant 4 : index
    %c0_164 = arith.constant 0 : index
    %c0_165 = arith.constant 0 : index
    %231 = vector.load %arg4[%c2_162, %c4_163, %c0_164, %c0_165] : memref<6x5x32x8xf32, #tpu.memory_space<vmem>>, vector<1x1x32x8xf32>
    %232 = vector.shape_cast %231 : vector<1x1x32x8xf32> to vector<32x8xf32>
    %cst_166 = arith.constant dense<0.000000e+00> : vector<16x8xf32>
    %233 = tpu.matmul %200, %232, %cst_166 {dimension_numbers = #tpu.dot_dimension_numbers<[1], [0], [0], [1], [0, 0, 1, 1], [], []>} : vector<16x32xf32>, vector<32x8xf32>, vector<16x8xf32> -> vector<16x8xf32>
    %234 = vector.shape_cast %233 : vector<16x8xf32> to vector<2x8x8xf32>
    %cst_167 = arith.constant 0.000000e+00 : f32
    %235 = vector.broadcast %cst_167 : f32 to vector<2x2x8xf32>
    %236 = vector.extract_strided_slice %234 {offsets = [0, 2, 0], sizes = [2, 6, 8], strides = [1, 1, 1]} : vector<2x8x8xf32> to vector<2x6x8xf32>
    %237 = tpu.concatenate %236, %235 in 1 : vector<2x6x8xf32>, vector<2x2x8xf32> -> vector<2x8x8xf32>
    %238 = arith.addf %230, %237 : vector<2x8x8xf32>
    %c2_168 = arith.constant 2 : index
    %c0_169 = arith.constant 0 : index
    %c0_170 = arith.constant 0 : index
    %239 = vector.load %arg5[%c2_168, %c0_169, %c0_170] : memref<6x1x8xf32, #tpu.memory_space<vmem>>, vector<1x1x8xf32>
    %240 = vector.shape_cast %239 : vector<1x1x8xf32> to vector<1x8xf32>
    %241 = vector.shape_cast %240 : vector<1x8xf32> to vector<1x1x8xf32>
    %242 = vector.broadcast %241 : vector<1x1x8xf32> to vector<2x8x8xf32>
    %243 = arith.addf %238, %242 : vector<2x8x8xf32>
    %cst_171 = arith.constant 0.000000e+00 : f32
    %244 = vector.broadcast %cst_171 : f32 to vector<2x8x8xf32>
    %245 = arith.cmpf ogt, %243, %244 : vector<2x8x8xf32>
    %cst_172 = arith.constant 2.000000e-01 : f32
    %246 = vector.broadcast %cst_172 : f32 to vector<2x8x8xf32>
    %247 = arith.mulf %246, %243 : vector<2x8x8xf32>
    %248 = arith.select %245, %243, %247 : vector<2x8x8xi1>, vector<2x8x8xf32>
    %cst_173 = arith.constant 0.000000e+00 : f32
    %249 = vector.broadcast %cst_173 : f32 to vector<2x2x8xf32>
    %250 = tpu.concatenate %249, %248, %249 in 1 : vector<2x2x8xf32>, vector<2x8x8xf32>, vector<2x2x8xf32> -> vector<2x12x8xf32>
    %cst_174 = arith.constant 0.000000e+00 : f32
    %251 = vector.broadcast %cst_174 : f32 to vector<16x32xf32>
    %252 = vector.extract_strided_slice %250 {offsets = [0, 0, 0], sizes = [2, 8, 8], strides = [1, 1, 1]} : vector<2x12x8xf32> to vector<2x8x8xf32>
    %253 = vector.shape_cast %252 : vector<2x8x8xf32> to vector<16x8xf32>
    %c2_175 = arith.constant 2 : index
    %c0_176 = arith.constant 0 : index
    %c0_177 = arith.constant 0 : index
    %c0_178 = arith.constant 0 : index
    %254 = vector.load %arg6[%c2_175, %c0_176, %c0_177, %c0_178] : memref<6x5x8x32xf32, #tpu.memory_space<vmem>>, vector<1x1x8x32xf32>
    %255 = vector.shape_cast %254 : vector<1x1x8x32xf32> to vector<8x32xf32>
    %cst_179 = arith.constant dense<0.000000e+00> : vector<16x32xf32>
    %256 = tpu.matmul %253, %255, %cst_179 {dimension_numbers = #tpu.dot_dimension_numbers<[1], [0], [0], [1], [0, 0, 1, 1], [], []>} : vector<16x8xf32>, vector<8x32xf32>, vector<16x32xf32> -> vector<16x32xf32>
    %257 = arith.addf %251, %256 : vector<16x32xf32>
    %258 = vector.extract_strided_slice %250 {offsets = [0, 1, 0], sizes = [2, 8, 8], strides = [1, 1, 1]} : vector<2x12x8xf32> to vector<2x8x8xf32>
    %259 = vector.shape_cast %258 : vector<2x8x8xf32> to vector<16x8xf32>
    %c2_180 = arith.constant 2 : index
    %c1_181 = arith.constant 1 : index
    %c0_182 = arith.constant 0 : index
    %c0_183 = arith.constant 0 : index
    %260 = vector.load %arg6[%c2_180, %c1_181, %c0_182, %c0_183] : memref<6x5x8x32xf32, #tpu.memory_space<vmem>>, vector<1x1x8x32xf32>
    %261 = vector.shape_cast %260 : vector<1x1x8x32xf32> to vector<8x32xf32>
    %cst_184 = arith.constant dense<0.000000e+00> : vector<16x32xf32>
    %262 = tpu.matmul %259, %261, %cst_184 {dimension_numbers = #tpu.dot_dimension_numbers<[1], [0], [0], [1], [0, 0, 1, 1], [], []>} : vector<16x8xf32>, vector<8x32xf32>, vector<16x32xf32> -> vector<16x32xf32>
    %263 = arith.addf %257, %262 : vector<16x32xf32>
    %264 = vector.extract_strided_slice %250 {offsets = [0, 2, 0], sizes = [2, 8, 8], strides = [1, 1, 1]} : vector<2x12x8xf32> to vector<2x8x8xf32>
    %265 = vector.shape_cast %264 : vector<2x8x8xf32> to vector<16x8xf32>
    %c2_185 = arith.constant 2 : index
    %c2_186 = arith.constant 2 : index
    %c0_187 = arith.constant 0 : index
    %c0_188 = arith.constant 0 : index
    %266 = vector.load %arg6[%c2_185, %c2_186, %c0_187, %c0_188] : memref<6x5x8x32xf32, #tpu.memory_space<vmem>>, vector<1x1x8x32xf32>
    %267 = vector.shape_cast %266 : vector<1x1x8x32xf32> to vector<8x32xf32>
    %cst_189 = arith.constant dense<0.000000e+00> : vector<16x32xf32>
    %268 = tpu.matmul %265, %267, %cst_189 {dimension_numbers = #tpu.dot_dimension_numbers<[1], [0], [0], [1], [0, 0, 1, 1], [], []>} : vector<16x8xf32>, vector<8x32xf32>, vector<16x32xf32> -> vector<16x32xf32>
    %269 = arith.addf %263, %268 : vector<16x32xf32>
    %270 = vector.extract_strided_slice %250 {offsets = [0, 3, 0], sizes = [2, 8, 8], strides = [1, 1, 1]} : vector<2x12x8xf32> to vector<2x8x8xf32>
    %271 = vector.shape_cast %270 : vector<2x8x8xf32> to vector<16x8xf32>
    %c2_190 = arith.constant 2 : index
    %c3_191 = arith.constant 3 : index
    %c0_192 = arith.constant 0 : index
    %c0_193 = arith.constant 0 : index
    %272 = vector.load %arg6[%c2_190, %c3_191, %c0_192, %c0_193] : memref<6x5x8x32xf32, #tpu.memory_space<vmem>>, vector<1x1x8x32xf32>
    %273 = vector.shape_cast %272 : vector<1x1x8x32xf32> to vector<8x32xf32>
    %cst_194 = arith.constant dense<0.000000e+00> : vector<16x32xf32>
    %274 = tpu.matmul %271, %273, %cst_194 {dimension_numbers = #tpu.dot_dimension_numbers<[1], [0], [0], [1], [0, 0, 1, 1], [], []>} : vector<16x8xf32>, vector<8x32xf32>, vector<16x32xf32> -> vector<16x32xf32>
    %275 = arith.addf %269, %274 : vector<16x32xf32>
    %276 = vector.extract_strided_slice %250 {offsets = [0, 4, 0], sizes = [2, 8, 8], strides = [1, 1, 1]} : vector<2x12x8xf32> to vector<2x8x8xf32>
    %277 = vector.shape_cast %276 : vector<2x8x8xf32> to vector<16x8xf32>
    %c2_195 = arith.constant 2 : index
    %c4_196 = arith.constant 4 : index
    %c0_197 = arith.constant 0 : index
    %c0_198 = arith.constant 0 : index
    %278 = vector.load %arg6[%c2_195, %c4_196, %c0_197, %c0_198] : memref<6x5x8x32xf32, #tpu.memory_space<vmem>>, vector<1x1x8x32xf32>
    %279 = vector.shape_cast %278 : vector<1x1x8x32xf32> to vector<8x32xf32>
    %cst_199 = arith.constant dense<0.000000e+00> : vector<16x32xf32>
    %280 = tpu.matmul %277, %279, %cst_199 {dimension_numbers = #tpu.dot_dimension_numbers<[1], [0], [0], [1], [0, 0, 1, 1], [], []>} : vector<16x8xf32>, vector<8x32xf32>, vector<16x32xf32> -> vector<16x32xf32>
    %281 = arith.addf %275, %280 : vector<16x32xf32>
    %282 = vector.shape_cast %281 : vector<16x32xf32> to vector<2x8x32xf32>
    %c2_200 = arith.constant 2 : index
    %c0_201 = arith.constant 0 : index
    %c0_202 = arith.constant 0 : index
    %283 = vector.load %arg7[%c2_200, %c0_201, %c0_202] : memref<6x1x32xf32, #tpu.memory_space<vmem>>, vector<1x1x32xf32>
    %284 = vector.shape_cast %283 : vector<1x1x32xf32> to vector<1x32xf32>
    %285 = vector.shape_cast %284 : vector<1x32xf32> to vector<1x1x32xf32>
    %286 = vector.broadcast %285 : vector<1x1x32xf32> to vector<2x8x32xf32>
    %287 = arith.addf %282, %286 : vector<2x8x32xf32>
    %cst_203 = arith.constant 0.000000e+00 : f32
    %288 = vector.broadcast %cst_203 : f32 to vector<2x8x32xf32>
    %289 = arith.cmpf ogt, %287, %288 : vector<2x8x32xf32>
    %cst_204 = arith.constant 2.000000e-01 : f32
    %290 = vector.broadcast %cst_204 : f32 to vector<2x8x32xf32>
    %291 = arith.mulf %290, %287 : vector<2x8x32xf32>
    %292 = arith.select %289, %287, %291 : vector<2x8x32xi1>, vector<2x8x32xf32>
    %cst_205 = arith.constant 1.000000e-01 : f32
    %293 = vector.broadcast %cst_205 : f32 to vector<2x8x32xf32>
    %294 = arith.mulf %293, %292 : vector<2x8x32xf32>
    %295 = arith.addf %199, %294 : vector<2x8x32xf32>
    %296 = vector.shape_cast %295 : vector<2x8x32xf32> to vector<16x32xf32>
    %cst_206 = arith.constant 0.000000e+00 : f32
    %297 = vector.broadcast %cst_206 : f32 to vector<2x8x8xf32>
    %c3_207 = arith.constant 3 : index
    %c0_208 = arith.constant 0 : index
    %c0_209 = arith.constant 0 : index
    %c0_210 = arith.constant 0 : index
    %298 = vector.load %arg4[%c3_207, %c0_208, %c0_209, %c0_210] : memref<6x5x32x8xf32, #tpu.memory_space<vmem>>, vector<1x1x32x8xf32>
    %299 = vector.shape_cast %298 : vector<1x1x32x8xf32> to vector<32x8xf32>
    %cst_211 = arith.constant dense<0.000000e+00> : vector<16x8xf32>
    %300 = tpu.matmul %296, %299, %cst_211 {dimension_numbers = #tpu.dot_dimension_numbers<[1], [0], [0], [1], [0, 0, 1, 1], [], []>} : vector<16x32xf32>, vector<32x8xf32>, vector<16x8xf32> -> vector<16x8xf32>
    %301 = vector.shape_cast %300 : vector<16x8xf32> to vector<2x8x8xf32>
    %cst_212 = arith.constant 0.000000e+00 : f32
    %302 = vector.broadcast %cst_212 : f32 to vector<2x2x8xf32>
    %303 = vector.extract_strided_slice %301 {offsets = [0, 0, 0], sizes = [2, 6, 8], strides = [1, 1, 1]} : vector<2x8x8xf32> to vector<2x6x8xf32>
    %304 = tpu.concatenate %302, %303 in 1 : vector<2x2x8xf32>, vector<2x6x8xf32> -> vector<2x8x8xf32>
    %305 = arith.addf %297, %304 : vector<2x8x8xf32>
    %c3_213 = arith.constant 3 : index
    %c1_214 = arith.constant 1 : index
    %c0_215 = arith.constant 0 : index
    %c0_216 = arith.constant 0 : index
    %306 = vector.load %arg4[%c3_213, %c1_214, %c0_215, %c0_216] : memref<6x5x32x8xf32, #tpu.memory_space<vmem>>, vector<1x1x32x8xf32>
    %307 = vector.shape_cast %306 : vector<1x1x32x8xf32> to vector<32x8xf32>
    %cst_217 = arith.constant dense<0.000000e+00> : vector<16x8xf32>
    %308 = tpu.matmul %296, %307, %cst_217 {dimension_numbers = #tpu.dot_dimension_numbers<[1], [0], [0], [1], [0, 0, 1, 1], [], []>} : vector<16x32xf32>, vector<32x8xf32>, vector<16x8xf32> -> vector<16x8xf32>
    %309 = vector.shape_cast %308 : vector<16x8xf32> to vector<2x8x8xf32>
    %cst_218 = arith.constant 0.000000e+00 : f32
    %310 = vector.broadcast %cst_218 : f32 to vector<2x1x8xf32>
    %311 = vector.extract_strided_slice %309 {offsets = [0, 0, 0], sizes = [2, 7, 8], strides = [1, 1, 1]} : vector<2x8x8xf32> to vector<2x7x8xf32>
    %312 = tpu.concatenate %310, %311 in 1 : vector<2x1x8xf32>, vector<2x7x8xf32> -> vector<2x8x8xf32>
    %313 = arith.addf %305, %312 : vector<2x8x8xf32>
    %c3_219 = arith.constant 3 : index
    %c2_220 = arith.constant 2 : index
    %c0_221 = arith.constant 0 : index
    %c0_222 = arith.constant 0 : index
    %314 = vector.load %arg4[%c3_219, %c2_220, %c0_221, %c0_222] : memref<6x5x32x8xf32, #tpu.memory_space<vmem>>, vector<1x1x32x8xf32>
    %315 = vector.shape_cast %314 : vector<1x1x32x8xf32> to vector<32x8xf32>
    %cst_223 = arith.constant dense<0.000000e+00> : vector<16x8xf32>
    %316 = tpu.matmul %296, %315, %cst_223 {dimension_numbers = #tpu.dot_dimension_numbers<[1], [0], [0], [1], [0, 0, 1, 1], [], []>} : vector<16x32xf32>, vector<32x8xf32>, vector<16x8xf32> -> vector<16x8xf32>
    %317 = vector.shape_cast %316 : vector<16x8xf32> to vector<2x8x8xf32>
    %318 = arith.addf %313, %317 : vector<2x8x8xf32>
    %c3_224 = arith.constant 3 : index
    %c3_225 = arith.constant 3 : index
    %c0_226 = arith.constant 0 : index
    %c0_227 = arith.constant 0 : index
    %319 = vector.load %arg4[%c3_224, %c3_225, %c0_226, %c0_227] : memref<6x5x32x8xf32, #tpu.memory_space<vmem>>, vector<1x1x32x8xf32>
    %320 = vector.shape_cast %319 : vector<1x1x32x8xf32> to vector<32x8xf32>
    %cst_228 = arith.constant dense<0.000000e+00> : vector<16x8xf32>
    %321 = tpu.matmul %296, %320, %cst_228 {dimension_numbers = #tpu.dot_dimension_numbers<[1], [0], [0], [1], [0, 0, 1, 1], [], []>} : vector<16x32xf32>, vector<32x8xf32>, vector<16x8xf32> -> vector<16x8xf32>
    %322 = vector.shape_cast %321 : vector<16x8xf32> to vector<2x8x8xf32>
    %cst_229 = arith.constant 0.000000e+00 : f32
    %323 = vector.broadcast %cst_229 : f32 to vector<2x1x8xf32>
    %324 = vector.extract_strided_slice %322 {offsets = [0, 1, 0], sizes = [2, 7, 8], strides = [1, 1, 1]} : vector<2x8x8xf32> to vector<2x7x8xf32>
    %325 = tpu.concatenate %324, %323 in 1 : vector<2x7x8xf32>, vector<2x1x8xf32> -> vector<2x8x8xf32>
    %326 = arith.addf %318, %325 : vector<2x8x8xf32>
    %c3_230 = arith.constant 3 : index
    %c4_231 = arith.constant 4 : index
    %c0_232 = arith.constant 0 : index
    %c0_233 = arith.constant 0 : index
    %327 = vector.load %arg4[%c3_230, %c4_231, %c0_232, %c0_233] : memref<6x5x32x8xf32, #tpu.memory_space<vmem>>, vector<1x1x32x8xf32>
    %328 = vector.shape_cast %327 : vector<1x1x32x8xf32> to vector<32x8xf32>
    %cst_234 = arith.constant dense<0.000000e+00> : vector<16x8xf32>
    %329 = tpu.matmul %296, %328, %cst_234 {dimension_numbers = #tpu.dot_dimension_numbers<[1], [0], [0], [1], [0, 0, 1, 1], [], []>} : vector<16x32xf32>, vector<32x8xf32>, vector<16x8xf32> -> vector<16x8xf32>
    %330 = vector.shape_cast %329 : vector<16x8xf32> to vector<2x8x8xf32>
    %cst_235 = arith.constant 0.000000e+00 : f32
    %331 = vector.broadcast %cst_235 : f32 to vector<2x2x8xf32>
    %332 = vector.extract_strided_slice %330 {offsets = [0, 2, 0], sizes = [2, 6, 8], strides = [1, 1, 1]} : vector<2x8x8xf32> to vector<2x6x8xf32>
    %333 = tpu.concatenate %332, %331 in 1 : vector<2x6x8xf32>, vector<2x2x8xf32> -> vector<2x8x8xf32>
    %334 = arith.addf %326, %333 : vector<2x8x8xf32>
    %c3_236 = arith.constant 3 : index
    %c0_237 = arith.constant 0 : index
    %c0_238 = arith.constant 0 : index
    %335 = vector.load %arg5[%c3_236, %c0_237, %c0_238] : memref<6x1x8xf32, #tpu.memory_space<vmem>>, vector<1x1x8xf32>
    %336 = vector.shape_cast %335 : vector<1x1x8xf32> to vector<1x8xf32>
    %337 = vector.shape_cast %336 : vector<1x8xf32> to vector<1x1x8xf32>
    %338 = vector.broadcast %337 : vector<1x1x8xf32> to vector<2x8x8xf32>
    %339 = arith.addf %334, %338 : vector<2x8x8xf32>
    %cst_239 = arith.constant 0.000000e+00 : f32
    %340 = vector.broadcast %cst_239 : f32 to vector<2x8x8xf32>
    %341 = arith.cmpf ogt, %339, %340 : vector<2x8x8xf32>
    %cst_240 = arith.constant 2.000000e-01 : f32
    %342 = vector.broadcast %cst_240 : f32 to vector<2x8x8xf32>
    %343 = arith.mulf %342, %339 : vector<2x8x8xf32>
    %344 = arith.select %341, %339, %343 : vector<2x8x8xi1>, vector<2x8x8xf32>
    %cst_241 = arith.constant 0.000000e+00 : f32
    %345 = vector.broadcast %cst_241 : f32 to vector<2x2x8xf32>
    %346 = tpu.concatenate %345, %344, %345 in 1 : vector<2x2x8xf32>, vector<2x8x8xf32>, vector<2x2x8xf32> -> vector<2x12x8xf32>
    %cst_242 = arith.constant 0.000000e+00 : f32
    %347 = vector.broadcast %cst_242 : f32 to vector<16x32xf32>
    %348 = vector.extract_strided_slice %346 {offsets = [0, 0, 0], sizes = [2, 8, 8], strides = [1, 1, 1]} : vector<2x12x8xf32> to vector<2x8x8xf32>
    %349 = vector.shape_cast %348 : vector<2x8x8xf32> to vector<16x8xf32>
    %c3_243 = arith.constant 3 : index
    %c0_244 = arith.constant 0 : index
    %c0_245 = arith.constant 0 : index
    %c0_246 = arith.constant 0 : index
    %350 = vector.load %arg6[%c3_243, %c0_244, %c0_245, %c0_246] : memref<6x5x8x32xf32, #tpu.memory_space<vmem>>, vector<1x1x8x32xf32>
    %351 = vector.shape_cast %350 : vector<1x1x8x32xf32> to vector<8x32xf32>
    %cst_247 = arith.constant dense<0.000000e+00> : vector<16x32xf32>
    %352 = tpu.matmul %349, %351, %cst_247 {dimension_numbers = #tpu.dot_dimension_numbers<[1], [0], [0], [1], [0, 0, 1, 1], [], []>} : vector<16x8xf32>, vector<8x32xf32>, vector<16x32xf32> -> vector<16x32xf32>
    %353 = arith.addf %347, %352 : vector<16x32xf32>
    %354 = vector.extract_strided_slice %346 {offsets = [0, 1, 0], sizes = [2, 8, 8], strides = [1, 1, 1]} : vector<2x12x8xf32> to vector<2x8x8xf32>
    %355 = vector.shape_cast %354 : vector<2x8x8xf32> to vector<16x8xf32>
    %c3_248 = arith.constant 3 : index
    %c1_249 = arith.constant 1 : index
    %c0_250 = arith.constant 0 : index
    %c0_251 = arith.constant 0 : index
    %356 = vector.load %arg6[%c3_248, %c1_249, %c0_250, %c0_251] : memref<6x5x8x32xf32, #tpu.memory_space<vmem>>, vector<1x1x8x32xf32>
    %357 = vector.shape_cast %356 : vector<1x1x8x32xf32> to vector<8x32xf32>
    %cst_252 = arith.constant dense<0.000000e+00> : vector<16x32xf32>
    %358 = tpu.matmul %355, %357, %cst_252 {dimension_numbers = #tpu.dot_dimension_numbers<[1], [0], [0], [1], [0, 0, 1, 1], [], []>} : vector<16x8xf32>, vector<8x32xf32>, vector<16x32xf32> -> vector<16x32xf32>
    %359 = arith.addf %353, %358 : vector<16x32xf32>
    %360 = vector.extract_strided_slice %346 {offsets = [0, 2, 0], sizes = [2, 8, 8], strides = [1, 1, 1]} : vector<2x12x8xf32> to vector<2x8x8xf32>
    %361 = vector.shape_cast %360 : vector<2x8x8xf32> to vector<16x8xf32>
    %c3_253 = arith.constant 3 : index
    %c2_254 = arith.constant 2 : index
    %c0_255 = arith.constant 0 : index
    %c0_256 = arith.constant 0 : index
    %362 = vector.load %arg6[%c3_253, %c2_254, %c0_255, %c0_256] : memref<6x5x8x32xf32, #tpu.memory_space<vmem>>, vector<1x1x8x32xf32>
    %363 = vector.shape_cast %362 : vector<1x1x8x32xf32> to vector<8x32xf32>
    %cst_257 = arith.constant dense<0.000000e+00> : vector<16x32xf32>
    %364 = tpu.matmul %361, %363, %cst_257 {dimension_numbers = #tpu.dot_dimension_numbers<[1], [0], [0], [1], [0, 0, 1, 1], [], []>} : vector<16x8xf32>, vector<8x32xf32>, vector<16x32xf32> -> vector<16x32xf32>
    %365 = arith.addf %359, %364 : vector<16x32xf32>
    %366 = vector.extract_strided_slice %346 {offsets = [0, 3, 0], sizes = [2, 8, 8], strides = [1, 1, 1]} : vector<2x12x8xf32> to vector<2x8x8xf32>
    %367 = vector.shape_cast %366 : vector<2x8x8xf32> to vector<16x8xf32>
    %c3_258 = arith.constant 3 : index
    %c3_259 = arith.constant 3 : index
    %c0_260 = arith.constant 0 : index
    %c0_261 = arith.constant 0 : index
    %368 = vector.load %arg6[%c3_258, %c3_259, %c0_260, %c0_261] : memref<6x5x8x32xf32, #tpu.memory_space<vmem>>, vector<1x1x8x32xf32>
    %369 = vector.shape_cast %368 : vector<1x1x8x32xf32> to vector<8x32xf32>
    %cst_262 = arith.constant dense<0.000000e+00> : vector<16x32xf32>
    %370 = tpu.matmul %367, %369, %cst_262 {dimension_numbers = #tpu.dot_dimension_numbers<[1], [0], [0], [1], [0, 0, 1, 1], [], []>} : vector<16x8xf32>, vector<8x32xf32>, vector<16x32xf32> -> vector<16x32xf32>
    %371 = arith.addf %365, %370 : vector<16x32xf32>
    %372 = vector.extract_strided_slice %346 {offsets = [0, 4, 0], sizes = [2, 8, 8], strides = [1, 1, 1]} : vector<2x12x8xf32> to vector<2x8x8xf32>
    %373 = vector.shape_cast %372 : vector<2x8x8xf32> to vector<16x8xf32>
    %c3_263 = arith.constant 3 : index
    %c4_264 = arith.constant 4 : index
    %c0_265 = arith.constant 0 : index
    %c0_266 = arith.constant 0 : index
    %374 = vector.load %arg6[%c3_263, %c4_264, %c0_265, %c0_266] : memref<6x5x8x32xf32, #tpu.memory_space<vmem>>, vector<1x1x8x32xf32>
    %375 = vector.shape_cast %374 : vector<1x1x8x32xf32> to vector<8x32xf32>
    %cst_267 = arith.constant dense<0.000000e+00> : vector<16x32xf32>
    %376 = tpu.matmul %373, %375, %cst_267 {dimension_numbers = #tpu.dot_dimension_numbers<[1], [0], [0], [1], [0, 0, 1, 1], [], []>} : vector<16x8xf32>, vector<8x32xf32>, vector<16x32xf32> -> vector<16x32xf32>
    %377 = arith.addf %371, %376 : vector<16x32xf32>
    %378 = vector.shape_cast %377 : vector<16x32xf32> to vector<2x8x32xf32>
    %c3_268 = arith.constant 3 : index
    %c0_269 = arith.constant 0 : index
    %c0_270 = arith.constant 0 : index
    %379 = vector.load %arg7[%c3_268, %c0_269, %c0_270] : memref<6x1x32xf32, #tpu.memory_space<vmem>>, vector<1x1x32xf32>
    %380 = vector.shape_cast %379 : vector<1x1x32xf32> to vector<1x32xf32>
    %381 = vector.shape_cast %380 : vector<1x32xf32> to vector<1x1x32xf32>
    %382 = vector.broadcast %381 : vector<1x1x32xf32> to vector<2x8x32xf32>
    %383 = arith.addf %378, %382 : vector<2x8x32xf32>
    %cst_271 = arith.constant 0.000000e+00 : f32
    %384 = vector.broadcast %cst_271 : f32 to vector<2x8x32xf32>
    %385 = arith.cmpf ogt, %383, %384 : vector<2x8x32xf32>
    %cst_272 = arith.constant 2.000000e-01 : f32
    %386 = vector.broadcast %cst_272 : f32 to vector<2x8x32xf32>
    %387 = arith.mulf %386, %383 : vector<2x8x32xf32>
    %388 = arith.select %385, %383, %387 : vector<2x8x32xi1>, vector<2x8x32xf32>
    %cst_273 = arith.constant 1.000000e-01 : f32
    %389 = vector.broadcast %cst_273 : f32 to vector<2x8x32xf32>
    %390 = arith.mulf %389, %388 : vector<2x8x32xf32>
    %391 = arith.addf %295, %390 : vector<2x8x32xf32>
    %392 = vector.shape_cast %391 : vector<2x8x32xf32> to vector<16x32xf32>
    %cst_274 = arith.constant 0.000000e+00 : f32
    %393 = vector.broadcast %cst_274 : f32 to vector<2x8x8xf32>
    %c4_275 = arith.constant 4 : index
    %c0_276 = arith.constant 0 : index
    %c0_277 = arith.constant 0 : index
    %c0_278 = arith.constant 0 : index
    %394 = vector.load %arg4[%c4_275, %c0_276, %c0_277, %c0_278] : memref<6x5x32x8xf32, #tpu.memory_space<vmem>>, vector<1x1x32x8xf32>
    %395 = vector.shape_cast %394 : vector<1x1x32x8xf32> to vector<32x8xf32>
    %cst_279 = arith.constant dense<0.000000e+00> : vector<16x8xf32>
    %396 = tpu.matmul %392, %395, %cst_279 {dimension_numbers = #tpu.dot_dimension_numbers<[1], [0], [0], [1], [0, 0, 1, 1], [], []>} : vector<16x32xf32>, vector<32x8xf32>, vector<16x8xf32> -> vector<16x8xf32>
    %397 = vector.shape_cast %396 : vector<16x8xf32> to vector<2x8x8xf32>
    %cst_280 = arith.constant 0.000000e+00 : f32
    %398 = vector.broadcast %cst_280 : f32 to vector<2x2x8xf32>
    %399 = vector.extract_strided_slice %397 {offsets = [0, 0, 0], sizes = [2, 6, 8], strides = [1, 1, 1]} : vector<2x8x8xf32> to vector<2x6x8xf32>
    %400 = tpu.concatenate %398, %399 in 1 : vector<2x2x8xf32>, vector<2x6x8xf32> -> vector<2x8x8xf32>
    %401 = arith.addf %393, %400 : vector<2x8x8xf32>
    %c4_281 = arith.constant 4 : index
    %c1_282 = arith.constant 1 : index
    %c0_283 = arith.constant 0 : index
    %c0_284 = arith.constant 0 : index
    %402 = vector.load %arg4[%c4_281, %c1_282, %c0_283, %c0_284] : memref<6x5x32x8xf32, #tpu.memory_space<vmem>>, vector<1x1x32x8xf32>
    %403 = vector.shape_cast %402 : vector<1x1x32x8xf32> to vector<32x8xf32>
    %cst_285 = arith.constant dense<0.000000e+00> : vector<16x8xf32>
    %404 = tpu.matmul %392, %403, %cst_285 {dimension_numbers = #tpu.dot_dimension_numbers<[1], [0], [0], [1], [0, 0, 1, 1], [], []>} : vector<16x32xf32>, vector<32x8xf32>, vector<16x8xf32> -> vector<16x8xf32>
    %405 = vector.shape_cast %404 : vector<16x8xf32> to vector<2x8x8xf32>
    %cst_286 = arith.constant 0.000000e+00 : f32
    %406 = vector.broadcast %cst_286 : f32 to vector<2x1x8xf32>
    %407 = vector.extract_strided_slice %405 {offsets = [0, 0, 0], sizes = [2, 7, 8], strides = [1, 1, 1]} : vector<2x8x8xf32> to vector<2x7x8xf32>
    %408 = tpu.concatenate %406, %407 in 1 : vector<2x1x8xf32>, vector<2x7x8xf32> -> vector<2x8x8xf32>
    %409 = arith.addf %401, %408 : vector<2x8x8xf32>
    %c4_287 = arith.constant 4 : index
    %c2_288 = arith.constant 2 : index
    %c0_289 = arith.constant 0 : index
    %c0_290 = arith.constant 0 : index
    %410 = vector.load %arg4[%c4_287, %c2_288, %c0_289, %c0_290] : memref<6x5x32x8xf32, #tpu.memory_space<vmem>>, vector<1x1x32x8xf32>
    %411 = vector.shape_cast %410 : vector<1x1x32x8xf32> to vector<32x8xf32>
    %cst_291 = arith.constant dense<0.000000e+00> : vector<16x8xf32>
    %412 = tpu.matmul %392, %411, %cst_291 {dimension_numbers = #tpu.dot_dimension_numbers<[1], [0], [0], [1], [0, 0, 1, 1], [], []>} : vector<16x32xf32>, vector<32x8xf32>, vector<16x8xf32> -> vector<16x8xf32>
    %413 = vector.shape_cast %412 : vector<16x8xf32> to vector<2x8x8xf32>
    %414 = arith.addf %409, %413 : vector<2x8x8xf32>
    %c4_292 = arith.constant 4 : index
    %c3_293 = arith.constant 3 : index
    %c0_294 = arith.constant 0 : index
    %c0_295 = arith.constant 0 : index
    %415 = vector.load %arg4[%c4_292, %c3_293, %c0_294, %c0_295] : memref<6x5x32x8xf32, #tpu.memory_space<vmem>>, vector<1x1x32x8xf32>
    %416 = vector.shape_cast %415 : vector<1x1x32x8xf32> to vector<32x8xf32>
    %cst_296 = arith.constant dense<0.000000e+00> : vector<16x8xf32>
    %417 = tpu.matmul %392, %416, %cst_296 {dimension_numbers = #tpu.dot_dimension_numbers<[1], [0], [0], [1], [0, 0, 1, 1], [], []>} : vector<16x32xf32>, vector<32x8xf32>, vector<16x8xf32> -> vector<16x8xf32>
    %418 = vector.shape_cast %417 : vector<16x8xf32> to vector<2x8x8xf32>
    %cst_297 = arith.constant 0.000000e+00 : f32
    %419 = vector.broadcast %cst_297 : f32 to vector<2x1x8xf32>
    %420 = vector.extract_strided_slice %418 {offsets = [0, 1, 0], sizes = [2, 7, 8], strides = [1, 1, 1]} : vector<2x8x8xf32> to vector<2x7x8xf32>
    %421 = tpu.concatenate %420, %419 in 1 : vector<2x7x8xf32>, vector<2x1x8xf32> -> vector<2x8x8xf32>
    %422 = arith.addf %414, %421 : vector<2x8x8xf32>
    %c4_298 = arith.constant 4 : index
    %c4_299 = arith.constant 4 : index
    %c0_300 = arith.constant 0 : index
    %c0_301 = arith.constant 0 : index
    %423 = vector.load %arg4[%c4_298, %c4_299, %c0_300, %c0_301] : memref<6x5x32x8xf32, #tpu.memory_space<vmem>>, vector<1x1x32x8xf32>
    %424 = vector.shape_cast %423 : vector<1x1x32x8xf32> to vector<32x8xf32>
    %cst_302 = arith.constant dense<0.000000e+00> : vector<16x8xf32>
    %425 = tpu.matmul %392, %424, %cst_302 {dimension_numbers = #tpu.dot_dimension_numbers<[1], [0], [0], [1], [0, 0, 1, 1], [], []>} : vector<16x32xf32>, vector<32x8xf32>, vector<16x8xf32> -> vector<16x8xf32>
    %426 = vector.shape_cast %425 : vector<16x8xf32> to vector<2x8x8xf32>
    %cst_303 = arith.constant 0.000000e+00 : f32
    %427 = vector.broadcast %cst_303 : f32 to vector<2x2x8xf32>
    %428 = vector.extract_strided_slice %426 {offsets = [0, 2, 0], sizes = [2, 6, 8], strides = [1, 1, 1]} : vector<2x8x8xf32> to vector<2x6x8xf32>
    %429 = tpu.concatenate %428, %427 in 1 : vector<2x6x8xf32>, vector<2x2x8xf32> -> vector<2x8x8xf32>
    %430 = arith.addf %422, %429 : vector<2x8x8xf32>
    %c4_304 = arith.constant 4 : index
    %c0_305 = arith.constant 0 : index
    %c0_306 = arith.constant 0 : index
    %431 = vector.load %arg5[%c4_304, %c0_305, %c0_306] : memref<6x1x8xf32, #tpu.memory_space<vmem>>, vector<1x1x8xf32>
    %432 = vector.shape_cast %431 : vector<1x1x8xf32> to vector<1x8xf32>
    %433 = vector.shape_cast %432 : vector<1x8xf32> to vector<1x1x8xf32>
    %434 = vector.broadcast %433 : vector<1x1x8xf32> to vector<2x8x8xf32>
    %435 = arith.addf %430, %434 : vector<2x8x8xf32>
    %cst_307 = arith.constant 0.000000e+00 : f32
    %436 = vector.broadcast %cst_307 : f32 to vector<2x8x8xf32>
    %437 = arith.cmpf ogt, %435, %436 : vector<2x8x8xf32>
    %cst_308 = arith.constant 2.000000e-01 : f32
    %438 = vector.broadcast %cst_308 : f32 to vector<2x8x8xf32>
    %439 = arith.mulf %438, %435 : vector<2x8x8xf32>
    %440 = arith.select %437, %435, %439 : vector<2x8x8xi1>, vector<2x8x8xf32>
    %cst_309 = arith.constant 0.000000e+00 : f32
    %441 = vector.broadcast %cst_309 : f32 to vector<2x2x8xf32>
    %442 = tpu.concatenate %441, %440, %441 in 1 : vector<2x2x8xf32>, vector<2x8x8xf32>, vector<2x2x8xf32> -> vector<2x12x8xf32>
    %cst_310 = arith.constant 0.000000e+00 : f32
    %443 = vector.broadcast %cst_310 : f32 to vector<16x32xf32>
    %444 = vector.extract_strided_slice %442 {offsets = [0, 0, 0], sizes = [2, 8, 8], strides = [1, 1, 1]} : vector<2x12x8xf32> to vector<2x8x8xf32>
    %445 = vector.shape_cast %444 : vector<2x8x8xf32> to vector<16x8xf32>
    %c4_311 = arith.constant 4 : index
    %c0_312 = arith.constant 0 : index
    %c0_313 = arith.constant 0 : index
    %c0_314 = arith.constant 0 : index
    %446 = vector.load %arg6[%c4_311, %c0_312, %c0_313, %c0_314] : memref<6x5x8x32xf32, #tpu.memory_space<vmem>>, vector<1x1x8x32xf32>
    %447 = vector.shape_cast %446 : vector<1x1x8x32xf32> to vector<8x32xf32>
    %cst_315 = arith.constant dense<0.000000e+00> : vector<16x32xf32>
    %448 = tpu.matmul %445, %447, %cst_315 {dimension_numbers = #tpu.dot_dimension_numbers<[1], [0], [0], [1], [0, 0, 1, 1], [], []>} : vector<16x8xf32>, vector<8x32xf32>, vector<16x32xf32> -> vector<16x32xf32>
    %449 = arith.addf %443, %448 : vector<16x32xf32>
    %450 = vector.extract_strided_slice %442 {offsets = [0, 1, 0], sizes = [2, 8, 8], strides = [1, 1, 1]} : vector<2x12x8xf32> to vector<2x8x8xf32>
    %451 = vector.shape_cast %450 : vector<2x8x8xf32> to vector<16x8xf32>
    %c4_316 = arith.constant 4 : index
    %c1_317 = arith.constant 1 : index
    %c0_318 = arith.constant 0 : index
    %c0_319 = arith.constant 0 : index
    %452 = vector.load %arg6[%c4_316, %c1_317, %c0_318, %c0_319] : memref<6x5x8x32xf32, #tpu.memory_space<vmem>>, vector<1x1x8x32xf32>
    %453 = vector.shape_cast %452 : vector<1x1x8x32xf32> to vector<8x32xf32>
    %cst_320 = arith.constant dense<0.000000e+00> : vector<16x32xf32>
    %454 = tpu.matmul %451, %453, %cst_320 {dimension_numbers = #tpu.dot_dimension_numbers<[1], [0], [0], [1], [0, 0, 1, 1], [], []>} : vector<16x8xf32>, vector<8x32xf32>, vector<16x32xf32> -> vector<16x32xf32>
    %455 = arith.addf %449, %454 : vector<16x32xf32>
    %456 = vector.extract_strided_slice %442 {offsets = [0, 2, 0], sizes = [2, 8, 8], strides = [1, 1, 1]} : vector<2x12x8xf32> to vector<2x8x8xf32>
    %457 = vector.shape_cast %456 : vector<2x8x8xf32> to vector<16x8xf32>
    %c4_321 = arith.constant 4 : index
    %c2_322 = arith.constant 2 : index
    %c0_323 = arith.constant 0 : index
    %c0_324 = arith.constant 0 : index
    %458 = vector.load %arg6[%c4_321, %c2_322, %c0_323, %c0_324] : memref<6x5x8x32xf32, #tpu.memory_space<vmem>>, vector<1x1x8x32xf32>
    %459 = vector.shape_cast %458 : vector<1x1x8x32xf32> to vector<8x32xf32>
    %cst_325 = arith.constant dense<0.000000e+00> : vector<16x32xf32>
    %460 = tpu.matmul %457, %459, %cst_325 {dimension_numbers = #tpu.dot_dimension_numbers<[1], [0], [0], [1], [0, 0, 1, 1], [], []>} : vector<16x8xf32>, vector<8x32xf32>, vector<16x32xf32> -> vector<16x32xf32>
    %461 = arith.addf %455, %460 : vector<16x32xf32>
    %462 = vector.extract_strided_slice %442 {offsets = [0, 3, 0], sizes = [2, 8, 8], strides = [1, 1, 1]} : vector<2x12x8xf32> to vector<2x8x8xf32>
    %463 = vector.shape_cast %462 : vector<2x8x8xf32> to vector<16x8xf32>
    %c4_326 = arith.constant 4 : index
    %c3_327 = arith.constant 3 : index
    %c0_328 = arith.constant 0 : index
    %c0_329 = arith.constant 0 : index
    %464 = vector.load %arg6[%c4_326, %c3_327, %c0_328, %c0_329] : memref<6x5x8x32xf32, #tpu.memory_space<vmem>>, vector<1x1x8x32xf32>
    %465 = vector.shape_cast %464 : vector<1x1x8x32xf32> to vector<8x32xf32>
    %cst_330 = arith.constant dense<0.000000e+00> : vector<16x32xf32>
    %466 = tpu.matmul %463, %465, %cst_330 {dimension_numbers = #tpu.dot_dimension_numbers<[1], [0], [0], [1], [0, 0, 1, 1], [], []>} : vector<16x8xf32>, vector<8x32xf32>, vector<16x32xf32> -> vector<16x32xf32>
    %467 = arith.addf %461, %466 : vector<16x32xf32>
    %468 = vector.extract_strided_slice %442 {offsets = [0, 4, 0], sizes = [2, 8, 8], strides = [1, 1, 1]} : vector<2x12x8xf32> to vector<2x8x8xf32>
    %469 = vector.shape_cast %468 : vector<2x8x8xf32> to vector<16x8xf32>
    %c4_331 = arith.constant 4 : index
    %c4_332 = arith.constant 4 : index
    %c0_333 = arith.constant 0 : index
    %c0_334 = arith.constant 0 : index
    %470 = vector.load %arg6[%c4_331, %c4_332, %c0_333, %c0_334] : memref<6x5x8x32xf32, #tpu.memory_space<vmem>>, vector<1x1x8x32xf32>
    %471 = vector.shape_cast %470 : vector<1x1x8x32xf32> to vector<8x32xf32>
    %cst_335 = arith.constant dense<0.000000e+00> : vector<16x32xf32>
    %472 = tpu.matmul %469, %471, %cst_335 {dimension_numbers = #tpu.dot_dimension_numbers<[1], [0], [0], [1], [0, 0, 1, 1], [], []>} : vector<16x8xf32>, vector<8x32xf32>, vector<16x32xf32> -> vector<16x32xf32>
    %473 = arith.addf %467, %472 : vector<16x32xf32>
    %474 = vector.shape_cast %473 : vector<16x32xf32> to vector<2x8x32xf32>
    %c4_336 = arith.constant 4 : index
    %c0_337 = arith.constant 0 : index
    %c0_338 = arith.constant 0 : index
    %475 = vector.load %arg7[%c4_336, %c0_337, %c0_338] : memref<6x1x32xf32, #tpu.memory_space<vmem>>, vector<1x1x32xf32>
    %476 = vector.shape_cast %475 : vector<1x1x32xf32> to vector<1x32xf32>
    %477 = vector.shape_cast %476 : vector<1x32xf32> to vector<1x1x32xf32>
    %478 = vector.broadcast %477 : vector<1x1x32xf32> to vector<2x8x32xf32>
    %479 = arith.addf %474, %478 : vector<2x8x32xf32>
    %cst_339 = arith.constant 0.000000e+00 : f32
    %480 = vector.broadcast %cst_339 : f32 to vector<2x8x32xf32>
    %481 = arith.cmpf ogt, %479, %480 : vector<2x8x32xf32>
    %cst_340 = arith.constant 2.000000e-01 : f32
    %482 = vector.broadcast %cst_340 : f32 to vector<2x8x32xf32>
    %483 = arith.mulf %482, %479 : vector<2x8x32xf32>
    %484 = arith.select %481, %479, %483 : vector<2x8x32xi1>, vector<2x8x32xf32>
    %cst_341 = arith.constant 1.000000e-01 : f32
    %485 = vector.broadcast %cst_341 : f32 to vector<2x8x32xf32>
    %486 = arith.mulf %485, %484 : vector<2x8x32xf32>
    %487 = arith.addf %391, %486 : vector<2x8x32xf32>
    %488 = vector.shape_cast %487 : vector<2x8x32xf32> to vector<16x32xf32>
    %cst_342 = arith.constant 0.000000e+00 : f32
    %489 = vector.broadcast %cst_342 : f32 to vector<2x8x8xf32>
    %c5 = arith.constant 5 : index
    %c0_343 = arith.constant 0 : index
    %c0_344 = arith.constant 0 : index
    %c0_345 = arith.constant 0 : index
    %490 = vector.load %arg4[%c5, %c0_343, %c0_344, %c0_345] : memref<6x5x32x8xf32, #tpu.memory_space<vmem>>, vector<1x1x32x8xf32>
    %491 = vector.shape_cast %490 : vector<1x1x32x8xf32> to vector<32x8xf32>
    %cst_346 = arith.constant dense<0.000000e+00> : vector<16x8xf32>
    %492 = tpu.matmul %488, %491, %cst_346 {dimension_numbers = #tpu.dot_dimension_numbers<[1], [0], [0], [1], [0, 0, 1, 1], [], []>} : vector<16x32xf32>, vector<32x8xf32>, vector<16x8xf32> -> vector<16x8xf32>
    %493 = vector.shape_cast %492 : vector<16x8xf32> to vector<2x8x8xf32>
    %cst_347 = arith.constant 0.000000e+00 : f32
    %494 = vector.broadcast %cst_347 : f32 to vector<2x2x8xf32>
    %495 = vector.extract_strided_slice %493 {offsets = [0, 0, 0], sizes = [2, 6, 8], strides = [1, 1, 1]} : vector<2x8x8xf32> to vector<2x6x8xf32>
    %496 = tpu.concatenate %494, %495 in 1 : vector<2x2x8xf32>, vector<2x6x8xf32> -> vector<2x8x8xf32>
    %497 = arith.addf %489, %496 : vector<2x8x8xf32>
    %c5_348 = arith.constant 5 : index
    %c1_349 = arith.constant 1 : index
    %c0_350 = arith.constant 0 : index
    %c0_351 = arith.constant 0 : index
    %498 = vector.load %arg4[%c5_348, %c1_349, %c0_350, %c0_351] : memref<6x5x32x8xf32, #tpu.memory_space<vmem>>, vector<1x1x32x8xf32>
    %499 = vector.shape_cast %498 : vector<1x1x32x8xf32> to vector<32x8xf32>
    %cst_352 = arith.constant dense<0.000000e+00> : vector<16x8xf32>
    %500 = tpu.matmul %488, %499, %cst_352 {dimension_numbers = #tpu.dot_dimension_numbers<[1], [0], [0], [1], [0, 0, 1, 1], [], []>} : vector<16x32xf32>, vector<32x8xf32>, vector<16x8xf32> -> vector<16x8xf32>
    %501 = vector.shape_cast %500 : vector<16x8xf32> to vector<2x8x8xf32>
    %cst_353 = arith.constant 0.000000e+00 : f32
    %502 = vector.broadcast %cst_353 : f32 to vector<2x1x8xf32>
    %503 = vector.extract_strided_slice %501 {offsets = [0, 0, 0], sizes = [2, 7, 8], strides = [1, 1, 1]} : vector<2x8x8xf32> to vector<2x7x8xf32>
    %504 = tpu.concatenate %502, %503 in 1 : vector<2x1x8xf32>, vector<2x7x8xf32> -> vector<2x8x8xf32>
    %505 = arith.addf %497, %504 : vector<2x8x8xf32>
    %c5_354 = arith.constant 5 : index
    %c2_355 = arith.constant 2 : index
    %c0_356 = arith.constant 0 : index
    %c0_357 = arith.constant 0 : index
    %506 = vector.load %arg4[%c5_354, %c2_355, %c0_356, %c0_357] : memref<6x5x32x8xf32, #tpu.memory_space<vmem>>, vector<1x1x32x8xf32>
    %507 = vector.shape_cast %506 : vector<1x1x32x8xf32> to vector<32x8xf32>
    %cst_358 = arith.constant dense<0.000000e+00> : vector<16x8xf32>
    %508 = tpu.matmul %488, %507, %cst_358 {dimension_numbers = #tpu.dot_dimension_numbers<[1], [0], [0], [1], [0, 0, 1, 1], [], []>} : vector<16x32xf32>, vector<32x8xf32>, vector<16x8xf32> -> vector<16x8xf32>
    %509 = vector.shape_cast %508 : vector<16x8xf32> to vector<2x8x8xf32>
    %510 = arith.addf %505, %509 : vector<2x8x8xf32>
    %c5_359 = arith.constant 5 : index
    %c3_360 = arith.constant 3 : index
    %c0_361 = arith.constant 0 : index
    %c0_362 = arith.constant 0 : index
    %511 = vector.load %arg4[%c5_359, %c3_360, %c0_361, %c0_362] : memref<6x5x32x8xf32, #tpu.memory_space<vmem>>, vector<1x1x32x8xf32>
    %512 = vector.shape_cast %511 : vector<1x1x32x8xf32> to vector<32x8xf32>
    %cst_363 = arith.constant dense<0.000000e+00> : vector<16x8xf32>
    %513 = tpu.matmul %488, %512, %cst_363 {dimension_numbers = #tpu.dot_dimension_numbers<[1], [0], [0], [1], [0, 0, 1, 1], [], []>} : vector<16x32xf32>, vector<32x8xf32>, vector<16x8xf32> -> vector<16x8xf32>
    %514 = vector.shape_cast %513 : vector<16x8xf32> to vector<2x8x8xf32>
    %cst_364 = arith.constant 0.000000e+00 : f32
    %515 = vector.broadcast %cst_364 : f32 to vector<2x1x8xf32>
    %516 = vector.extract_strided_slice %514 {offsets = [0, 1, 0], sizes = [2, 7, 8], strides = [1, 1, 1]} : vector<2x8x8xf32> to vector<2x7x8xf32>
    %517 = tpu.concatenate %516, %515 in 1 : vector<2x7x8xf32>, vector<2x1x8xf32> -> vector<2x8x8xf32>
    %518 = arith.addf %510, %517 : vector<2x8x8xf32>
    %c5_365 = arith.constant 5 : index
    %c4_366 = arith.constant 4 : index
    %c0_367 = arith.constant 0 : index
    %c0_368 = arith.constant 0 : index
    %519 = vector.load %arg4[%c5_365, %c4_366, %c0_367, %c0_368] : memref<6x5x32x8xf32, #tpu.memory_space<vmem>>, vector<1x1x32x8xf32>
    %520 = vector.shape_cast %519 : vector<1x1x32x8xf32> to vector<32x8xf32>
    %cst_369 = arith.constant dense<0.000000e+00> : vector<16x8xf32>
    %521 = tpu.matmul %488, %520, %cst_369 {dimension_numbers = #tpu.dot_dimension_numbers<[1], [0], [0], [1], [0, 0, 1, 1], [], []>} : vector<16x32xf32>, vector<32x8xf32>, vector<16x8xf32> -> vector<16x8xf32>
    %522 = vector.shape_cast %521 : vector<16x8xf32> to vector<2x8x8xf32>
    %cst_370 = arith.constant 0.000000e+00 : f32
    %523 = vector.broadcast %cst_370 : f32 to vector<2x2x8xf32>
    %524 = vector.extract_strided_slice %522 {offsets = [0, 2, 0], sizes = [2, 6, 8], strides = [1, 1, 1]} : vector<2x8x8xf32> to vector<2x6x8xf32>
    %525 = tpu.concatenate %524, %523 in 1 : vector<2x6x8xf32>, vector<2x2x8xf32> -> vector<2x8x8xf32>
    %526 = arith.addf %518, %525 : vector<2x8x8xf32>
    %c5_371 = arith.constant 5 : index
    %c0_372 = arith.constant 0 : index
    %c0_373 = arith.constant 0 : index
    %527 = vector.load %arg5[%c5_371, %c0_372, %c0_373] : memref<6x1x8xf32, #tpu.memory_space<vmem>>, vector<1x1x8xf32>
    %528 = vector.shape_cast %527 : vector<1x1x8xf32> to vector<1x8xf32>
    %529 = vector.shape_cast %528 : vector<1x8xf32> to vector<1x1x8xf32>
    %530 = vector.broadcast %529 : vector<1x1x8xf32> to vector<2x8x8xf32>
    %531 = arith.addf %526, %530 : vector<2x8x8xf32>
    %cst_374 = arith.constant 0.000000e+00 : f32
    %532 = vector.broadcast %cst_374 : f32 to vector<2x8x8xf32>
    %533 = arith.cmpf ogt, %531, %532 : vector<2x8x8xf32>
    %cst_375 = arith.constant 2.000000e-01 : f32
    %534 = vector.broadcast %cst_375 : f32 to vector<2x8x8xf32>
    %535 = arith.mulf %534, %531 : vector<2x8x8xf32>
    %536 = arith.select %533, %531, %535 : vector<2x8x8xi1>, vector<2x8x8xf32>
    %cst_376 = arith.constant 0.000000e+00 : f32
    %537 = vector.broadcast %cst_376 : f32 to vector<2x2x8xf32>
    %538 = tpu.concatenate %537, %536, %537 in 1 : vector<2x2x8xf32>, vector<2x8x8xf32>, vector<2x2x8xf32> -> vector<2x12x8xf32>
    %cst_377 = arith.constant 0.000000e+00 : f32
    %539 = vector.broadcast %cst_377 : f32 to vector<16x32xf32>
    %540 = vector.extract_strided_slice %538 {offsets = [0, 0, 0], sizes = [2, 8, 8], strides = [1, 1, 1]} : vector<2x12x8xf32> to vector<2x8x8xf32>
    %541 = vector.shape_cast %540 : vector<2x8x8xf32> to vector<16x8xf32>
    %c5_378 = arith.constant 5 : index
    %c0_379 = arith.constant 0 : index
    %c0_380 = arith.constant 0 : index
    %c0_381 = arith.constant 0 : index
    %542 = vector.load %arg6[%c5_378, %c0_379, %c0_380, %c0_381] : memref<6x5x8x32xf32, #tpu.memory_space<vmem>>, vector<1x1x8x32xf32>
    %543 = vector.shape_cast %542 : vector<1x1x8x32xf32> to vector<8x32xf32>
    %cst_382 = arith.constant dense<0.000000e+00> : vector<16x32xf32>
    %544 = tpu.matmul %541, %543, %cst_382 {dimension_numbers = #tpu.dot_dimension_numbers<[1], [0], [0], [1], [0, 0, 1, 1], [], []>} : vector<16x8xf32>, vector<8x32xf32>, vector<16x32xf32> -> vector<16x32xf32>
    %545 = arith.addf %539, %544 : vector<16x32xf32>
    %546 = vector.extract_strided_slice %538 {offsets = [0, 1, 0], sizes = [2, 8, 8], strides = [1, 1, 1]} : vector<2x12x8xf32> to vector<2x8x8xf32>
    %547 = vector.shape_cast %546 : vector<2x8x8xf32> to vector<16x8xf32>
    %c5_383 = arith.constant 5 : index
    %c1_384 = arith.constant 1 : index
    %c0_385 = arith.constant 0 : index
    %c0_386 = arith.constant 0 : index
    %548 = vector.load %arg6[%c5_383, %c1_384, %c0_385, %c0_386] : memref<6x5x8x32xf32, #tpu.memory_space<vmem>>, vector<1x1x8x32xf32>
    %549 = vector.shape_cast %548 : vector<1x1x8x32xf32> to vector<8x32xf32>
    %cst_387 = arith.constant dense<0.000000e+00> : vector<16x32xf32>
    %550 = tpu.matmul %547, %549, %cst_387 {dimension_numbers = #tpu.dot_dimension_numbers<[1], [0], [0], [1], [0, 0, 1, 1], [], []>} : vector<16x8xf32>, vector<8x32xf32>, vector<16x32xf32> -> vector<16x32xf32>
    %551 = arith.addf %545, %550 : vector<16x32xf32>
    %552 = vector.extract_strided_slice %538 {offsets = [0, 2, 0], sizes = [2, 8, 8], strides = [1, 1, 1]} : vector<2x12x8xf32> to vector<2x8x8xf32>
    %553 = vector.shape_cast %552 : vector<2x8x8xf32> to vector<16x8xf32>
    %c5_388 = arith.constant 5 : index
    %c2_389 = arith.constant 2 : index
    %c0_390 = arith.constant 0 : index
    %c0_391 = arith.constant 0 : index
    %554 = vector.load %arg6[%c5_388, %c2_389, %c0_390, %c0_391] : memref<6x5x8x32xf32, #tpu.memory_space<vmem>>, vector<1x1x8x32xf32>
    %555 = vector.shape_cast %554 : vector<1x1x8x32xf32> to vector<8x32xf32>
    %cst_392 = arith.constant dense<0.000000e+00> : vector<16x32xf32>
    %556 = tpu.matmul %553, %555, %cst_392 {dimension_numbers = #tpu.dot_dimension_numbers<[1], [0], [0], [1], [0, 0, 1, 1], [], []>} : vector<16x8xf32>, vector<8x32xf32>, vector<16x32xf32> -> vector<16x32xf32>
    %557 = arith.addf %551, %556 : vector<16x32xf32>
    %558 = vector.extract_strided_slice %538 {offsets = [0, 3, 0], sizes = [2, 8, 8], strides = [1, 1, 1]} : vector<2x12x8xf32> to vector<2x8x8xf32>
    %559 = vector.shape_cast %558 : vector<2x8x8xf32> to vector<16x8xf32>
    %c5_393 = arith.constant 5 : index
    %c3_394 = arith.constant 3 : index
    %c0_395 = arith.constant 0 : index
    %c0_396 = arith.constant 0 : index
    %560 = vector.load %arg6[%c5_393, %c3_394, %c0_395, %c0_396] : memref<6x5x8x32xf32, #tpu.memory_space<vmem>>, vector<1x1x8x32xf32>
    %561 = vector.shape_cast %560 : vector<1x1x8x32xf32> to vector<8x32xf32>
    %cst_397 = arith.constant dense<0.000000e+00> : vector<16x32xf32>
    %562 = tpu.matmul %559, %561, %cst_397 {dimension_numbers = #tpu.dot_dimension_numbers<[1], [0], [0], [1], [0, 0, 1, 1], [], []>} : vector<16x8xf32>, vector<8x32xf32>, vector<16x32xf32> -> vector<16x32xf32>
    %563 = arith.addf %557, %562 : vector<16x32xf32>
    %564 = vector.extract_strided_slice %538 {offsets = [0, 4, 0], sizes = [2, 8, 8], strides = [1, 1, 1]} : vector<2x12x8xf32> to vector<2x8x8xf32>
    %565 = vector.shape_cast %564 : vector<2x8x8xf32> to vector<16x8xf32>
    %c5_398 = arith.constant 5 : index
    %c4_399 = arith.constant 4 : index
    %c0_400 = arith.constant 0 : index
    %c0_401 = arith.constant 0 : index
    %566 = vector.load %arg6[%c5_398, %c4_399, %c0_400, %c0_401] : memref<6x5x8x32xf32, #tpu.memory_space<vmem>>, vector<1x1x8x32xf32>
    %567 = vector.shape_cast %566 : vector<1x1x8x32xf32> to vector<8x32xf32>
    %cst_402 = arith.constant dense<0.000000e+00> : vector<16x32xf32>
    %568 = tpu.matmul %565, %567, %cst_402 {dimension_numbers = #tpu.dot_dimension_numbers<[1], [0], [0], [1], [0, 0, 1, 1], [], []>} : vector<16x8xf32>, vector<8x32xf32>, vector<16x32xf32> -> vector<16x32xf32>
    %569 = arith.addf %563, %568 : vector<16x32xf32>
    %570 = vector.shape_cast %569 : vector<16x32xf32> to vector<2x8x32xf32>
    %c5_403 = arith.constant 5 : index
    %c0_404 = arith.constant 0 : index
    %c0_405 = arith.constant 0 : index
    %571 = vector.load %arg7[%c5_403, %c0_404, %c0_405] : memref<6x1x32xf32, #tpu.memory_space<vmem>>, vector<1x1x32xf32>
    %572 = vector.shape_cast %571 : vector<1x1x32xf32> to vector<1x32xf32>
    %573 = vector.shape_cast %572 : vector<1x32xf32> to vector<1x1x32xf32>
    %574 = vector.broadcast %573 : vector<1x1x32xf32> to vector<2x8x32xf32>
    %575 = arith.addf %570, %574 : vector<2x8x32xf32>
    %cst_406 = arith.constant 0.000000e+00 : f32
    %576 = vector.broadcast %cst_406 : f32 to vector<2x8x32xf32>
    %577 = arith.cmpf ogt, %575, %576 : vector<2x8x32xf32>
    %cst_407 = arith.constant 2.000000e-01 : f32
    %578 = vector.broadcast %cst_407 : f32 to vector<2x8x32xf32>
    %579 = arith.mulf %578, %575 : vector<2x8x32xf32>
    %580 = arith.select %577, %575, %579 : vector<2x8x32xi1>, vector<2x8x32xf32>
    %cst_408 = arith.constant 1.000000e-01 : f32
    %581 = vector.broadcast %cst_408 : f32 to vector<2x8x32xf32>
    %582 = arith.mulf %581, %580 : vector<2x8x32xf32>
    %583 = arith.addf %487, %582 : vector<2x8x32xf32>
    %c0_409 = arith.constant 0 : index
    %c0_410 = arith.constant 0 : index
    %584 = vector.load %arg8[%c0_409, %c0_410] : memref<8x32xf32, #tpu.memory_space<vmem>>, vector<8x32xf32>
    %585 = vector.shape_cast %584 : vector<8x32xf32> to vector<1x8x32xf32>
    %586 = vector.broadcast %585 : vector<1x8x32xf32> to vector<2x8x32xf32>
    %587 = arith.mulf %583, %586 : vector<2x8x32xf32>
    %cst_411 = arith.constant dense<0.000000e+00> : vector<2x8xf32>
    %588 = vector.multi_reduction <add>, %587, %cst_411 [2] : vector<2x8x32xf32> to vector<2x8xf32>
    %cst_412 = arith.constant dense<0.000000e+00> : vector<2xf32>
    %589 = vector.multi_reduction <add>, %588, %cst_412 [1] : vector<2x8xf32> to vector<2xf32>
    %590 = vector.shape_cast %589 : vector<2xf32> to vector<2x1xf32>
    %c0_413 = arith.constant 0 : index
    %c0_414 = arith.constant 0 : index
    %591 = vector.load %arg9[%c0_413, %c0_414] : memref<1x1xf32, #tpu.memory_space<vmem>>, vector<1x1xf32>
    %592 = vector.extract %591[0, 0] : f32 from vector<1x1xf32>
    %593 = vector.broadcast %592 : f32 to vector<2x1xf32>
    %594 = arith.addf %590, %593 : vector<2x1xf32>
    %c0_415 = arith.constant 0 : index
    %c0_416 = arith.constant 0 : index
    %595 = vector.load %arg10[%c0_415, %c0_416] : memref<2x1xf32, #tpu.memory_space<vmem>>, vector<2x1xf32>
    tpu.vector_store %arg10[%c0_415, %c0_416], %594 {strides = array<i32>} : memref<2x1xf32, #tpu.memory_space<vmem>>, vector<2x1xf32>,
    return
  }
  func.func @transform_0(%arg0: i32) -> (i32, i32, i32) {
    %c0_i32 = arith.constant 0 : i32
    %c0_i32_0 = arith.constant 0 : i32
    %c0_i32_1 = arith.constant 0 : i32
    return %arg0, %c0_i32, %c0_i32_0 : i32, i32, i32
  }
  func.func @transform_1(%arg0: i32) -> (i32, i32) {
    %c0_i32 = arith.constant 0 : i32
    %c0_i32_0 = arith.constant 0 : i32
    %c0_i32_1 = arith.constant 0 : i32
    return %c0_i32, %c0_i32_0 : i32, i32
  }
  func.func @transform_2(%arg0: i32) -> (i32, i32) {
    %c0_i32 = arith.constant 0 : i32
    %c0_i32_0 = arith.constant 0 : i32
    %c0_i32_1 = arith.constant 0 : i32
    return %c0_i32, %c0_i32_0 : i32, i32
  }
  func.func @transform_3(%arg0: i32) -> (i32, i32, i32, i32) {
    %c0_i32 = arith.constant 0 : i32
    %c0_i32_0 = arith.constant 0 : i32
    %c0_i32_1 = arith.constant 0 : i32
    %c0_i32_2 = arith.constant 0 : i32
    %c0_i32_3 = arith.constant 0 : i32
    return %c0_i32, %c0_i32_0, %c0_i32_1, %c0_i32_2 : i32, i32, i32, i32
  }
  func.func @transform_4(%arg0: i32) -> (i32, i32, i32) {
    %c0_i32 = arith.constant 0 : i32
    %c0_i32_0 = arith.constant 0 : i32
    %c0_i32_1 = arith.constant 0 : i32
    %c0_i32_2 = arith.constant 0 : i32
    return %c0_i32, %c0_i32_0, %c0_i32_1 : i32, i32, i32
  }
  func.func @transform_5(%arg0: i32) -> (i32, i32, i32, i32) {
    %c0_i32 = arith.constant 0 : i32
    %c0_i32_0 = arith.constant 0 : i32
    %c0_i32_1 = arith.constant 0 : i32
    %c0_i32_2 = arith.constant 0 : i32
    %c0_i32_3 = arith.constant 0 : i32
    return %c0_i32, %c0_i32_0, %c0_i32_1, %c0_i32_2 : i32, i32, i32, i32
  }
  func.func @transform_6(%arg0: i32) -> (i32, i32, i32) {
    %c0_i32 = arith.constant 0 : i32
    %c0_i32_0 = arith.constant 0 : i32
    %c0_i32_1 = arith.constant 0 : i32
    %c0_i32_2 = arith.constant 0 : i32
    return %c0_i32, %c0_i32_0, %c0_i32_1 : i32, i32, i32
  }
  func.func @transform_7(%arg0: i32) -> (i32, i32) {
    %c0_i32 = arith.constant 0 : i32
    %c0_i32_0 = arith.constant 0 : i32
    %c0_i32_1 = arith.constant 0 : i32
    return %c0_i32, %c0_i32_0 : i32, i32
  }
  func.func @transform_8(%arg0: i32) -> (i32, i32) {
    %c0_i32 = arith.constant 0 : i32
    %c0_i32_0 = arith.constant 0 : i32
    %c0_i32_1 = arith.constant 0 : i32
    return %c0_i32, %c0_i32_0 : i32, i32
  }
  func.func @transform_9(%arg0: i32) -> (i32, i32) {
    %c0_i32 = arith.constant 0 : i32
    %c0_i32_0 = arith.constant 0 : i32
    return %arg0, %c0_i32 : i32, i32
  }
}

</mosaic_0001>

<llo_original>
// kernel: tpu_custom_call.1
$region0: #{tpu_custom_call.1}
  #allocation0 [shape = 'u32[]', space=smem, size = 0x4, offset = 0x4, fixed_abs, tag = 'smem constant byte address 0x4 - core index']
  #allocation1 [shape = 'u32[72,128]{1,0:T(1,128)}', space=vmem, size = 0x9000, scoped, tag = 'internal scratch']
  #allocation2 [shape = 'f32[1,1]{1,0:T(1,128)S(1)}', space=vmem, size = 0x200, scoped, tag = 'scoped memory for tpu_custom_call.1']
  %s0 = inlined_call_operand.vmem [shape: f32[2,8,4], index: 0, kind: input, shape index: {}]
  %s1 = inlined_call_operand.vmem [shape: f32[4,32], index: 1, kind: input, shape index: {}]
  %s2 = inlined_call_operand.vmem [shape: f32[1,32], index: 2, kind: input, shape index: {}]
  %s3 = inlined_call_operand.vmem [shape: f32[6,5,32,8], index: 3, kind: input, shape index: {}]
  %s4 = inlined_call_operand.vmem [shape: f32[6,1,8], index: 4, kind: input, shape index: {}]
  %s5 = inlined_call_operand.vmem [shape: f32[6,5,8,32], index: 5, kind: input, shape index: {}]
  %s6 = inlined_call_operand.vmem [shape: f32[6,1,32], index: 6, kind: input, shape index: {}]
  %s7 = inlined_call_operand.vmem [shape: f32[8,32], index: 7, kind: input, shape index: {}]
  %s8 = inlined_call_operand.<no memory space> [shape: f32[1,1], index: 8, kind: input, shape index: {}]
  %s9 = inlined_call_operand.vmem [shape: f32[2,1], index: 9, kind: output, shape index: {}]
  %s10 = sld [smem:[#allocation0]]
  $region46: #{tpu_custom_call.1} parent=0
    _
  %s12 = ssub.s32 1, %s10
  %s13 = scalar_select 0, %s12, %s10
  %v14 = vstv %s8
  %15 = vst [vmem:[#allocation2] sm:$0x1] %v14
  // Predicated region
  $region2: #{tpu_custom_call.1} parent=0 // pred_check
    _
  $region3: #{tpu_custom_call.1} parent=0 // pred_check_branch
    %17 = sbr.rel (0) target = $region5
  $region4: #{tpu_custom_call.1} parent=0 // pred_region
    _
  $region5: #{tpu_custom_call.1} parent=0 // pred_fallthru
    _
  // Predicated region
  $region6: #{tpu_custom_call.1} parent=0 // pred_check
    _
  $region7: #{tpu_custom_call.1} parent=0 // pred_check_branch
    %19 = sbr.rel (0) target = $region9
  $region8: #{tpu_custom_call.1} parent=0 // pred_region
    _
  $region9: #{tpu_custom_call.1} parent=0 // pred_fallthru
    _
  // Predicated region
  $region10: #{tpu_custom_call.1} parent=0 // pred_check
    _
  $region11: #{tpu_custom_call.1} parent=0 // pred_check_branch
    %21 = sbr.rel (0) target = $region13
  $region12: #{tpu_custom_call.1} parent=0 // pred_region
    _
  $region13: #{tpu_custom_call.1} parent=0 // pred_fallthru
    _
  // Predicated region
  $region14: #{tpu_custom_call.1} parent=0 // pred_check
    _
  $region15: #{tpu_custom_call.1} parent=0 // pred_check_branch
    %23 = sbr.rel (0) target = $region17
  $region16: #{tpu_custom_call.1} parent=0 // pred_region
    _
  $region17: #{tpu_custom_call.1} parent=0 // pred_fallthru
    _
  // Predicated region
  $region18: #{tpu_custom_call.1} parent=0 // pred_check
    _
  $region19: #{tpu_custom_call.1} parent=0 // pred_check_branch
    %25 = sbr.rel (0) target = $region21
  $region20: #{tpu_custom_call.1} parent=0 // pred_region
    _
  $region21: #{tpu_custom_call.1} parent=0 // pred_fallthru
    _
  // Predicated region
  $region22: #{tpu_custom_call.1} parent=0 // pred_check
    _
  $region23: #{tpu_custom_call.1} parent=0 // pred_check_branch
    %27 = sbr.rel (0) target = $region25
  $region24: #{tpu_custom_call.1} parent=0 // pred_region
    _
  $region25: #{tpu_custom_call.1} parent=0 // pred_fallthru
    _
  // Predicated region
  $region26: #{tpu_custom_call.1} parent=0 // pred_check
    _
  $region27: #{tpu_custom_call.1} parent=0 // pred_check_branch
    %29 = sbr.rel (0) target = $region29
  $region28: #{tpu_custom_call.1} parent=0 // pred_region
    _
  $region29: #{tpu_custom_call.1} parent=0 // pred_fallthru
    _
  // Predicated region
  $region30: #{tpu_custom_call.1} parent=0 // pred_check
    _
  $region31: #{tpu_custom_call.1} parent=0 // pred_check_branch
    %31 = sbr.rel (0) target = $region33
  $region32: #{tpu_custom_call.1} parent=0 // pred_region
    _
  $region33: #{tpu_custom_call.1} parent=0 // pred_fallthru
    _
  // Predicated region
  $region34: #{tpu_custom_call.1} parent=0 // pred_check
    _
  $region35: #{tpu_custom_call.1} parent=0 // pred_check_branch
    %33 = sbr.rel (0) target = $region37
  $region36: #{tpu_custom_call.1} parent=0 // pred_region
    _
  $region37: #{tpu_custom_call.1} parent=0 // pred_fallthru
    _
  %v34 = vld [vmem:[%s0] sm:$0xff]
  %v35 = vld [vmem:[%s0 + $0x8] sm:$0xff]
  %v36 = vld [vmem:[%s1] sm:$0xf]
  %v37 = vld [vmem:[%s2] sm:$0x1]
  %v39 = vperm.slane %v37, 0
  %vm41 = vcmask 31744
  %v43 = vsel %vm41, %v34, 0
  %v46 = vsel %vm41, %v35, 0
  %vm48 = vcmask 1043456
  %v50 = vsel %vm48, %v36, 0
  %52 = vmatpush.msra.mxu0 0.0
  %53 = vmatpush.msra.mxu0 0.0
  %54 = vmatpush.msra.mxu0 0.0
  %55 = vmatpush.msra.mxu0 0.0
  %56 = vmatpush.msra.mxu0 0.0
  %57 = vmatpush.msra.mxu0 0.0
  %58 = vmatpush.msra.mxu0 0.0
  %59 = vmatpush.msra.mxu0 0.0
  %60 = vmatpush.msra.mxu0 0.0
  %61 = vmatpush.msra.mxu0 0.0
  %62 = vmatpush.msra.mxu0 0.0
  %63 = vmatpush.msra.mxu0 0.0
  %64 = vmatpush.msra.mxu0 0.0
  %65 = vmatpush.msra.mxu0 0.0
  %66 = vmatpush.msra.mxu0 0.0
  %67 = vmatpush.msra.mxu0 %v50
  %68 = vmatmul.f32.gmra.mxu0 %v43
  %v69 = vpop.f32.mrf.mxu0
  %v70 = vadd.f32 %v39, %v69
  %71 = vmatmul.f32.gmra.mxu0 %v46
  %v72 = vpop.f32.mrf.mxu0
  %v73 = vadd.f32 %v39, %v72
  %74 = vdwg.mxu0
  %v75 = vld [vmem:[%s3] sm:$0xff]
  %v76 = vld [vmem:[%s3 + $0x8] sm:$0xff]
  %v77 = vld [vmem:[%s3 + $0x10] sm:$0xff]
  %v78 = vld [vmem:[%s3 + $0x18] sm:$0xff]
  %vm79 = vcmask 261120
  %v81 = vsel %vm79, %v70, 0
  %v84 = vsel %vm79, %v73, 0
  %86 = vmatpush.msra.mxu0 0.0
  %87 = vmatpush.msra.mxu0 0.0
  %88 = vmatpush.msra.mxu0 0.0
  %89 = vmatpush.msra.mxu0 0.0
  %90 = vmatpush.msra.mxu0 0.0
  %91 = vmatpush.msra.mxu0 0.0
  %92 = vmatpush.msra.mxu0 0.0
  %93 = vmatpush.msra.mxu0 0.0
  %94 = vmatpush.msra.mxu0 0.0
  %95 = vmatpush.msra.mxu0 0.0
  %96 = vmatpush.msra.mxu0 0.0
  %97 = vmatpush.msra.mxu0 0.0
  %98 = vmatpush.msra.mxu0 %v78
  %99 = vmatpush.msra.mxu0 %v77
  %100 = vmatpush.msra.mxu0 %v76
  %101 = vmatpush.msra.mxu0 %v75
  %102 = vmatmul.f32.gmra.mxu0 %v81
  %v103 = vpop.f32.mrf.mxu0
  %v104 = vadd.f32 0.0, %v103
  %105 = vmatmul.f32.gmra.mxu0 %v84
  %v106 = vpop.f32.mrf.mxu0
  %v107 = vadd.f32 0.0, %v106
  %108 = vdwg.mxu0
  %v111 = vrot.slane %v104, 6
  %v112 = vrot.slane %v107, 6
  %vm115 = vcmask 1041408
  %v116 = vsel %vm115, 0.0, %v111
  %v117 = vsel %vm115, 0.0, %v112
  %v118 = vadd.f32 %v116, 0.0
  %v119 = vadd.f32 %v117, 0.0
  %s120 = scalar_lea.vmem %s3, 32
  %v121 = vld [vmem:[%s120] sm:$0xff]
  %v122 = vld [vmem:[%s120 + $0x8] sm:$0xff]
  %v123 = vld [vmem:[%s120 + $0x10] sm:$0xff]
  %v124 = vld [vmem:[%s120 + $0x18] sm:$0xff]
  %125 = vmatpush.msra.mxu0 0.0
  %126 = vmatpush.msra.mxu0 0.0
  %127 = vmatpush.msra.mxu0 0.0
  %128 = vmatpush.msra.mxu0 0.0
  %129 = vmatpush.msra.mxu0 0.0
  %130 = vmatpush.msra.mxu0 0.0
  %131 = vmatpush.msra.mxu0 0.0
  %132 = vmatpush.msra.mxu0 0.0
  %133 = vmatpush.msra.mxu0 0.0
  %134 = vmatpush.msra.mxu0 0.0
  %135 = vmatpush.msra.mxu0 0.0
  %136 = vmatpush.msra.mxu0 0.0
  %137 = vmatpush.msra.mxu0 %v124
  %138 = vmatpush.msra.mxu0 %v123
  %139 = vmatpush.msra.mxu0 %v122
  %140 = vmatpush.msra.mxu0 %v121
  %141 = vmatmul.f32.gmra.mxu0 %v81
  %v142 = vpop.f32.mrf.mxu0
  %v143 = vadd.f32 0.0, %v142
  %144 = vmatmul.f32.gmra.mxu0 %v84
  %v145 = vpop.f32.mrf.mxu0
  %v146 = vadd.f32 0.0, %v145
  %147 = vdwg.mxu0
  %v150 = vrot.slane %v143, 7
  %v151 = vrot.slane %v146, 7
  %vm154 = vcmask 1040384
  %v155 = vsel %vm154, 0.0, %v150
  %v156 = vsel %vm154, 0.0, %v151
  %v157 = vadd.f32 %v118, %v155
  %v158 = vadd.f32 %v119, %v156
  %s159 = scalar_lea.vmem %s3, 64
  %v160 = vld [vmem:[%s159] sm:$0xff]
  %v161 = vld [vmem:[%s159 + $0x8] sm:$0xff]
  %v162 = vld [vmem:[%s159 + $0x10] sm:$0xff]
  %v163 = vld [vmem:[%s159 + $0x18] sm:$0xff]
  %164 = vmatpush.msra.mxu0 0.0
  %165 = vmatpush.msra.mxu0 0.0
  %166 = vmatpush.msra.mxu0 0.0
  %167 = vmatpush.msra.mxu0 0.0
  %168 = vmatpush.msra.mxu0 0.0
  %169 = vmatpush.msra.mxu0 0.0
  %170 = vmatpush.msra.mxu0 0.0
  %171 = vmatpush.msra.mxu0 0.0
  %172 = vmatpush.msra.mxu0 0.0
  %173 = vmatpush.msra.mxu0 0.0
  %174 = vmatpush.msra.mxu0 0.0
  %175 = vmatpush.msra.mxu0 0.0
  %176 = vmatpush.msra.mxu0 %v163
  %177 = vmatpush.msra.mxu0 %v162
  %178 = vmatpush.msra.mxu0 %v161
  %179 = vmatpush.msra.mxu0 %v160
  %180 = vmatmul.f32.gmra.mxu0 %v81
  %v181 = vpop.f32.mrf.mxu0
  %v182 = vadd.f32 0.0, %v181
  %183 = vmatmul.f32.gmra.mxu0 %v84
  %v184 = vpop.f32.mrf.mxu0
  %v185 = vadd.f32 0.0, %v184
  %186 = vdwg.mxu0
  %v187 = vadd.f32 %v157, %v182
  %v188 = vadd.f32 %v158, %v185
  %s189 = scalar_lea.vmem %s3, 96
  %v190 = vld [vmem:[%s189] sm:$0xff]
  %v191 = vld [vmem:[%s189 + $0x8] sm:$0xff]
  %v192 = vld [vmem:[%s189 + $0x10] sm:$0xff]
  %v193 = vld [vmem:[%s189 + $0x18] sm:$0xff]
  %194 = vmatpush.msra.mxu0 0.0
  %195 = vmatpush.msra.mxu0 0.0
  %196 = vmatpush.msra.mxu0 0.0
  %197 = vmatpush.msra.mxu0 0.0
  %198 = vmatpush.msra.mxu0 0.0
  %199 = vmatpush.msra.mxu0 0.0
  %200 = vmatpush.msra.mxu0 0.0
  %201 = vmatpush.msra.mxu0 0.0
  %202 = vmatpush.msra.mxu0 0.0
  %203 = vmatpush.msra.mxu0 0.0
  %204 = vmatpush.msra.mxu0 0.0
  %205 = vmatpush.msra.mxu0 0.0
  %206 = vmatpush.msra.mxu0 %v193
  %207 = vmatpush.msra.mxu0 %v192
  %208 = vmatpush.msra.mxu0 %v191
  %209 = vmatpush.msra.mxu0 %v190
  %210 = vmatmul.f32.gmra.mxu0 %v81
  %v211 = vpop.f32.mrf.mxu0
  %v212 = vadd.f32 0.0, %v211
  %213 = vmatmul.f32.gmra.mxu0 %v84
  %v214 = vpop.f32.mrf.mxu0
  %v215 = vadd.f32 0.0, %v214
  %216 = vdwg.mxu0
  %v219 = vrot.slane %v212, 1
  %v220 = vrot.slane %v215, 1
  %vm223 = vcmask 1046528
  %v224 = vsel %vm223, %v219, 0.0
  %v225 = vsel %vm223, %v220, 0.0
  %v226 = vadd.f32 %v187, %v224
  %v227 = vadd.f32 %v188, %v225
  %s228 = scalar_lea.vmem %s3, 128
  %v229 = vld [vmem:[%s228] sm:$0xff]
  %v230 = vld [vmem:[%s228 + $0x8] sm:$0xff]
  %v231 = vld [vmem:[%s228 + $0x10] sm:$0xff]
  %v232 = vld [vmem:[%s228 + $0x18] sm:$0xff]
  %233 = vmatpush.msra.mxu0 0.0
  %234 = vmatpush.msra.mxu0 0.0
  %235 = vmatpush.msra.mxu0 0.0
  %236 = vmatpush.msra.mxu0 0.0
  %237 = vmatpush.msra.mxu0 0.0
  %238 = vmatpush.msra.mxu0 0.0
  %239 = vmatpush.msra.mxu0 0.0
  %240 = vmatpush.msra.mxu0 0.0
  %241 = vmatpush.msra.mxu0 0.0
  %242 = vmatpush.msra.mxu0 0.0
  %243 = vmatpush.msra.mxu0 0.0
  %244 = vmatpush.msra.mxu0 0.0
  %245 = vmatpush.msra.mxu0 %v232
  %246 = vmatpush.msra.mxu0 %v231
  %247 = vmatpush.msra.mxu0 %v230
  %248 = vmatpush.msra.mxu0 %v229
  %249 = vmatmul.f32.gmra.mxu0 %v81
  %v250 = vpop.f32.mrf.mxu0
  %v251 = vadd.f32 0.0, %v250
  %252 = vmatmul.f32.gmra.mxu0 %v84
  %v253 = vpop.f32.mrf.mxu0
  %v254 = vadd.f32 0.0, %v253
  %255 = vdwg.mxu0
  %v258 = vrot.slane %v251, 2
  %v259 = vrot.slane %v254, 2
  %vm262 = vcmask 1045504
  %v263 = vsel %vm262, %v258, 0.0
  %v264 = vsel %vm262, %v259, 0.0
  %v265 = vadd.f32 %v226, %v263
  %v266 = vadd.f32 %v227, %v264
  %v267 = vld [vmem:[%s4] sm:$0x1]
  %v269 = vperm.slane %v267, 0
  %v271 = vadd.f32 %v265, %v269
  %v272 = vadd.f32 %v266, %v269
  %vm273 = vcmp.gt.f32.partialorder %v271, 0.0
  %vm274 = vcmp.gt.f32.partialorder %v272, 0.0
  %v275 = vmul.f32 %v271, 0.2
  %v276 = vmul.f32 %v272, 0.2
  %v277 = vsel %vm273, %v271, %v275
  %v278 = vsel %vm274, %v272, %v276
  %v281 = vrot.slane %v277, 6
  %v282 = vrot.slane %v278, 6
  %v285 = vsel %vm115, 0.0, %v281
  %v286 = vsel %vm115, 0.0, %v282
  %v287 = vsel %vm115, %v281, 0.0
  %v288 = vsel %vm115, %v282, 0.0
  %v289 = vld [vmem:[%s5] sm:$0xff]
  %v294 = vrot.slane %v285, 1
  %v295 = vrot.slane %v287, 1
  %v296 = vsel %vm223, %v294, %v295
  %v297 = vrot.slane %v286, 1
  %v298 = vrot.slane %v288, 1
  %v299 = vsel %vm223, %v297, %v298
  %s300 = scalar_lea.vmem %s5, 8
  %v301 = vld [vmem:[%s300] sm:$0xff]
  %vm302 = vcmask 64512
  %v303 = vsel %vm302, %v296, 0
  %v305 = vsel %vm302, %v299, 0
  %307 = vmatpush.msra.mxu0 0.0
  %308 = vmatpush.msra.mxu0 0.0
  %309 = vmatpush.msra.mxu0 0.0
  %310 = vmatpush.msra.mxu0 0.0
  %311 = vmatpush.msra.mxu0 0.0
  %312 = vmatpush.msra.mxu0 0.0
  %313 = vmatpush.msra.mxu0 0.0
  %314 = vmatpush.msra.mxu0 0.0
  %315 = vmatpush.msra.mxu0 0.0
  %316 = vmatpush.msra.mxu0 0.0
  %317 = vmatpush.msra.mxu0 0.0
  %318 = vmatpush.msra.mxu0 0.0
  %319 = vmatpush.msra.mxu0 0.0
  %320 = vmatpush.msra.mxu0 0.0
  %321 = vmatpush.msra.mxu0 0.0
  %322 = vmatpush.msra.mxu0 %v301
  %323 = vmatmul.f32.gmra.mxu0 %v303
  %v324 = vpop.f32.mrf.mxu0
  %v325 = vadd.f32 0.0, %v324
  %326 = vmatmul.f32.gmra.mxu0 %v305
  %v327 = vpop.f32.mrf.mxu0
  %v328 = vadd.f32 0.0, %v327
  %329 = vdwg.mxu0
  %v330 = vsel %vm302, %v285, 0
  %v332 = vsel %vm302, %v286, 0
  %334 = vmatpush.msra.mxu0 0.0
  %335 = vmatpush.msra.mxu0 0.0
  %336 = vmatpush.msra.mxu0 0.0
  %337 = vmatpush.msra.mxu0 0.0
  %338 = vmatpush.msra.mxu0 0.0
  %339 = vmatpush.msra.mxu0 0.0
  %340 = vmatpush.msra.mxu0 0.0
  %341 = vmatpush.msra.mxu0 0.0
  %342 = vmatpush.msra.mxu0 0.0
  %343 = vmatpush.msra.mxu0 0.0
  %344 = vmatpush.msra.mxu0 0.0
  %345 = vmatpush.msra.mxu0 0.0
  %346 = vmatpush.msra.mxu0 0.0
  %347 = vmatpush.msra.mxu0 0.0
  %348 = vmatpush.msra.mxu0 0.0
  %349 = vmatpush.msra.mxu0 %v289
  %350 = vmatmul.f32.gmra.mxu0 %v330
  %v351 = vpop.f32.mrf.mxu0
  %v352 = vadd.f32 %v325, %v351
  %353 = vmatmul.f32.gmra.mxu0 %v332
  %v354 = vpop.f32.mrf.mxu0
  %v355 = vadd.f32 %v328, %v354
  %356 = vdwg.mxu0
  %v357 = vrot.slane %v285, 2
  %v358 = vrot.slane %v287, 2
  %v359 = vsel %vm262, %v357, %v358
  %v360 = vrot.slane %v286, 2
  %v361 = vrot.slane %v288, 2
  %v362 = vsel %vm262, %v360, %v361
  %s363 = scalar_lea.vmem %s5, 16
  %v364 = vld [vmem:[%s363] sm:$0xff]
  %v365 = vsel %vm302, %v359, 0
  %v367 = vsel %vm302, %v362, 0
  %369 = vmatpush.msra.mxu0 0.0
  %370 = vmatpush.msra.mxu0 0.0
  %371 = vmatpush.msra.mxu0 0.0
  %372 = vmatpush.msra.mxu0 0.0
  %373 = vmatpush.msra.mxu0 0.0
  %374 = vmatpush.msra.mxu0 0.0
  %375 = vmatpush.msra.mxu0 0.0
  %376 = vmatpush.msra.mxu0 0.0
  %377 = vmatpush.msra.mxu0 0.0
  %378 = vmatpush.msra.mxu0 0.0
  %379 = vmatpush.msra.mxu0 0.0
  %380 = vmatpush.msra.mxu0 0.0
  %381 = vmatpush.msra.mxu0 0.0
  %382 = vmatpush.msra.mxu0 0.0
  %383 = vmatpush.msra.mxu0 0.0
  %384 = vmatpush.msra.mxu0 %v364
  %385 = vmatmul.f32.gmra.mxu0 %v365
  %v386 = vpop.f32.mrf.mxu0
  %v387 = vadd.f32 0.0, %v386
  %388 = vmatmul.f32.gmra.mxu0 %v367
  %v389 = vpop.f32.mrf.mxu0
  %v390 = vadd.f32 0.0, %v389
  %391 = vdwg.mxu0
  %v392 = vadd.f32 %v352, %v387
  %v393 = vadd.f32 %v355, %v390
  %vm394 = vcmask 1044480
  %v395 = vrot.slane %v285, 3
  %v396 = vrot.slane %v287, 3
  %v397 = vsel %vm394, %v395, %v396
  %v398 = vrot.slane %v286, 3
  %v399 = vrot.slane %v288, 3
  %v400 = vsel %vm394, %v398, %v399
  %s401 = scalar_lea.vmem %s5, 24
  %v402 = vld [vmem:[%s401] sm:$0xff]
  %v403 = vsel %vm302, %v397, 0
  %v405 = vsel %vm302, %v400, 0
  %407 = vmatpush.msra.mxu0 0.0
  %408 = vmatpush.msra.mxu0 0.0
  %409 = vmatpush.msra.mxu0 0.0
  %410 = vmatpush.msra.mxu0 0.0
  %411 = vmatpush.msra.mxu0 0.0
  %412 = vmatpush.msra.mxu0 0.0
  %413 = vmatpush.msra.mxu0 0.0
  %414 = vmatpush.msra.mxu0 0.0
  %415 = vmatpush.msra.mxu0 0.0
  %416 = vmatpush.msra.mxu0 0.0
  %417 = vmatpush.msra.mxu0 0.0
  %418 = vmatpush.msra.mxu0 0.0
  %419 = vmatpush.msra.mxu0 0.0
  %420 = vmatpush.msra.mxu0 0.0
  %421 = vmatpush.msra.mxu0 0.0
  %422 = vmatpush.msra.mxu0 %v402
  %423 = vmatmul.f32.gmra.mxu0 %v403
  %v424 = vpop.f32.mrf.mxu0
  %v425 = vadd.f32 0.0, %v424
  %426 = vmatmul.f32.gmra.mxu0 %v405
  %v427 = vpop.f32.mrf.mxu0
  %v428 = vadd.f32 0.0, %v427
  %429 = vdwg.mxu0
  %v430 = vadd.f32 %v392, %v425
  %v431 = vadd.f32 %v393, %v428
  %v432 = vrot.slane %v285, 4
  %v433 = vrot.slane %v287, 4
  %v434 = vsel %vm48, %v432, %v433
  %v435 = vrot.slane %v286, 4
  %v436 = vrot.slane %v288, 4
  %v437 = vsel %vm48, %v435, %v436
  %s438 = scalar_lea.vmem %s5, 32
  %v439 = vld [vmem:[%s438] sm:$0xff]
  %v440 = vsel %vm302, %v434, 0
  %v442 = vsel %vm302, %v437, 0
  %444 = vmatpush.msra.mxu0 0.0
  %445 = vmatpush.msra.mxu0 0.0
  %446 = vmatpush.msra.mxu0 0.0
  %447 = vmatpush.msra.mxu0 0.0
  %448 = vmatpush.msra.mxu0 0.0
  %449 = vmatpush.msra.mxu0 0.0
  %450 = vmatpush.msra.mxu0 0.0
  %451 = vmatpush.msra.mxu0 0.0
  %452 = vmatpush.msra.mxu0 0.0
  %453 = vmatpush.msra.mxu0 0.0
  %454 = vmatpush.msra.mxu0 0.0
  %455 = vmatpush.msra.mxu0 0.0
  %456 = vmatpush.msra.mxu0 0.0
  %457 = vmatpush.msra.mxu0 0.0
  %458 = vmatpush.msra.mxu0 0.0
  %459 = vmatpush.msra.mxu0 %v439
  %460 = vmatmul.f32.gmra.mxu0 %v440
  %v461 = vpop.f32.mrf.mxu0
  %v462 = vadd.f32 0.0, %v461
  %463 = vmatmul.f32.gmra.mxu0 %v442
  %v464 = vpop.f32.mrf.mxu0
  %v465 = vadd.f32 0.0, %v464
  %466 = vdwg.mxu0
  %v467 = vadd.f32 %v430, %v462
  %v468 = vadd.f32 %v431, %v465
  %v469 = vld [vmem:[%s6] sm:$0x1]
  %v471 = vperm.slane %v469, 0
  %v473 = vadd.f32 %v467, %v471
  %v474 = vadd.f32 %v468, %v471
  %vm475 = vcmp.gt.f32.partialorder %v473, 0.0
  %vm476 = vcmp.gt.f32.partialorder %v474, 0.0
  %v477 = vmul.f32 %v473, 0.2
  %v478 = vmul.f32 %v474, 0.2
  %v479 = vsel %vm475, %v473, %v477
  %v480 = vsel %vm476, %v474, %v478
  %v481 = vmul.f32 %v479, 0.1
  %v482 = vmul.f32 %v480, 0.1
  %v483 = vadd.f32 %v70, %v481
  %v484 = vadd.f32 %v73, %v482
  %s485 = scalar_lea.vmem %s3, 160
  %v486 = vld [vmem:[%s485] sm:$0xff]
  %v487 = vld [vmem:[%s485 + $0x8] sm:$0xff]
  %v488 = vld [vmem:[%s485 + $0x10] sm:$0xff]
  %v489 = vld [vmem:[%s485 + $0x18] sm:$0xff]
  %v491 = vsel %vm79, %v483, 0
  %v494 = vsel %vm79, %v484, 0
  %496 = vmatpush.msra.mxu0 0.0
  %497 = vmatpush.msra.mxu0 0.0
  %498 = vmatpush.msra.mxu0 0.0
  %499 = vmatpush.msra.mxu0 0.0
  %500 = vmatpush.msra.mxu0 0.0
  %501 = vmatpush.msra.mxu0 0.0
  %502 = vmatpush.msra.mxu0 0.0
  %503 = vmatpush.msra.mxu0 0.0
  %504 = vmatpush.msra.mxu0 0.0
  %505 = vmatpush.msra.mxu0 0.0
  %506 = vmatpush.msra.mxu0 0.0
  %507 = vmatpush.msra.mxu0 0.0
  %508 = vmatpush.msra.mxu0 %v489
  %509 = vmatpush.msra.mxu0 %v488
  %510 = vmatpush.msra.mxu0 %v487
  %511 = vmatpush.msra.mxu0 %v486
  %512 = vmatmul.f32.gmra.mxu0 %v491
  %v513 = vpop.f32.mrf.mxu0
  %v514 = vadd.f32 0.0, %v513
  %515 = vmatmul.f32.gmra.mxu0 %v494
  %v516 = vpop.f32.mrf.mxu0
  %v517 = vadd.f32 0.0, %v516
  %518 = vdwg.mxu0
  %v521 = vrot.slane %v514, 6
  %v522 = vrot.slane %v517, 6
  %v525 = vsel %vm115, 0.0, %v521
  %v526 = vsel %vm115, 0.0, %v522
  %v527 = vadd.f32 %v525, 0.0
  %v528 = vadd.f32 %v526, 0.0
  %s529 = scalar_lea.vmem %s3, 192
  %v530 = vld [vmem:[%s529] sm:$0xff]
  %v531 = vld [vmem:[%s529 + $0x8] sm:$0xff]
  %v532 = vld [vmem:[%s529 + $0x10] sm:$0xff]
  %v533 = vld [vmem:[%s529 + $0x18] sm:$0xff]
  %534 = vmatpush.msra.mxu0 0.0
  %535 = vmatpush.msra.mxu0 0.0
  %536 = vmatpush.msra.mxu0 0.0
  %537 = vmatpush.msra.mxu0 0.0
  %538 = vmatpush.msra.mxu0 0.0
  %539 = vmatpush.msra.mxu0 0.0
  %540 = vmatpush.msra.mxu0 0.0
  %541 = vmatpush.msra.mxu0 0.0
  %542 = vmatpush.msra.mxu0 0.0
  %543 = vmatpush.msra.mxu0 0.0
  %544 = vmatpush.msra.mxu0 0.0
  %545 = vmatpush.msra.mxu0 0.0
  %546 = vmatpush.msra.mxu0 %v533
  %547 = vmatpush.msra.mxu0 %v532
  %548 = vmatpush.msra.mxu0 %v531
  %549 = vmatpush.msra.mxu0 %v530
  %550 = vmatmul.f32.gmra.mxu0 %v491
  %v551 = vpop.f32.mrf.mxu0
  %v552 = vadd.f32 0.0, %v551
  %553 = vmatmul.f32.gmra.mxu0 %v494
  %v554 = vpop.f32.mrf.mxu0
  %v555 = vadd.f32 0.0, %v554
  %556 = vdwg.mxu0
  %v559 = vrot.slane %v552, 7
  %v560 = vrot.slane %v555, 7
  %v563 = vsel %vm154, 0.0, %v559
  %v564 = vsel %vm154, 0.0, %v560
  %v565 = vadd.f32 %v527, %v563
  %v566 = vadd.f32 %v528, %v564
  %s567 = scalar_lea.vmem %s3, 224
  %v568 = vld [vmem:[%s567] sm:$0xff]
  %v569 = vld [vmem:[%s567 + $0x8] sm:$0xff]
  %v570 = vld [vmem:[%s567 + $0x10] sm:$0xff]
  %v571 = vld [vmem:[%s567 + $0x18] sm:$0xff]
  %572 = vmatpush.msra.mxu0 0.0
  %573 = vmatpush.msra.mxu0 0.0
  %574 = vmatpush.msra.mxu0 0.0
  %575 = vmatpush.msra.mxu0 0.0
  %576 = vmatpush.msra.mxu0 0.0
  %577 = vmatpush.msra.mxu0 0.0
  %578 = vmatpush.msra.mxu0 0.0
  %579 = vmatpush.msra.mxu0 0.0
  %580 = vmatpush.msra.mxu0 0.0
  %581 = vmatpush.msra.mxu0 0.0
  %582 = vmatpush.msra.mxu0 0.0
  %583 = vmatpush.msra.mxu0 0.0
  %584 = vmatpush.msra.mxu0 %v571
  %585 = vmatpush.msra.mxu0 %v570
  %586 = vmatpush.msra.mxu0 %v569
  %587 = vmatpush.msra.mxu0 %v568
  %588 = vmatmul.f32.gmra.mxu0 %v491
  %v589 = vpop.f32.mrf.mxu0
  %v590 = vadd.f32 0.0, %v589
  %591 = vmatmul.f32.gmra.mxu0 %v494
  %v592 = vpop.f32.mrf.mxu0
  %v593 = vadd.f32 0.0, %v592
  %594 = vdwg.mxu0
  %v595 = vadd.f32 %v565, %v590
  %v596 = vadd.f32 %v566, %v593
  %s597 = scalar_lea.vmem %s3, 256
  %v598 = vld [vmem:[%s597] sm:$0xff]
  %v599 = vld [vmem:[%s597 + $0x8] sm:$0xff]
  %v600 = vld [vmem:[%s597 + $0x10] sm:$0xff]
  %v601 = vld [vmem:[%s597 + $0x18] sm:$0xff]
  %602 = vmatpush.msra.mxu0 0.0
  %603 = vmatpush.msra.mxu0 0.0
  %604 = vmatpush.msra.mxu0 0.0
  %605 = vmatpush.msra.mxu0 0.0
  %606 = vmatpush.msra.mxu0 0.0
  %607 = vmatpush.msra.mxu0 0.0
  %608 = vmatpush.msra.mxu0 0.0
  %609 = vmatpush.msra.mxu0 0.0
  %610 = vmatpush.msra.mxu0 0.0
  %611 = vmatpush.msra.mxu0 0.0
  %612 = vmatpush.msra.mxu0 0.0
  %613 = vmatpush.msra.mxu0 0.0
  %614 = vmatpush.msra.mxu0 %v601
  %615 = vmatpush.msra.mxu0 %v600
  %616 = vmatpush.msra.mxu0 %v599
  %617 = vmatpush.msra.mxu0 %v598
  %618 = vmatmul.f32.gmra.mxu0 %v491
  %v619 = vpop.f32.mrf.mxu0
  %v620 = vadd.f32 0.0, %v619
  %621 = vmatmul.f32.gmra.mxu0 %v494
  %v622 = vpop.f32.mrf.mxu0
  %v623 = vadd.f32 0.0, %v622
  %624 = vdwg.mxu0
  %v627 = vrot.slane %v620, 1
  %v628 = vrot.slane %v623, 1
  %v631 = vsel %vm223, %v627, 0.0
  %v632 = vsel %vm223, %v628, 0.0
  %v633 = vadd.f32 %v595, %v631
  %v634 = vadd.f32 %v596, %v632
  %s635 = scalar_lea.vmem %s3, 288
  %v636 = vld [vmem:[%s635] sm:$0xff]
  %v637 = vld [vmem:[%s635 + $0x8] sm:$0xff]
  %v638 = vld [vmem:[%s635 + $0x10] sm:$0xff]
  %v639 = vld [vmem:[%s635 + $0x18] sm:$0xff]
  %640 = vmatpush.msra.mxu0 0.0
  %641 = vmatpush.msra.mxu0 0.0
  %642 = vmatpush.msra.mxu0 0.0
  %643 = vmatpush.msra.mxu0 0.0
  %644 = vmatpush.msra.mxu0 0.0
  %645 = vmatpush.msra.mxu0 0.0
  %646 = vmatpush.msra.mxu0 0.0
  %647 = vmatpush.msra.mxu0 0.0
  %648 = vmatpush.msra.mxu0 0.0
  %649 = vmatpush.msra.mxu0 0.0
  %650 = vmatpush.msra.mxu0 0.0
  %651 = vmatpush.msra.mxu0 0.0
  %652 = vmatpush.msra.mxu0 %v639
  %653 = vmatpush.msra.mxu0 %v638
  %654 = vmatpush.msra.mxu0 %v637
  %655 = vmatpush.msra.mxu0 %v636
  %656 = vmatmul.f32.gmra.mxu0 %v491
  %v657 = vpop.f32.mrf.mxu0
  %v658 = vadd.f32 0.0, %v657
  %659 = vmatmul.f32.gmra.mxu0 %v494
  %v660 = vpop.f32.mrf.mxu0
  %v661 = vadd.f32 0.0, %v660
  %662 = vdwg.mxu0
  %v665 = vrot.slane %v658, 2
  %v666 = vrot.slane %v661, 2
  %v669 = vsel %vm262, %v665, 0.0
  %v670 = vsel %vm262, %v666, 0.0
  %v671 = vadd.f32 %v633, %v669
  %v672 = vadd.f32 %v634, %v670
  %s673 = scalar_lea.vmem %s4, 1
  %v674 = vld [vmem:[%s673] sm:$0x1]
  %v676 = vperm.slane %v674, 0
  %v678 = vadd.f32 %v671, %v676
  %v679 = vadd.f32 %v672, %v676
  %vm680 = vcmp.gt.f32.partialorder %v678, 0.0
  %vm681 = vcmp.gt.f32.partialorder %v679, 0.0
  %v682 = vmul.f32 %v678, 0.2
  %v683 = vmul.f32 %v679, 0.2
  %v684 = vsel %vm680, %v678, %v682
  %v685 = vsel %vm681, %v679, %v683
  %v688 = vrot.slane %v684, 6
  %v689 = vrot.slane %v685, 6
  %v692 = vsel %vm115, 0.0, %v688
  %v693 = vsel %vm115, 0.0, %v689
  %v694 = vsel %vm115, %v688, 0.0
  %v695 = vsel %vm115, %v689, 0.0
  %s696 = scalar_lea.vmem %s5, 40
  %v697 = vld [vmem:[%s696] sm:$0xff]
  %v702 = vrot.slane %v692, 1
  %v703 = vrot.slane %v694, 1
  %v704 = vsel %vm223, %v702, %v703
  %v705 = vrot.slane %v693, 1
  %v706 = vrot.slane %v695, 1
  %v707 = vsel %vm223, %v705, %v706
  %s708 = scalar_lea.vmem %s5, 48
  %v709 = vld [vmem:[%s708] sm:$0xff]
  %v710 = vsel %vm302, %v704, 0
  %v712 = vsel %vm302, %v707, 0
  %714 = vmatpush.msra.mxu0 0.0
  %715 = vmatpush.msra.mxu0 0.0
  %716 = vmatpush.msra.mxu0 0.0
  %717 = vmatpush.msra.mxu0 0.0
  %718 = vmatpush.msra.mxu0 0.0
  %719 = vmatpush.msra.mxu0 0.0
  %720 = vmatpush.msra.mxu0 0.0
  %721 = vmatpush.msra.mxu0 0.0
  %722 = vmatpush.msra.mxu0 0.0
  %723 = vmatpush.msra.mxu0 0.0
  %724 = vmatpush.msra.mxu0 0.0
  %725 = vmatpush.msra.mxu0 0.0
  %726 = vmatpush.msra.mxu0 0.0
  %727 = vmatpush.msra.mxu0 0.0
  %728 = vmatpush.msra.mxu0 0.0
  %729 = vmatpush.msra.mxu0 %v709
  %730 = vmatmul.f32.gmra.mxu0 %v710
  %v731 = vpop.f32.mrf.mxu0
  %v732 = vadd.f32 0.0, %v731
  %733 = vmatmul.f32.gmra.mxu0 %v712
  %v734 = vpop.f32.mrf.mxu0
  %v735 = vadd.f32 0.0, %v734
  %736 = vdwg.mxu0
  %v737 = vsel %vm302, %v692, 0
  %v739 = vsel %vm302, %v693, 0
  %741 = vmatpush.msra.mxu0 0.0
  %742 = vmatpush.msra.mxu0 0.0
  %743 = vmatpush.msra.mxu0 0.0
  %744 = vmatpush.msra.mxu0 0.0
  %745 = vmatpush.msra.mxu0 0.0
  %746 = vmatpush.msra.mxu0 0.0
  %747 = vmatpush.msra.mxu0 0.0
  %748 = vmatpush.msra.mxu0 0.0
  %749 = vmatpush.msra.mxu0 0.0
  %750 = vmatpush.msra.mxu0 0.0
  %751 = vmatpush.msra.mxu0 0.0
  %752 = vmatpush.msra.mxu0 0.0
  %753 = vmatpush.msra.mxu0 0.0
  %754 = vmatpush.msra.mxu0 0.0
  %755 = vmatpush.msra.mxu0 0.0
  %756 = vmatpush.msra.mxu0 %v697
  %757 = vmatmul.f32.gmra.mxu0 %v737
  %v758 = vpop.f32.mrf.mxu0
  %v759 = vadd.f32 %v732, %v758
  %760 = vmatmul.f32.gmra.mxu0 %v739
  %v761 = vpop.f32.mrf.mxu0
  %v762 = vadd.f32 %v735, %v761
  %763 = vdwg.mxu0
  %v764 = vrot.slane %v692, 2
  %v765 = vrot.slane %v694, 2
  %v766 = vsel %vm262, %v764, %v765
  %v767 = vrot.slane %v693, 2
  %v768 = vrot.slane %v695, 2
  %v769 = vsel %vm262, %v767, %v768
  %s770 = scalar_lea.vmem %s5, 56
  %v771 = vld [vmem:[%s770] sm:$0xff]
  %v772 = vsel %vm302, %v766, 0
  %v774 = vsel %vm302, %v769, 0
  %776 = vmatpush.msra.mxu0 0.0
  %777 = vmatpush.msra.mxu0 0.0
  %778 = vmatpush.msra.mxu0 0.0
  %779 = vmatpush.msra.mxu0 0.0
  %780 = vmatpush.msra.mxu0 0.0
  %781 = vmatpush.msra.mxu0 0.0
  %782 = vmatpush.msra.mxu0 0.0
  %783 = vmatpush.msra.mxu0 0.0
  %784 = vmatpush.msra.mxu0 0.0
  %785 = vmatpush.msra.mxu0 0.0
  %786 = vmatpush.msra.mxu0 0.0
  %787 = vmatpush.msra.mxu0 0.0
  %788 = vmatpush.msra.mxu0 0.0
  %789 = vmatpush.msra.mxu0 0.0
  %790 = vmatpush.msra.mxu0 0.0
  %791 = vmatpush.msra.mxu0 %v771
  %792 = vmatmul.f32.gmra.mxu0 %v772
  %v793 = vpop.f32.mrf.mxu0
  %v794 = vadd.f32 0.0, %v793
  %795 = vmatmul.f32.gmra.mxu0 %v774
  %v796 = vpop.f32.mrf.mxu0
  %v797 = vadd.f32 0.0, %v796
  %798 = vdwg.mxu0
  %v799 = vadd.f32 %v759, %v794
  %v800 = vadd.f32 %v762, %v797
  %v801 = vrot.slane %v692, 3
  %v802 = vrot.slane %v694, 3
  %v803 = vsel %vm394, %v801, %v802
  %v804 = vrot.slane %v693, 3
  %v805 = vrot.slane %v695, 3
  %v806 = vsel %vm394, %v804, %v805
  %s807 = scalar_lea.vmem %s5, 64
  %v808 = vld [vmem:[%s807] sm:$0xff]
  %v809 = vsel %vm302, %v803, 0
  %v811 = vsel %vm302, %v806, 0
  %813 = vmatpush.msra.mxu0 0.0
  %814 = vmatpush.msra.mxu0 0.0
  %815 = vmatpush.msra.mxu0 0.0
  %816 = vmatpush.msra.mxu0 0.0
  %817 = vmatpush.msra.mxu0 0.0
  %818 = vmatpush.msra.mxu0 0.0
  %819 = vmatpush.msra.mxu0 0.0
  %820 = vmatpush.msra.mxu0 0.0
  %821 = vmatpush.msra.mxu0 0.0
  %822 = vmatpush.msra.mxu0 0.0
  %823 = vmatpush.msra.mxu0 0.0
  %824 = vmatpush.msra.mxu0 0.0
  %825 = vmatpush.msra.mxu0 0.0
  %826 = vmatpush.msra.mxu0 0.0
  %827 = vmatpush.msra.mxu0 0.0
  %828 = vmatpush.msra.mxu0 %v808
  %829 = vmatmul.f32.gmra.mxu0 %v809
  %v830 = vpop.f32.mrf.mxu0
  %v831 = vadd.f32 0.0, %v830
  %832 = vmatmul.f32.gmra.mxu0 %v811
  %v833 = vpop.f32.mrf.mxu0
  %v834 = vadd.f32 0.0, %v833
  %835 = vdwg.mxu0
  %v836 = vadd.f32 %v799, %v831
  %v837 = vadd.f32 %v800, %v834
  %v838 = vrot.slane %v692, 4
  %v839 = vrot.slane %v694, 4
  %v840 = vsel %vm48, %v838, %v839
  %v841 = vrot.slane %v693, 4
  %v842 = vrot.slane %v695, 4
  %v843 = vsel %vm48, %v841, %v842
  %s844 = scalar_lea.vmem %s5, 72
  %v845 = vld [vmem:[%s844] sm:$0xff]
  %v846 = vsel %vm302, %v840, 0
  %v848 = vsel %vm302, %v843, 0
  %850 = vmatpush.msra.mxu0 0.0
  %851 = vmatpush.msra.mxu0 0.0
  %852 = vmatpush.msra.mxu0 0.0
  %853 = vmatpush.msra.mxu0 0.0
  %854 = vmatpush.msra.mxu0 0.0
  %855 = vmatpush.msra.mxu0 0.0
  %856 = vmatpush.msra.mxu0 0.0
  %857 = vmatpush.msra.mxu0 0.0
  %858 = vmatpush.msra.mxu0 0.0
  %859 = vmatpush.msra.mxu0 0.0
  %860 = vmatpush.msra.mxu0 0.0
  %861 = vmatpush.msra.mxu0 0.0
  %862 = vmatpush.msra.mxu0 0.0
  %863 = vmatpush.msra.mxu0 0.0
  %864 = vmatpush.msra.mxu0 0.0
  %865 = vmatpush.msra.mxu0 %v845
  %866 = vmatmul.f32.gmra.mxu0 %v846
  %v867 = vpop.f32.mrf.mxu0
  %v868 = vadd.f32 0.0, %v867
  %869 = vmatmul.f32.gmra.mxu0 %v848
  %v870 = vpop.f32.mrf.mxu0
  %v871 = vadd.f32 0.0, %v870
  %872 = vdwg.mxu0
  %v873 = vadd.f32 %v836, %v868
  %v874 = vadd.f32 %v837, %v871
  %s875 = scalar_lea.vmem %s6, 1
  %v876 = vld [vmem:[%s875] sm:$0x1]
  %v878 = vperm.slane %v876, 0
  %v880 = vadd.f32 %v873, %v878
  %v881 = vadd.f32 %v874, %v878
  %vm882 = vcmp.gt.f32.partialorder %v880, 0.0
  %vm883 = vcmp.gt.f32.partialorder %v881, 0.0
  %v884 = vmul.f32 %v880, 0.2
  %v885 = vmul.f32 %v881, 0.2
  %v886 = vsel %vm882, %v880, %v884
  %v887 = vsel %vm883, %v881, %v885
  %v888 = vmul.f32 %v886, 0.1
  %v889 = vmul.f32 %v887, 0.1
  %v890 = vadd.f32 %v483, %v888
  %v891 = vadd.f32 %v484, %v889
  %s892 = scalar_lea.vmem %s3, 320
  %v893 = vld [vmem:[%s892] sm:$0xff]
  %v894 = vld [vmem:[%s892 + $0x8] sm:$0xff]
  %v895 = vld [vmem:[%s892 + $0x10] sm:$0xff]
  %v896 = vld [vmem:[%s892 + $0x18] sm:$0xff]
  %v898 = vsel %vm79, %v890, 0
  %v901 = vsel %vm79, %v891, 0
  %903 = vmatpush.msra.mxu0 0.0
  %904 = vmatpush.msra.mxu0 0.0
  %905 = vmatpush.msra.mxu0 0.0
  %906 = vmatpush.msra.mxu0 0.0
  %907 = vmatpush.msra.mxu0 0.0
  %908 = vmatpush.msra.mxu0 0.0
  %909 = vmatpush.msra.mxu0 0.0
  %910 = vmatpush.msra.mxu0 0.0
  %911 = vmatpush.msra.mxu0 0.0
  %912 = vmatpush.msra.mxu0 0.0
  %913 = vmatpush.msra.mxu0 0.0
  %914 = vmatpush.msra.mxu0 0.0
  %915 = vmatpush.msra.mxu0 %v896
  %916 = vmatpush.msra.mxu0 %v895
  %917 = vmatpush.msra.mxu0 %v894
  %918 = vmatpush.msra.mxu0 %v893
  %919 = vmatmul.f32.gmra.mxu0 %v898
  %v920 = vpop.f32.mrf.mxu0
  %v921 = vadd.f32 0.0, %v920
  %922 = vmatmul.f32.gmra.mxu0 %v901
  %v923 = vpop.f32.mrf.mxu0
  %v924 = vadd.f32 0.0, %v923
  %925 = vdwg.mxu0
  %v928 = vrot.slane %v921, 6
  %v929 = vrot.slane %v924, 6
  %v932 = vsel %vm115, 0.0, %v928
  %v933 = vsel %vm115, 0.0, %v929
  %v934 = vadd.f32 %v932, 0.0
  %v935 = vadd.f32 %v933, 0.0
  %s936 = scalar_lea.vmem %s3, 352
  %v937 = vld [vmem:[%s936] sm:$0xff]
  %v938 = vld [vmem:[%s936 + $0x8] sm:$0xff]
  %v939 = vld [vmem:[%s936 + $0x10] sm:$0xff]
  %v940 = vld [vmem:[%s936 + $0x18] sm:$0xff]
  %941 = vmatpush.msra.mxu0 0.0
  %942 = vmatpush.msra.mxu0 0.0
  %943 = vmatpush.msra.mxu0 0.0
  %944 = vmatpush.msra.mxu0 0.0
  %945 = vmatpush.msra.mxu0 0.0
  %946 = vmatpush.msra.mxu0 0.0
  %947 = vmatpush.msra.mxu0 0.0
  %948 = vmatpush.msra.mxu0 0.0
  %949 = vmatpush.msra.mxu0 0.0
  %950 = vmatpush.msra.mxu0 0.0
  %951 = vmatpush.msra.mxu0 0.0
  %952 = vmatpush.msra.mxu0 0.0
  %953 = vmatpush.msra.mxu0 %v940
  %954 = vmatpush.msra.mxu0 %v939
  %955 = vmatpush.msra.mxu0 %v938
  %956 = vmatpush.msra.mxu0 %v937
  %957 = vmatmul.f32.gmra.mxu0 %v898
  %v958 = vpop.f32.mrf.mxu0
  %v959 = vadd.f32 0.0, %v958
  %960 = vmatmul.f32.gmra.mxu0 %v901
  %v961 = vpop.f32.mrf.mxu0
  %v962 = vadd.f32 0.0, %v961
  %963 = vdwg.mxu0
  %v966 = vrot.slane %v959, 7
  %v967 = vrot.slane %v962, 7
  %v970 = vsel %vm154, 0.0, %v966
  %v971 = vsel %vm154, 0.0, %v967
  %v972 = vadd.f32 %v934, %v970
  %v973 = vadd.f32 %v935, %v971
  %s974 = scalar_lea.vmem %s3, 384
  %v975 = vld [vmem:[%s974] sm:$0xff]
  %v976 = vld [vmem:[%s974 + $0x8] sm:$0xff]
  %v977 = vld [vmem:[%s974 + $0x10] sm:$0xff]
  %v978 = vld [vmem:[%s974 + $0x18] sm:$0xff]
  %979 = vmatpush.msra.mxu0 0.0
  %980 = vmatpush.msra.mxu0 0.0
  %981 = vmatpush.msra.mxu0 0.0
  %982 = vmatpush.msra.mxu0 0.0
  %983 = vmatpush.msra.mxu0 0.0
  %984 = vmatpush.msra.mxu0 0.0
  %985 = vmatpush.msra.mxu0 0.0
  %986 = vmatpush.msra.mxu0 0.0
  %987 = vmatpush.msra.mxu0 0.0
  %988 = vmatpush.msra.mxu0 0.0
  %989 = vmatpush.msra.mxu0 0.0
  %990 = vmatpush.msra.mxu0 0.0
  %991 = vmatpush.msra.mxu0 %v978
  %992 = vmatpush.msra.mxu0 %v977
  %993 = vmatpush.msra.mxu0 %v976
  %994 = vmatpush.msra.mxu0 %v975
  %995 = vmatmul.f32.gmra.mxu0 %v898
  %v996 = vpop.f32.mrf.mxu0
  %v997 = vadd.f32 0.0, %v996
  %998 = vmatmul.f32.gmra.mxu0 %v901
  %v999 = vpop.f32.mrf.mxu0
  %v1000 = vadd.f32 0.0, %v999
  %1001 = vdwg.mxu0
  %v1002 = vadd.f32 %v972, %v997
  %v1003 = vadd.f32 %v973, %v1000
  %s1004 = scalar_lea.vmem %s3, 416
  %v1005 = vld [vmem:[%s1004] sm:$0xff]
  %v1006 = vld [vmem:[%s1004 + $0x8] sm:$0xff]
  %v1007 = vld [vmem:[%s1004 + $0x10] sm:$0xff]
  %v1008 = vld [vmem:[%s1004 + $0x18] sm:$0xff]
  %1009 = vmatpush.msra.mxu0 0.0
  %1010 = vmatpush.msra.mxu0 0.0
  %1011 = vmatpush.msra.mxu0 0.0
  %1012 = vmatpush.msra.mxu0 0.0
  %1013 = vmatpush.msra.mxu0 0.0
  %1014 = vmatpush.msra.mxu0 0.0
  %1015 = vmatpush.msra.mxu0 0.0
  %1016 = vmatpush.msra.mxu0 0.0
  %1017 = vmatpush.msra.mxu0 0.0
  %1018 = vmatpush.msra.mxu0 0.0
  %1019 = vmatpush.msra.mxu0 0.0
  %1020 = vmatpush.msra.mxu0 0.0
  %1021 = vmatpush.msra.mxu0 %v1008
  %1022 = vmatpush.msra.mxu0 %v1007
  %1023 = vmatpush.msra.mxu0 %v1006
  %1024 = vmatpush.msra.mxu0 %v1005
  %1025 = vmatmul.f32.gmra.mxu0 %v898
  %v1026 = vpop.f32.mrf.mxu0
  %v1027 = vadd.f32 0.0, %v1026
  %1028 = vmatmul.f32.gmra.mxu0 %v901
  %v1029 = vpop.f32.mrf.mxu0
  %v1030 = vadd.f32 0.0, %v1029
  %1031 = vdwg.mxu0
  %v1034 = vrot.slane %v1027, 1
  %v1035 = vrot.slane %v1030, 1
  %v1038 = vsel %vm223, %v1034, 0.0
  %v1039 = vsel %vm223, %v1035, 0.0
  %v1040 = vadd.f32 %v1002, %v1038
  %v1041 = vadd.f32 %v1003, %v1039
  %s1042 = scalar_lea.vmem %s3, 448
  %v1043 = vld [vmem:[%s1042] sm:$0xff]
  %v1044 = vld [vmem:[%s1042 + $0x8] sm:$0xff]
  %v1045 = vld [vmem:[%s1042 + $0x10] sm:$0xff]
  %v1046 = vld [vmem:[%s1042 + $0x18] sm:$0xff]
  %1047 = vmatpush.msra.mxu0 0.0
  %1048 = vmatpush.msra.mxu0 0.0
  %1049 = vmatpush.msra.mxu0 0.0
  %1050 = vmatpush.msra.mxu0 0.0
  %1051 = vmatpush.msra.mxu0 0.0
  %1052 = vmatpush.msra.mxu0 0.0
  %1053 = vmatpush.msra.mxu0 0.0
  %1054 = vmatpush.msra.mxu0 0.0
  %1055 = vmatpush.msra.mxu0 0.0
  %1056 = vmatpush.msra.mxu0 0.0
  %1057 = vmatpush.msra.mxu0 0.0
  %1058 = vmatpush.msra.mxu0 0.0
  %1059 = vmatpush.msra.mxu0 %v1046
  %1060 = vmatpush.msra.mxu0 %v1045
  %1061 = vmatpush.msra.mxu0 %v1044
  %1062 = vmatpush.msra.mxu0 %v1043
  %1063 = vmatmul.f32.gmra.mxu0 %v898
  %v1064 = vpop.f32.mrf.mxu0
  %v1065 = vadd.f32 0.0, %v1064
  %1066 = vmatmul.f32.gmra.mxu0 %v901
  %v1067 = vpop.f32.mrf.mxu0
  %v1068 = vadd.f32 0.0, %v1067
  %1069 = vdwg.mxu0
  %v1072 = vrot.slane %v1065, 2
  %v1073 = vrot.slane %v1068, 2
  %v1076 = vsel %vm262, %v1072, 0.0
  %v1077 = vsel %vm262, %v1073, 0.0
  %v1078 = vadd.f32 %v1040, %v1076
  %v1079 = vadd.f32 %v1041, %v1077
  %s1080 = scalar_lea.vmem %s4, 2
  %v1081 = vld [vmem:[%s1080] sm:$0x1]
  %v1083 = vperm.slane %v1081, 0
  %v1085 = vadd.f32 %v1078, %v1083
  %v1086 = vadd.f32 %v1079, %v1083
  %vm1087 = vcmp.gt.f32.partialorder %v1085, 0.0
  %vm1088 = vcmp.gt.f32.partialorder %v1086, 0.0
  %v1089 = vmul.f32 %v1085, 0.2
  %v1090 = vmul.f32 %v1086, 0.2
  %v1091 = vsel %vm1087, %v1085, %v1089
  %v1092 = vsel %vm1088, %v1086, %v1090
  %v1095 = vrot.slane %v1091, 6
  %v1096 = vrot.slane %v1092, 6
  %v1099 = vsel %vm115, 0.0, %v1095
  %v1100 = vsel %vm115, 0.0, %v1096
  %v1101 = vsel %vm115, %v1095, 0.0
  %v1102 = vsel %vm115, %v1096, 0.0
  %s1103 = scalar_lea.vmem %s5, 80
  %v1104 = vld [vmem:[%s1103] sm:$0xff]
  %v1109 = vrot.slane %v1099, 1
  %v1110 = vrot.slane %v1101, 1
  %v1111 = vsel %vm223, %v1109, %v1110
  %v1112 = vrot.slane %v1100, 1
  %v1113 = vrot.slane %v1102, 1
  %v1114 = vsel %vm223, %v1112, %v1113
  %s1115 = scalar_lea.vmem %s5, 88
  %v1116 = vld [vmem:[%s1115] sm:$0xff]
  %v1117 = vsel %vm302, %v1111, 0
  %v1119 = vsel %vm302, %v1114, 0
  %1121 = vmatpush.msra.mxu0 0.0
  %1122 = vmatpush.msra.mxu0 0.0
  %1123 = vmatpush.msra.mxu0 0.0
  %1124 = vmatpush.msra.mxu0 0.0
  %1125 = vmatpush.msra.mxu0 0.0
  %1126 = vmatpush.msra.mxu0 0.0
  %1127 = vmatpush.msra.mxu0 0.0
  %1128 = vmatpush.msra.mxu0 0.0
  %1129 = vmatpush.msra.mxu0 0.0
  %1130 = vmatpush.msra.mxu0 0.0
  %1131 = vmatpush.msra.mxu0 0.0
  %1132 = vmatpush.msra.mxu0 0.0
  %1133 = vmatpush.msra.mxu0 0.0
  %1134 = vmatpush.msra.mxu0 0.0
  %1135 = vmatpush.msra.mxu0 0.0
  %1136 = vmatpush.msra.mxu0 %v1116
  %1137 = vmatmul.f32.gmra.mxu0 %v1117
  %v1138 = vpop.f32.mrf.mxu0
  %v1139 = vadd.f32 0.0, %v1138
  %1140 = vmatmul.f32.gmra.mxu0 %v1119
  %v1141 = vpop.f32.mrf.mxu0
  %v1142 = vadd.f32 0.0, %v1141
  %1143 = vdwg.mxu0
  %v1144 = vsel %vm302, %v1099, 0
  %v1146 = vsel %vm302, %v1100, 0
  %1148 = vmatpush.msra.mxu0 0.0
  %1149 = vmatpush.msra.mxu0 0.0
  %1150 = vmatpush.msra.mxu0 0.0
  %1151 = vmatpush.msra.mxu0 0.0
  %1152 = vmatpush.msra.mxu0 0.0
  %1153 = vmatpush.msra.mxu0 0.0
  %1154 = vmatpush.msra.mxu0 0.0
  %1155 = vmatpush.msra.mxu0 0.0
  %1156 = vmatpush.msra.mxu0 0.0
  %1157 = vmatpush.msra.mxu0 0.0
  %1158 = vmatpush.msra.mxu0 0.0
  %1159 = vmatpush.msra.mxu0 0.0
  %1160 = vmatpush.msra.mxu0 0.0
  %1161 = vmatpush.msra.mxu0 0.0
  %1162 = vmatpush.msra.mxu0 0.0
  %1163 = vmatpush.msra.mxu0 %v1104
  %1164 = vmatmul.f32.gmra.mxu0 %v1144
  %v1165 = vpop.f32.mrf.mxu0
  %v1166 = vadd.f32 %v1139, %v1165
  %1167 = vmatmul.f32.gmra.mxu0 %v1146
  %v1168 = vpop.f32.mrf.mxu0
  %v1169 = vadd.f32 %v1142, %v1168
  %1170 = vdwg.mxu0
  %v1171 = vrot.slane %v1099, 2
  %v1172 = vrot.slane %v1101, 2
  %v1173 = vsel %vm262, %v1171, %v1172
  %v1174 = vrot.slane %v1100, 2
  %v1175 = vrot.slane %v1102, 2
  %v1176 = vsel %vm262, %v1174, %v1175
  %s1177 = scalar_lea.vmem %s5, 96
  %v1178 = vld [vmem:[%s1177] sm:$0xff]
  %v1179 = vsel %vm302, %v1173, 0
  %v1181 = vsel %vm302, %v1176, 0
  %1183 = vmatpush.msra.mxu0 0.0
  %1184 = vmatpush.msra.mxu0 0.0
  %1185 = vmatpush.msra.mxu0 0.0
  %1186 = vmatpush.msra.mxu0 0.0
  %1187 = vmatpush.msra.mxu0 0.0
  %1188 = vmatpush.msra.mxu0 0.0
  %1189 = vmatpush.msra.mxu0 0.0
  %1190 = vmatpush.msra.mxu0 0.0
  %1191 = vmatpush.msra.mxu0 0.0
  %1192 = vmatpush.msra.mxu0 0.0
  %1193 = vmatpush.msra.mxu0 0.0
  %1194 = vmatpush.msra.mxu0 0.0
  %1195 = vmatpush.msra.mxu0 0.0
  %1196 = vmatpush.msra.mxu0 0.0
  %1197 = vmatpush.msra.mxu0 0.0
  %1198 = vmatpush.msra.mxu0 %v1178
  %1199 = vmatmul.f32.gmra.mxu0 %v1179
  %v1200 = vpop.f32.mrf.mxu0
  %v1201 = vadd.f32 0.0, %v1200
  %1202 = vmatmul.f32.gmra.mxu0 %v1181
  %v1203 = vpop.f32.mrf.mxu0
  %v1204 = vadd.f32 0.0, %v1203
  %1205 = vdwg.mxu0
  %v1206 = vadd.f32 %v1166, %v1201
  %v1207 = vadd.f32 %v1169, %v1204
  %v1208 = vrot.slane %v1099, 3
  %v1209 = vrot.slane %v1101, 3
  %v1210 = vsel %vm394, %v1208, %v1209
  %v1211 = vrot.slane %v1100, 3
  %v1212 = vrot.slane %v1102, 3
  %v1213 = vsel %vm394, %v1211, %v1212
  %s1214 = scalar_lea.vmem %s5, 104
  %v1215 = vld [vmem:[%s1214] sm:$0xff]
  %v1216 = vsel %vm302, %v1210, 0
  %v1218 = vsel %vm302, %v1213, 0
  %1220 = vmatpush.msra.mxu0 0.0
  %1221 = vmatpush.msra.mxu0 0.0
  %1222 = vmatpush.msra.mxu0 0.0
  %1223 = vmatpush.msra.mxu0 0.0
  %1224 = vmatpush.msra.mxu0 0.0
  %1225 = vmatpush.msra.mxu0 0.0
  %1226 = vmatpush.msra.mxu0 0.0
  %1227 = vmatpush.msra.mxu0 0.0
  %1228 = vmatpush.msra.mxu0 0.0
  %1229 = vmatpush.msra.mxu0 0.0
  %1230 = vmatpush.msra.mxu0 0.0
  %1231 = vmatpush.msra.mxu0 0.0
  %1232 = vmatpush.msra.mxu0 0.0
  %1233 = vmatpush.msra.mxu0 0.0
  %1234 = vmatpush.msra.mxu0 0.0
  %1235 = vmatpush.msra.mxu0 %v1215
  %1236 = vmatmul.f32.gmra.mxu0 %v1216
  %v1237 = vpop.f32.mrf.mxu0
  %v1238 = vadd.f32 0.0, %v1237
  %1239 = vmatmul.f32.gmra.mxu0 %v1218
  %v1240 = vpop.f32.mrf.mxu0
  %v1241 = vadd.f32 0.0, %v1240
  %1242 = vdwg.mxu0
  %v1243 = vadd.f32 %v1206, %v1238
  %v1244 = vadd.f32 %v1207, %v1241
  %v1245 = vrot.slane %v1099, 4
  %v1246 = vrot.slane %v1101, 4
  %v1247 = vsel %vm48, %v1245, %v1246
  %v1248 = vrot.slane %v1100, 4
  %v1249 = vrot.slane %v1102, 4
  %v1250 = vsel %vm48, %v1248, %v1249
  %s1251 = scalar_lea.vmem %s5, 112
  %v1252 = vld [vmem:[%s1251] sm:$0xff]
  %v1253 = vsel %vm302, %v1247, 0
  %v1255 = vsel %vm302, %v1250, 0
  %1257 = vmatpush.msra.mxu0 0.0
  %1258 = vmatpush.msra.mxu0 0.0
  %1259 = vmatpush.msra.mxu0 0.0
  %1260 = vmatpush.msra.mxu0 0.0
  %1261 = vmatpush.msra.mxu0 0.0
  %1262 = vmatpush.msra.mxu0 0.0
  %1263 = vmatpush.msra.mxu0 0.0
  %1264 = vmatpush.msra.mxu0 0.0
  %1265 = vmatpush.msra.mxu0 0.0
  %1266 = vmatpush.msra.mxu0 0.0
  %1267 = vmatpush.msra.mxu0 0.0
  %1268 = vmatpush.msra.mxu0 0.0
  %1269 = vmatpush.msra.mxu0 0.0
  %1270 = vmatpush.msra.mxu0 0.0
  %1271 = vmatpush.msra.mxu0 0.0
  %1272 = vmatpush.msra.mxu0 %v1252
  %1273 = vmatmul.f32.gmra.mxu0 %v1253
  %v1274 = vpop.f32.mrf.mxu0
  %v1275 = vadd.f32 0.0, %v1274
  %1276 = vmatmul.f32.gmra.mxu0 %v1255
  %v1277 = vpop.f32.mrf.mxu0
  %v1278 = vadd.f32 0.0, %v1277
  %1279 = vdwg.mxu0
  %v1280 = vadd.f32 %v1243, %v1275
  %v1281 = vadd.f32 %v1244, %v1278
  %s1282 = scalar_lea.vmem %s6, 2
  %v1283 = vld [vmem:[%s1282] sm:$0x1]
  %v1285 = vperm.slane %v1283, 0
  %v1287 = vadd.f32 %v1280, %v1285
  %v1288 = vadd.f32 %v1281, %v1285
  %vm1289 = vcmp.gt.f32.partialorder %v1287, 0.0
  %vm1290 = vcmp.gt.f32.partialorder %v1288, 0.0
  %v1291 = vmul.f32 %v1287, 0.2
  %v1292 = vmul.f32 %v1288, 0.2
  %v1293 = vsel %vm1289, %v1287, %v1291
  %v1294 = vsel %vm1290, %v1288, %v1292
  %v1295 = vmul.f32 %v1293, 0.1
  %v1296 = vmul.f32 %v1294, 0.1
  %v1297 = vadd.f32 %v890, %v1295
  %v1298 = vadd.f32 %v891, %v1296
  %s1299 = scalar_lea.vmem %s3, 480
  %v1300 = vld [vmem:[%s1299] sm:$0xff]
  %v1301 = vld [vmem:[%s1299 + $0x8] sm:$0xff]
  %v1302 = vld [vmem:[%s1299 + $0x10] sm:$0xff]
  %v1303 = vld [vmem:[%s1299 + $0x18] sm:$0xff]
  %v1305 = vsel %vm79, %v1297, 0
  %v1308 = vsel %vm79, %v1298, 0
  %1310 = vmatpush.msra.mxu0 0.0
  %1311 = vmatpush.msra.mxu0 0.0
  %1312 = vmatpush.msra.mxu0 0.0
  %1313 = vmatpush.msra.mxu0 0.0
  %1314 = vmatpush.msra.mxu0 0.0
  %1315 = vmatpush.msra.mxu0 0.0
  %1316 = vmatpush.msra.mxu0 0.0
  %1317 = vmatpush.msra.mxu0 0.0
  %1318 = vmatpush.msra.mxu0 0.0
  %1319 = vmatpush.msra.mxu0 0.0
  %1320 = vmatpush.msra.mxu0 0.0
  %1321 = vmatpush.msra.mxu0 0.0
  %1322 = vmatpush.msra.mxu0 %v1303
  %1323 = vmatpush.msra.mxu0 %v1302
  %1324 = vmatpush.msra.mxu0 %v1301
  %1325 = vmatpush.msra.mxu0 %v1300
  %1326 = vmatmul.f32.gmra.mxu0 %v1305
  %v1327 = vpop.f32.mrf.mxu0
  %v1328 = vadd.f32 0.0, %v1327
  %1329 = vmatmul.f32.gmra.mxu0 %v1308
  %v1330 = vpop.f32.mrf.mxu0
  %v1331 = vadd.f32 0.0, %v1330
  %1332 = vdwg.mxu0
  %v1335 = vrot.slane %v1328, 6
  %v1336 = vrot.slane %v1331, 6
  %v1339 = vsel %vm115, 0.0, %v1335
  %v1340 = vsel %vm115, 0.0, %v1336
  %v1341 = vadd.f32 %v1339, 0.0
  %v1342 = vadd.f32 %v1340, 0.0
  %s1343 = scalar_lea.vmem %s3, 512
  %v1344 = vld [vmem:[%s1343] sm:$0xff]
  %v1345 = vld [vmem:[%s1343 + $0x8] sm:$0xff]
  %v1346 = vld [vmem:[%s1343 + $0x10] sm:$0xff]
  %v1347 = vld [vmem:[%s1343 + $0x18] sm:$0xff]
  %1348 = vmatpush.msra.mxu0 0.0
  %1349 = vmatpush.msra.mxu0 0.0
  %1350 = vmatpush.msra.mxu0 0.0
  %1351 = vmatpush.msra.mxu0 0.0
  %1352 = vmatpush.msra.mxu0 0.0
  %1353 = vmatpush.msra.mxu0 0.0
  %1354 = vmatpush.msra.mxu0 0.0
  %1355 = vmatpush.msra.mxu0 0.0
  %1356 = vmatpush.msra.mxu0 0.0
  %1357 = vmatpush.msra.mxu0 0.0
  %1358 = vmatpush.msra.mxu0 0.0
  %1359 = vmatpush.msra.mxu0 0.0
  %1360 = vmatpush.msra.mxu0 %v1347
  %1361 = vmatpush.msra.mxu0 %v1346
  %1362 = vmatpush.msra.mxu0 %v1345
  %1363 = vmatpush.msra.mxu0 %v1344
  %1364 = vmatmul.f32.gmra.mxu0 %v1305
  %v1365 = vpop.f32.mrf.mxu0
  %v1366 = vadd.f32 0.0, %v1365
  %1367 = vmatmul.f32.gmra.mxu0 %v1308
  %v1368 = vpop.f32.mrf.mxu0
  %v1369 = vadd.f32 0.0, %v1368
  %1370 = vdwg.mxu0
  %v1373 = vrot.slane %v1366, 7
  %v1374 = vrot.slane %v1369, 7
  %v1377 = vsel %vm154, 0.0, %v1373
  %v1378 = vsel %vm154, 0.0, %v1374
  %v1379 = vadd.f32 %v1341, %v1377
  %v1380 = vadd.f32 %v1342, %v1378
  %s1381 = scalar_lea.vmem %s3, 544
  %v1382 = vld [vmem:[%s1381] sm:$0xff]
  %v1383 = vld [vmem:[%s1381 + $0x8] sm:$0xff]
  %v1384 = vld [vmem:[%s1381 + $0x10] sm:$0xff]
  %v1385 = vld [vmem:[%s1381 + $0x18] sm:$0xff]
  %1386 = vmatpush.msra.mxu0 0.0
  %1387 = vmatpush.msra.mxu0 0.0
  %1388 = vmatpush.msra.mxu0 0.0
  %1389 = vmatpush.msra.mxu0 0.0
  %1390 = vmatpush.msra.mxu0 0.0
  %1391 = vmatpush.msra.mxu0 0.0
  %1392 = vmatpush.msra.mxu0 0.0
  %1393 = vmatpush.msra.mxu0 0.0
  %1394 = vmatpush.msra.mxu0 0.0
  %1395 = vmatpush.msra.mxu0 0.0
  %1396 = vmatpush.msra.mxu0 0.0
  %1397 = vmatpush.msra.mxu0 0.0
  %1398 = vmatpush.msra.mxu0 %v1385
  %1399 = vmatpush.msra.mxu0 %v1384
  %1400 = vmatpush.msra.mxu0 %v1383
  %1401 = vmatpush.msra.mxu0 %v1382
  %1402 = vmatmul.f32.gmra.mxu0 %v1305
  %v1403 = vpop.f32.mrf.mxu0
  %v1404 = vadd.f32 0.0, %v1403
  %1405 = vmatmul.f32.gmra.mxu0 %v1308
  %v1406 = vpop.f32.mrf.mxu0
  %v1407 = vadd.f32 0.0, %v1406
  %1408 = vdwg.mxu0
  %v1409 = vadd.f32 %v1379, %v1404
  %v1410 = vadd.f32 %v1380, %v1407
  %s1411 = scalar_lea.vmem %s3, 576
  %v1412 = vld [vmem:[%s1411] sm:$0xff]
  %v1413 = vld [vmem:[%s1411 + $0x8] sm:$0xff]
  %v1414 = vld [vmem:[%s1411 + $0x10] sm:$0xff]
  %v1415 = vld [vmem:[%s1411 + $0x18] sm:$0xff]
  %1416 = vmatpush.msra.mxu0 0.0
  %1417 = vmatpush.msra.mxu0 0.0
  %1418 = vmatpush.msra.mxu0 0.0
  %1419 = vmatpush.msra.mxu0 0.0
  %1420 = vmatpush.msra.mxu0 0.0
  %1421 = vmatpush.msra.mxu0 0.0
  %1422 = vmatpush.msra.mxu0 0.0
  %1423 = vmatpush.msra.mxu0 0.0
  %1424 = vmatpush.msra.mxu0 0.0
  %1425 = vmatpush.msra.mxu0 0.0
  %1426 = vmatpush.msra.mxu0 0.0
  %1427 = vmatpush.msra.mxu0 0.0
  %1428 = vmatpush.msra.mxu0 %v1415
  %1429 = vmatpush.msra.mxu0 %v1414
  %1430 = vmatpush.msra.mxu0 %v1413
  %1431 = vmatpush.msra.mxu0 %v1412
  %1432 = vmatmul.f32.gmra.mxu0 %v1305
  %v1433 = vpop.f32.mrf.mxu0
  %v1434 = vadd.f32 0.0, %v1433
  %1435 = vmatmul.f32.gmra.mxu0 %v1308
  %v1436 = vpop.f32.mrf.mxu0
  %v1437 = vadd.f32 0.0, %v1436
  %1438 = vdwg.mxu0
  %v1441 = vrot.slane %v1434, 1
  %v1442 = vrot.slane %v1437, 1
  %v1445 = vsel %vm223, %v1441, 0.0
  %v1446 = vsel %vm223, %v1442, 0.0
  %v1447 = vadd.f32 %v1409, %v1445
  %v1448 = vadd.f32 %v1410, %v1446
  %s1449 = scalar_lea.vmem %s3, 608
  %v1450 = vld [vmem:[%s1449] sm:$0xff]
  %v1451 = vld [vmem:[%s1449 + $0x8] sm:$0xff]
  %v1452 = vld [vmem:[%s1449 + $0x10] sm:$0xff]
  %v1453 = vld [vmem:[%s1449 + $0x18] sm:$0xff]
  %1454 = vmatpush.msra.mxu0 0.0
  %1455 = vmatpush.msra.mxu0 0.0
  %1456 = vmatpush.msra.mxu0 0.0
  %1457 = vmatpush.msra.mxu0 0.0
  %1458 = vmatpush.msra.mxu0 0.0
  %1459 = vmatpush.msra.mxu0 0.0
  %1460 = vmatpush.msra.mxu0 0.0
  %1461 = vmatpush.msra.mxu0 0.0
  %1462 = vmatpush.msra.mxu0 0.0
  %1463 = vmatpush.msra.mxu0 0.0
  %1464 = vmatpush.msra.mxu0 0.0
  %1465 = vmatpush.msra.mxu0 0.0
  %1466 = vmatpush.msra.mxu0 %v1453
  %1467 = vmatpush.msra.mxu0 %v1452
  %1468 = vmatpush.msra.mxu0 %v1451
  %1469 = vmatpush.msra.mxu0 %v1450
  %1470 = vmatmul.f32.gmra.mxu0 %v1305
  %v1471 = vpop.f32.mrf.mxu0
  %v1472 = vadd.f32 0.0, %v1471
  %1473 = vmatmul.f32.gmra.mxu0 %v1308
  %v1474 = vpop.f32.mrf.mxu0
  %v1475 = vadd.f32 0.0, %v1474
  %1476 = vdwg.mxu0
  %v1479 = vrot.slane %v1472, 2
  %v1480 = vrot.slane %v1475, 2
  %v1483 = vsel %vm262, %v1479, 0.0
  %v1484 = vsel %vm262, %v1480, 0.0
  %v1485 = vadd.f32 %v1447, %v1483
  %v1486 = vadd.f32 %v1448, %v1484
  %s1487 = scalar_lea.vmem %s4, 3
  %v1488 = vld [vmem:[%s1487] sm:$0x1]
  %v1490 = vperm.slane %v1488, 0
  %v1492 = vadd.f32 %v1485, %v1490
  %v1493 = vadd.f32 %v1486, %v1490
  %vm1494 = vcmp.gt.f32.partialorder %v1492, 0.0
  %vm1495 = vcmp.gt.f32.partialorder %v1493, 0.0
  %v1496 = vmul.f32 %v1492, 0.2
  %v1497 = vmul.f32 %v1493, 0.2
  %v1498 = vsel %vm1494, %v1492, %v1496
  %v1499 = vsel %vm1495, %v1493, %v1497
  %v1502 = vrot.slane %v1498, 6
  %v1503 = vrot.slane %v1499, 6
  %v1506 = vsel %vm115, 0.0, %v1502
  %v1507 = vsel %vm115, 0.0, %v1503
  %v1508 = vsel %vm115, %v1502, 0.0
  %v1509 = vsel %vm115, %v1503, 0.0
  %s1510 = scalar_lea.vmem %s5, 120
  %v1511 = vld [vmem:[%s1510] sm:$0xff]
  %v1516 = vrot.slane %v1506, 1
  %v1517 = vrot.slane %v1508, 1
  %v1518 = vsel %vm223, %v1516, %v1517
  %v1519 = vrot.slane %v1507, 1
  %v1520 = vrot.slane %v1509, 1
  %v1521 = vsel %vm223, %v1519, %v1520
  %s1522 = scalar_lea.vmem %s5, 128
  %v1523 = vld [vmem:[%s1522] sm:$0xff]
  %v1524 = vsel %vm302, %v1518, 0
  %v1526 = vsel %vm302, %v1521, 0
  %1528 = vmatpush.msra.mxu0 0.0
  %1529 = vmatpush.msra.mxu0 0.0
  %1530 = vmatpush.msra.mxu0 0.0
  %1531 = vmatpush.msra.mxu0 0.0
  %1532 = vmatpush.msra.mxu0 0.0
  %1533 = vmatpush.msra.mxu0 0.0
  %1534 = vmatpush.msra.mxu0 0.0
  %1535 = vmatpush.msra.mxu0 0.0
  %1536 = vmatpush.msra.mxu0 0.0
  %1537 = vmatpush.msra.mxu0 0.0
  %1538 = vmatpush.msra.mxu0 0.0
  %1539 = vmatpush.msra.mxu0 0.0
  %1540 = vmatpush.msra.mxu0 0.0
  %1541 = vmatpush.msra.mxu0 0.0
  %1542 = vmatpush.msra.mxu0 0.0
  %1543 = vmatpush.msra.mxu0 %v1523
  %1544 = vmatmul.f32.gmra.mxu0 %v1524
  %v1545 = vpop.f32.mrf.mxu0
  %v1546 = vadd.f32 0.0, %v1545
  %1547 = vmatmul.f32.gmra.mxu0 %v1526
  %v1548 = vpop.f32.mrf.mxu0
  %v1549 = vadd.f32 0.0, %v1548
  %1550 = vdwg.mxu0
  %v1551 = vsel %vm302, %v1506, 0
  %v1553 = vsel %vm302, %v1507, 0
  %1555 = vmatpush.msra.mxu0 0.0
  %1556 = vmatpush.msra.mxu0 0.0
  %1557 = vmatpush.msra.mxu0 0.0
  %1558 = vmatpush.msra.mxu0 0.0
  %1559 = vmatpush.msra.mxu0 0.0
  %1560 = vmatpush.msra.mxu0 0.0
  %1561 = vmatpush.msra.mxu0 0.0
  %1562 = vmatpush.msra.mxu0 0.0
  %1563 = vmatpush.msra.mxu0 0.0
  %1564 = vmatpush.msra.mxu0 0.0
  %1565 = vmatpush.msra.mxu0 0.0
  %1566 = vmatpush.msra.mxu0 0.0
  %1567 = vmatpush.msra.mxu0 0.0
  %1568 = vmatpush.msra.mxu0 0.0
  %1569 = vmatpush.msra.mxu0 0.0
  %1570 = vmatpush.msra.mxu0 %v1511
  %1571 = vmatmul.f32.gmra.mxu0 %v1551
  %v1572 = vpop.f32.mrf.mxu0
  %v1573 = vadd.f32 %v1546, %v1572
  %1574 = vmatmul.f32.gmra.mxu0 %v1553
  %v1575 = vpop.f32.mrf.mxu0
  %v1576 = vadd.f32 %v1549, %v1575
  %1577 = vdwg.mxu0
  %v1578 = vrot.slane %v1506, 2
  %v1579 = vrot.slane %v1508, 2
  %v1580 = vsel %vm262, %v1578, %v1579
  %v1581 = vrot.slane %v1507, 2
  %v1582 = vrot.slane %v1509, 2
  %v1583 = vsel %vm262, %v1581, %v1582
  %s1584 = scalar_lea.vmem %s5, 136
  %v1585 = vld [vmem:[%s1584] sm:$0xff]
  %v1586 = vsel %vm302, %v1580, 0
  %v1588 = vsel %vm302, %v1583, 0
  %1590 = vmatpush.msra.mxu0 0.0
  %1591 = vmatpush.msra.mxu0 0.0
  %1592 = vmatpush.msra.mxu0 0.0
  %1593 = vmatpush.msra.mxu0 0.0
  %1594 = vmatpush.msra.mxu0 0.0
  %1595 = vmatpush.msra.mxu0 0.0
  %1596 = vmatpush.msra.mxu0 0.0
  %1597 = vmatpush.msra.mxu0 0.0
  %1598 = vmatpush.msra.mxu0 0.0
  %1599 = vmatpush.msra.mxu0 0.0
  %1600 = vmatpush.msra.mxu0 0.0
  %1601 = vmatpush.msra.mxu0 0.0
  %1602 = vmatpush.msra.mxu0 0.0
  %1603 = vmatpush.msra.mxu0 0.0
  %1604 = vmatpush.msra.mxu0 0.0
  %1605 = vmatpush.msra.mxu0 %v1585
  %1606 = vmatmul.f32.gmra.mxu0 %v1586
  %v1607 = vpop.f32.mrf.mxu0
  %v1608 = vadd.f32 0.0, %v1607
  %1609 = vmatmul.f32.gmra.mxu0 %v1588
  %v1610 = vpop.f32.mrf.mxu0
  %v1611 = vadd.f32 0.0, %v1610
  %1612 = vdwg.mxu0
  %v1613 = vadd.f32 %v1573, %v1608
  %v1614 = vadd.f32 %v1576, %v1611
  %v1615 = vrot.slane %v1506, 3
  %v1616 = vrot.slane %v1508, 3
  %v1617 = vsel %vm394, %v1615, %v1616
  %v1618 = vrot.slane %v1507, 3
  %v1619 = vrot.slane %v1509, 3
  %v1620 = vsel %vm394, %v1618, %v1619
  %s1621 = scalar_lea.vmem %s5, 144
  %v1622 = vld [vmem:[%s1621] sm:$0xff]
  %v1623 = vsel %vm302, %v1617, 0
  %v1625 = vsel %vm302, %v1620, 0
  %1627 = vmatpush.msra.mxu0 0.0
  %1628 = vmatpush.msra.mxu0 0.0
  %1629 = vmatpush.msra.mxu0 0.0
  %1630 = vmatpush.msra.mxu0 0.0
  %1631 = vmatpush.msra.mxu0 0.0
  %1632 = vmatpush.msra.mxu0 0.0
  %1633 = vmatpush.msra.mxu0 0.0
  %1634 = vmatpush.msra.mxu0 0.0
  %1635 = vmatpush.msra.mxu0 0.0
  %1636 = vmatpush.msra.mxu0 0.0
  %1637 = vmatpush.msra.mxu0 0.0
  %1638 = vmatpush.msra.mxu0 0.0
  %1639 = vmatpush.msra.mxu0 0.0
  %1640 = vmatpush.msra.mxu0 0.0
  %1641 = vmatpush.msra.mxu0 0.0
  %1642 = vmatpush.msra.mxu0 %v1622
  %1643 = vmatmul.f32.gmra.mxu0 %v1623
  %v1644 = vpop.f32.mrf.mxu0
  %v1645 = vadd.f32 0.0, %v1644
  %1646 = vmatmul.f32.gmra.mxu0 %v1625
  %v1647 = vpop.f32.mrf.mxu0
  %v1648 = vadd.f32 0.0, %v1647
  %1649 = vdwg.mxu0
  %v1650 = vadd.f32 %v1613, %v1645
  %v1651 = vadd.f32 %v1614, %v1648
  %v1652 = vrot.slane %v1506, 4
  %v1653 = vrot.slane %v1508, 4
  %v1654 = vsel %vm48, %v1652, %v1653
  %v1655 = vrot.slane %v1507, 4
  %v1656 = vrot.slane %v1509, 4
  %v1657 = vsel %vm48, %v1655, %v1656
  %s1658 = scalar_lea.vmem %s5, 152
  %v1659 = vld [vmem:[%s1658] sm:$0xff]
  %v1660 = vsel %vm302, %v1654, 0
  %v1662 = vsel %vm302, %v1657, 0
  %1664 = vmatpush.msra.mxu0 0.0
  %1665 = vmatpush.msra.mxu0 0.0
  %1666 = vmatpush.msra.mxu0 0.0
  %1667 = vmatpush.msra.mxu0 0.0
  %1668 = vmatpush.msra.mxu0 0.0
  %1669 = vmatpush.msra.mxu0 0.0
  %1670 = vmatpush.msra.mxu0 0.0
  %1671 = vmatpush.msra.mxu0 0.0
  %1672 = vmatpush.msra.mxu0 0.0
  %1673 = vmatpush.msra.mxu0 0.0
  %1674 = vmatpush.msra.mxu0 0.0
  %1675 = vmatpush.msra.mxu0 0.0
  %1676 = vmatpush.msra.mxu0 0.0
  %1677 = vmatpush.msra.mxu0 0.0
  %1678 = vmatpush.msra.mxu0 0.0
  %1679 = vmatpush.msra.mxu0 %v1659
  %1680 = vmatmul.f32.gmra.mxu0 %v1660
  %v1681 = vpop.f32.mrf.mxu0
  %v1682 = vadd.f32 0.0, %v1681
  %1683 = vmatmul.f32.gmra.mxu0 %v1662
  %v1684 = vpop.f32.mrf.mxu0
  %v1685 = vadd.f32 0.0, %v1684
  %1686 = vdwg.mxu0
  %v1687 = vadd.f32 %v1650, %v1682
  %v1688 = vadd.f32 %v1651, %v1685
  %s1689 = scalar_lea.vmem %s6, 3
  %v1690 = vld [vmem:[%s1689] sm:$0x1]
  %v1692 = vperm.slane %v1690, 0
  %v1694 = vadd.f32 %v1687, %v1692
  %v1695 = vadd.f32 %v1688, %v1692
  %vm1696 = vcmp.gt.f32.partialorder %v1694, 0.0
  %vm1697 = vcmp.gt.f32.partialorder %v1695, 0.0
  %v1698 = vmul.f32 %v1694, 0.2
  %v1699 = vmul.f32 %v1695, 0.2
  %v1700 = vsel %vm1696, %v1694, %v1698
  %v1701 = vsel %vm1697, %v1695, %v1699
  %v1702 = vmul.f32 %v1700, 0.1
  %v1703 = vmul.f32 %v1701, 0.1
  %v1704 = vadd.f32 %v1297, %v1702
  %v1705 = vadd.f32 %v1298, %v1703
  %s1706 = scalar_lea.vmem %s3, 640
  %v1707 = vld [vmem:[%s1706] sm:$0xff]
  %v1708 = vld [vmem:[%s1706 + $0x8] sm:$0xff]
  %v1709 = vld [vmem:[%s1706 + $0x10] sm:$0xff]
  %v1710 = vld [vmem:[%s1706 + $0x18] sm:$0xff]
  %v1712 = vsel %vm79, %v1704, 0
  %v1715 = vsel %vm79, %v1705, 0
  %1717 = vmatpush.msra.mxu0 0.0
  %1718 = vmatpush.msra.mxu0 0.0
  %1719 = vmatpush.msra.mxu0 0.0
  %1720 = vmatpush.msra.mxu0 0.0
  %1721 = vmatpush.msra.mxu0 0.0
  %1722 = vmatpush.msra.mxu0 0.0
  %1723 = vmatpush.msra.mxu0 0.0
  %1724 = vmatpush.msra.mxu0 0.0
  %1725 = vmatpush.msra.mxu0 0.0
  %1726 = vmatpush.msra.mxu0 0.0
  %1727 = vmatpush.msra.mxu0 0.0
  %1728 = vmatpush.msra.mxu0 0.0
  %1729 = vmatpush.msra.mxu0 %v1710
  %1730 = vmatpush.msra.mxu0 %v1709
  %1731 = vmatpush.msra.mxu0 %v1708
  %1732 = vmatpush.msra.mxu0 %v1707
  %1733 = vmatmul.f32.gmra.mxu0 %v1712
  %v1734 = vpop.f32.mrf.mxu0
  %v1735 = vadd.f32 0.0, %v1734
  %1736 = vmatmul.f32.gmra.mxu0 %v1715
  %v1737 = vpop.f32.mrf.mxu0
  %v1738 = vadd.f32 0.0, %v1737
  %1739 = vdwg.mxu0
  %v1742 = vrot.slane %v1735, 6
  %v1743 = vrot.slane %v1738, 6
  %v1746 = vsel %vm115, 0.0, %v1742
  %v1747 = vsel %vm115, 0.0, %v1743
  %v1748 = vadd.f32 %v1746, 0.0
  %v1749 = vadd.f32 %v1747, 0.0
  %s1750 = scalar_lea.vmem %s3, 672
  %v1751 = vld [vmem:[%s1750] sm:$0xff]
  %v1752 = vld [vmem:[%s1750 + $0x8] sm:$0xff]
  %v1753 = vld [vmem:[%s1750 + $0x10] sm:$0xff]
  %v1754 = vld [vmem:[%s1750 + $0x18] sm:$0xff]
  %1755 = vmatpush.msra.mxu0 0.0
  %1756 = vmatpush.msra.mxu0 0.0
  %1757 = vmatpush.msra.mxu0 0.0
  %1758 = vmatpush.msra.mxu0 0.0
  %1759 = vmatpush.msra.mxu0 0.0
  %1760 = vmatpush.msra.mxu0 0.0
  %1761 = vmatpush.msra.mxu0 0.0
  %1762 = vmatpush.msra.mxu0 0.0
  %1763 = vmatpush.msra.mxu0 0.0
  %1764 = vmatpush.msra.mxu0 0.0
  %1765 = vmatpush.msra.mxu0 0.0
  %1766 = vmatpush.msra.mxu0 0.0
  %1767 = vmatpush.msra.mxu0 %v1754
  %1768 = vmatpush.msra.mxu0 %v1753
  %1769 = vmatpush.msra.mxu0 %v1752
  %1770 = vmatpush.msra.mxu0 %v1751
  %1771 = vmatmul.f32.gmra.mxu0 %v1712
  %v1772 = vpop.f32.mrf.mxu0
  %v1773 = vadd.f32 0.0, %v1772
  %1774 = vmatmul.f32.gmra.mxu0 %v1715
  %v1775 = vpop.f32.mrf.mxu0
  %v1776 = vadd.f32 0.0, %v1775
  %1777 = vdwg.mxu0
  %v1780 = vrot.slane %v1773, 7
  %v1781 = vrot.slane %v1776, 7
  %v1784 = vsel %vm154, 0.0, %v1780
  %v1785 = vsel %vm154, 0.0, %v1781
  %v1786 = vadd.f32 %v1748, %v1784
  %v1787 = vadd.f32 %v1749, %v1785
  %s1788 = scalar_lea.vmem %s3, 704
  %v1789 = vld [vmem:[%s1788] sm:$0xff]
  %v1790 = vld [vmem:[%s1788 + $0x8] sm:$0xff]
  %v1791 = vld [vmem:[%s1788 + $0x10] sm:$0xff]
  %v1792 = vld [vmem:[%s1788 + $0x18] sm:$0xff]
  %1793 = vmatpush.msra.mxu0 0.0
  %1794 = vmatpush.msra.mxu0 0.0
  %1795 = vmatpush.msra.mxu0 0.0
  %1796 = vmatpush.msra.mxu0 0.0
  %1797 = vmatpush.msra.mxu0 0.0
  %1798 = vmatpush.msra.mxu0 0.0
  %1799 = vmatpush.msra.mxu0 0.0
  %1800 = vmatpush.msra.mxu0 0.0
  %1801 = vmatpush.msra.mxu0 0.0
  %1802 = vmatpush.msra.mxu0 0.0
  %1803 = vmatpush.msra.mxu0 0.0
  %1804 = vmatpush.msra.mxu0 0.0
  %1805 = vmatpush.msra.mxu0 %v1792
  %1806 = vmatpush.msra.mxu0 %v1791
  %1807 = vmatpush.msra.mxu0 %v1790
  %1808 = vmatpush.msra.mxu0 %v1789
  %1809 = vmatmul.f32.gmra.mxu0 %v1712
  %v1810 = vpop.f32.mrf.mxu0
  %v1811 = vadd.f32 0.0, %v1810
  %1812 = vmatmul.f32.gmra.mxu0 %v1715
  %v1813 = vpop.f32.mrf.mxu0
  %v1814 = vadd.f32 0.0, %v1813
  %1815 = vdwg.mxu0
  %v1816 = vadd.f32 %v1786, %v1811
  %v1817 = vadd.f32 %v1787, %v1814
  %s1818 = scalar_lea.vmem %s3, 736
  %v1819 = vld [vmem:[%s1818] sm:$0xff]
  %v1820 = vld [vmem:[%s1818 + $0x8] sm:$0xff]
  %v1821 = vld [vmem:[%s1818 + $0x10] sm:$0xff]
  %v1822 = vld [vmem:[%s1818 + $0x18] sm:$0xff]
  %1823 = vmatpush.msra.mxu0 0.0
  %1824 = vmatpush.msra.mxu0 0.0
  %1825 = vmatpush.msra.mxu0 0.0
  %1826 = vmatpush.msra.mxu0 0.0
  %1827 = vmatpush.msra.mxu0 0.0
  %1828 = vmatpush.msra.mxu0 0.0
  %1829 = vmatpush.msra.mxu0 0.0
  %1830 = vmatpush.msra.mxu0 0.0
  %1831 = vmatpush.msra.mxu0 0.0
  %1832 = vmatpush.msra.mxu0 0.0
  %1833 = vmatpush.msra.mxu0 0.0
  %1834 = vmatpush.msra.mxu0 0.0
  %1835 = vmatpush.msra.mxu0 %v1822
  %1836 = vmatpush.msra.mxu0 %v1821
  %1837 = vmatpush.msra.mxu0 %v1820
  %1838 = vmatpush.msra.mxu0 %v1819
  %1839 = vmatmul.f32.gmra.mxu0 %v1712
  %v1840 = vpop.f32.mrf.mxu0
  %v1841 = vadd.f32 0.0, %v1840
  %1842 = vmatmul.f32.gmra.mxu0 %v1715
  %v1843 = vpop.f32.mrf.mxu0
  %v1844 = vadd.f32 0.0, %v1843
  %1845 = vdwg.mxu0
  %v1848 = vrot.slane %v1841, 1
  %v1849 = vrot.slane %v1844, 1
  %v1852 = vsel %vm223, %v1848, 0.0
  %v1853 = vsel %vm223, %v1849, 0.0
  %v1854 = vadd.f32 %v1816, %v1852
  %v1855 = vadd.f32 %v1817, %v1853
  %s1856 = scalar_lea.vmem %s3, 768
  %v1857 = vld [vmem:[%s1856] sm:$0xff]
  %v1858 = vld [vmem:[%s1856 + $0x8] sm:$0xff]
  %v1859 = vld [vmem:[%s1856 + $0x10] sm:$0xff]
  %v1860 = vld [vmem:[%s1856 + $0x18] sm:$0xff]
  %1861 = vmatpush.msra.mxu0 0.0
  %1862 = vmatpush.msra.mxu0 0.0
  %1863 = vmatpush.msra.mxu0 0.0
  %1864 = vmatpush.msra.mxu0 0.0
  %1865 = vmatpush.msra.mxu0 0.0
  %1866 = vmatpush.msra.mxu0 0.0
  %1867 = vmatpush.msra.mxu0 0.0
  %1868 = vmatpush.msra.mxu0 0.0
  %1869 = vmatpush.msra.mxu0 0.0
  %1870 = vmatpush.msra.mxu0 0.0
  %1871 = vmatpush.msra.mxu0 0.0
  %1872 = vmatpush.msra.mxu0 0.0
  %1873 = vmatpush.msra.mxu0 %v1860
  %1874 = vmatpush.msra.mxu0 %v1859
  %1875 = vmatpush.msra.mxu0 %v1858
  %1876 = vmatpush.msra.mxu0 %v1857
  %1877 = vmatmul.f32.gmra.mxu0 %v1712
  %v1878 = vpop.f32.mrf.mxu0
  %v1879 = vadd.f32 0.0, %v1878
  %1880 = vmatmul.f32.gmra.mxu0 %v1715
  %v1881 = vpop.f32.mrf.mxu0
  %v1882 = vadd.f32 0.0, %v1881
  %1883 = vdwg.mxu0
  %v1886 = vrot.slane %v1879, 2
  %v1887 = vrot.slane %v1882, 2
  %v1890 = vsel %vm262, %v1886, 0.0
  %v1891 = vsel %vm262, %v1887, 0.0
  %v1892 = vadd.f32 %v1854, %v1890
  %v1893 = vadd.f32 %v1855, %v1891
  %s1894 = scalar_lea.vmem %s4, 4
  %v1895 = vld [vmem:[%s1894] sm:$0x1]
  %v1897 = vperm.slane %v1895, 0
  %v1899 = vadd.f32 %v1892, %v1897
  %v1900 = vadd.f32 %v1893, %v1897
  %vm1901 = vcmp.gt.f32.partialorder %v1899, 0.0
  %vm1902 = vcmp.gt.f32.partialorder %v1900, 0.0
  %v1903 = vmul.f32 %v1899, 0.2
  %v1904 = vmul.f32 %v1900, 0.2
  %v1905 = vsel %vm1901, %v1899, %v1903
  %v1906 = vsel %vm1902, %v1900, %v1904
  %v1909 = vrot.slane %v1905, 6
  %v1910 = vrot.slane %v1906, 6
  %v1913 = vsel %vm115, 0.0, %v1909
  %v1914 = vsel %vm115, 0.0, %v1910
  %v1915 = vsel %vm115, %v1909, 0.0
  %v1916 = vsel %vm115, %v1910, 0.0
  %s1917 = scalar_lea.vmem %s5, 160
  %v1918 = vld [vmem:[%s1917] sm:$0xff]
  %v1923 = vrot.slane %v1913, 1
  %v1924 = vrot.slane %v1915, 1
  %v1925 = vsel %vm223, %v1923, %v1924
  %v1926 = vrot.slane %v1914, 1
  %v1927 = vrot.slane %v1916, 1
  %v1928 = vsel %vm223, %v1926, %v1927
  %s1929 = scalar_lea.vmem %s5, 168
  %v1930 = vld [vmem:[%s1929] sm:$0xff]
  %v1931 = vsel %vm302, %v1925, 0
  %v1933 = vsel %vm302, %v1928, 0
  %1935 = vmatpush.msra.mxu0 0.0
  %1936 = vmatpush.msra.mxu0 0.0
  %1937 = vmatpush.msra.mxu0 0.0
  %1938 = vmatpush.msra.mxu0 0.0
  %1939 = vmatpush.msra.mxu0 0.0
  %1940 = vmatpush.msra.mxu0 0.0
  %1941 = vmatpush.msra.mxu0 0.0
  %1942 = vmatpush.msra.mxu0 0.0
  %1943 = vmatpush.msra.mxu0 0.0
  %1944 = vmatpush.msra.mxu0 0.0
  %1945 = vmatpush.msra.mxu0 0.0
  %1946 = vmatpush.msra.mxu0 0.0
  %1947 = vmatpush.msra.mxu0 0.0
  %1948 = vmatpush.msra.mxu0 0.0
  %1949 = vmatpush.msra.mxu0 0.0
  %1950 = vmatpush.msra.mxu0 %v1930
  %1951 = vmatmul.f32.gmra.mxu0 %v1931
  %v1952 = vpop.f32.mrf.mxu0
  %v1953 = vadd.f32 0.0, %v1952
  %1954 = vmatmul.f32.gmra.mxu0 %v1933
  %v1955 = vpop.f32.mrf.mxu0
  %v1956 = vadd.f32 0.0, %v1955
  %1957 = vdwg.mxu0
  %v1958 = vsel %vm302, %v1913, 0
  %v1960 = vsel %vm302, %v1914, 0
  %1962 = vmatpush.msra.mxu0 0.0
  %1963 = vmatpush.msra.mxu0 0.0
  %1964 = vmatpush.msra.mxu0 0.0
  %1965 = vmatpush.msra.mxu0 0.0
  %1966 = vmatpush.msra.mxu0 0.0
  %1967 = vmatpush.msra.mxu0 0.0
  %1968 = vmatpush.msra.mxu0 0.0
  %1969 = vmatpush.msra.mxu0 0.0
  %1970 = vmatpush.msra.mxu0 0.0
  %1971 = vmatpush.msra.mxu0 0.0
  %1972 = vmatpush.msra.mxu0 0.0
  %1973 = vmatpush.msra.mxu0 0.0
  %1974 = vmatpush.msra.mxu0 0.0
  %1975 = vmatpush.msra.mxu0 0.0
  %1976 = vmatpush.msra.mxu0 0.0
  %1977 = vmatpush.msra.mxu0 %v1918
  %1978 = vmatmul.f32.gmra.mxu0 %v1958
  %v1979 = vpop.f32.mrf.mxu0
  %v1980 = vadd.f32 %v1953, %v1979
  %1981 = vmatmul.f32.gmra.mxu0 %v1960
  %v1982 = vpop.f32.mrf.mxu0
  %v1983 = vadd.f32 %v1956, %v1982
  %1984 = vdwg.mxu0
  %v1985 = vrot.slane %v1913, 2
  %v1986 = vrot.slane %v1915, 2
  %v1987 = vsel %vm262, %v1985, %v1986
  %v1988 = vrot.slane %v1914, 2
  %v1989 = vrot.slane %v1916, 2
  %v1990 = vsel %vm262, %v1988, %v1989
  %s1991 = scalar_lea.vmem %s5, 176
  %v1992 = vld [vmem:[%s1991] sm:$0xff]
  %v1993 = vsel %vm302, %v1987, 0
  %v1995 = vsel %vm302, %v1990, 0
  %1997 = vmatpush.msra.mxu0 0.0
  %1998 = vmatpush.msra.mxu0 0.0
  %1999 = vmatpush.msra.mxu0 0.0
  %2000 = vmatpush.msra.mxu0 0.0
  %2001 = vmatpush.msra.mxu0 0.0
  %2002 = vmatpush.msra.mxu0 0.0
  %2003 = vmatpush.msra.mxu0 0.0
  %2004 = vmatpush.msra.mxu0 0.0
  %2005 = vmatpush.msra.mxu0 0.0
  %2006 = vmatpush.msra.mxu0 0.0
  %2007 = vmatpush.msra.mxu0 0.0
  %2008 = vmatpush.msra.mxu0 0.0
  %2009 = vmatpush.msra.mxu0 0.0
  %2010 = vmatpush.msra.mxu0 0.0
  %2011 = vmatpush.msra.mxu0 0.0
  %2012 = vmatpush.msra.mxu0 %v1992
  %2013 = vmatmul.f32.gmra.mxu0 %v1993
  %v2014 = vpop.f32.mrf.mxu0
  %v2015 = vadd.f32 0.0, %v2014
  %2016 = vmatmul.f32.gmra.mxu0 %v1995
  %v2017 = vpop.f32.mrf.mxu0
  %v2018 = vadd.f32 0.0, %v2017
  %2019 = vdwg.mxu0
  %v2020 = vadd.f32 %v1980, %v2015
  %v2021 = vadd.f32 %v1983, %v2018
  %v2022 = vrot.slane %v1913, 3
  %v2023 = vrot.slane %v1915, 3
  %v2024 = vsel %vm394, %v2022, %v2023
  %v2025 = vrot.slane %v1914, 3
  %v2026 = vrot.slane %v1916, 3
  %v2027 = vsel %vm394, %v2025, %v2026
  %s2028 = scalar_lea.vmem %s5, 184
  %v2029 = vld [vmem:[%s2028] sm:$0xff]
  %v2030 = vsel %vm302, %v2024, 0
  %v2032 = vsel %vm302, %v2027, 0
  %2034 = vmatpush.msra.mxu0 0.0
  %2035 = vmatpush.msra.mxu0 0.0
  %2036 = vmatpush.msra.mxu0 0.0
  %2037 = vmatpush.msra.mxu0 0.0
  %2038 = vmatpush.msra.mxu0 0.0
  %2039 = vmatpush.msra.mxu0 0.0
  %2040 = vmatpush.msra.mxu0 0.0
  %2041 = vmatpush.msra.mxu0 0.0
  %2042 = vmatpush.msra.mxu0 0.0
  %2043 = vmatpush.msra.mxu0 0.0
  %2044 = vmatpush.msra.mxu0 0.0
  %2045 = vmatpush.msra.mxu0 0.0
  %2046 = vmatpush.msra.mxu0 0.0
  %2047 = vmatpush.msra.mxu0 0.0
  %2048 = vmatpush.msra.mxu0 0.0
  %2049 = vmatpush.msra.mxu0 %v2029
  %2050 = vmatmul.f32.gmra.mxu0 %v2030
  %v2051 = vpop.f32.mrf.mxu0
  %v2052 = vadd.f32 0.0, %v2051
  %2053 = vmatmul.f32.gmra.mxu0 %v2032
  %v2054 = vpop.f32.mrf.mxu0
  %v2055 = vadd.f32 0.0, %v2054
  %2056 = vdwg.mxu0
  %v2057 = vadd.f32 %v2020, %v2052
  %v2058 = vadd.f32 %v2021, %v2055
  %v2059 = vrot.slane %v1913, 4
  %v2060 = vrot.slane %v1915, 4
  %v2061 = vsel %vm48, %v2059, %v2060
  %v2062 = vrot.slane %v1914, 4
  %v2063 = vrot.slane %v1916, 4
  %v2064 = vsel %vm48, %v2062, %v2063
  %s2065 = scalar_lea.vmem %s5, 192
  %v2066 = vld [vmem:[%s2065] sm:$0xff]
  %v2067 = vsel %vm302, %v2061, 0
  %v2069 = vsel %vm302, %v2064, 0
  %2071 = vmatpush.msra.mxu0 0.0
  %2072 = vmatpush.msra.mxu0 0.0
  %2073 = vmatpush.msra.mxu0 0.0
  %2074 = vmatpush.msra.mxu0 0.0
  %2075 = vmatpush.msra.mxu0 0.0
  %2076 = vmatpush.msra.mxu0 0.0
  %2077 = vmatpush.msra.mxu0 0.0
  %2078 = vmatpush.msra.mxu0 0.0
  %2079 = vmatpush.msra.mxu0 0.0
  %2080 = vmatpush.msra.mxu0 0.0
  %2081 = vmatpush.msra.mxu0 0.0
  %2082 = vmatpush.msra.mxu0 0.0
  %2083 = vmatpush.msra.mxu0 0.0
  %2084 = vmatpush.msra.mxu0 0.0
  %2085 = vmatpush.msra.mxu0 0.0
  %2086 = vmatpush.msra.mxu0 %v2066
  %2087 = vmatmul.f32.gmra.mxu0 %v2067
  %v2088 = vpop.f32.mrf.mxu0
  %v2089 = vadd.f32 0.0, %v2088
  %2090 = vmatmul.f32.gmra.mxu0 %v2069
  %v2091 = vpop.f32.mrf.mxu0
  %v2092 = vadd.f32 0.0, %v2091
  %2093 = vdwg.mxu0
  %v2094 = vadd.f32 %v2057, %v2089
  %v2095 = vadd.f32 %v2058, %v2092
  %s2096 = scalar_lea.vmem %s6, 4
  %v2097 = vld [vmem:[%s2096] sm:$0x1]
  %v2099 = vperm.slane %v2097, 0
  %v2101 = vadd.f32 %v2094, %v2099
  %v2102 = vadd.f32 %v2095, %v2099
  %vm2103 = vcmp.gt.f32.partialorder %v2101, 0.0
  %vm2104 = vcmp.gt.f32.partialorder %v2102, 0.0
  %v2105 = vmul.f32 %v2101, 0.2
  %v2106 = vmul.f32 %v2102, 0.2
  %v2107 = vsel %vm2103, %v2101, %v2105
  %v2108 = vsel %vm2104, %v2102, %v2106
  %v2109 = vmul.f32 %v2107, 0.1
  %v2110 = vmul.f32 %v2108, 0.1
  %v2111 = vadd.f32 %v1704, %v2109
  %v2112 = vadd.f32 %v1705, %v2110
  %s2113 = scalar_lea.vmem %s3, 800
  %v2114 = vld [vmem:[%s2113] sm:$0xff]
  %v2115 = vld [vmem:[%s2113 + $0x8] sm:$0xff]
  %v2116 = vld [vmem:[%s2113 + $0x10] sm:$0xff]
  %v2117 = vld [vmem:[%s2113 + $0x18] sm:$0xff]
  %v2119 = vsel %vm79, %v2111, 0
  %v2122 = vsel %vm79, %v2112, 0
  %2124 = vmatpush.msra.mxu0 0.0
  %2125 = vmatpush.msra.mxu0 0.0
  %2126 = vmatpush.msra.mxu0 0.0
  %2127 = vmatpush.msra.mxu0 0.0
  %2128 = vmatpush.msra.mxu0 0.0
  %2129 = vmatpush.msra.mxu0 0.0
  %2130 = vmatpush.msra.mxu0 0.0
  %2131 = vmatpush.msra.mxu0 0.0
  %2132 = vmatpush.msra.mxu0 0.0
  %2133 = vmatpush.msra.mxu0 0.0
  %2134 = vmatpush.msra.mxu0 0.0
  %2135 = vmatpush.msra.mxu0 0.0
  %2136 = vmatpush.msra.mxu0 %v2117
  %2137 = vmatpush.msra.mxu0 %v2116
  %2138 = vmatpush.msra.mxu0 %v2115
  %2139 = vmatpush.msra.mxu0 %v2114
  %2140 = vmatmul.f32.gmra.mxu0 %v2119
  %v2141 = vpop.f32.mrf.mxu0
  %v2142 = vadd.f32 0.0, %v2141
  %2143 = vmatmul.f32.gmra.mxu0 %v2122
  %v2144 = vpop.f32.mrf.mxu0
  %v2145 = vadd.f32 0.0, %v2144
  %2146 = vdwg.mxu0
  %v2149 = vrot.slane %v2142, 6
  %v2150 = vrot.slane %v2145, 6
  %v2153 = vsel %vm115, 0.0, %v2149
  %v2154 = vsel %vm115, 0.0, %v2150
  %v2155 = vadd.f32 %v2153, 0.0
  %v2156 = vadd.f32 %v2154, 0.0
  %s2157 = scalar_lea.vmem %s3, 832
  %v2158 = vld [vmem:[%s2157] sm:$0xff]
  %v2159 = vld [vmem:[%s2157 + $0x8] sm:$0xff]
  %v2160 = vld [vmem:[%s2157 + $0x10] sm:$0xff]
  %v2161 = vld [vmem:[%s2157 + $0x18] sm:$0xff]
  %2162 = vmatpush.msra.mxu0 0.0
  %2163 = vmatpush.msra.mxu0 0.0
  %2164 = vmatpush.msra.mxu0 0.0
  %2165 = vmatpush.msra.mxu0 0.0
  %2166 = vmatpush.msra.mxu0 0.0
  %2167 = vmatpush.msra.mxu0 0.0
  %2168 = vmatpush.msra.mxu0 0.0
  %2169 = vmatpush.msra.mxu0 0.0
  %2170 = vmatpush.msra.mxu0 0.0
  %2171 = vmatpush.msra.mxu0 0.0
  %2172 = vmatpush.msra.mxu0 0.0
  %2173 = vmatpush.msra.mxu0 0.0
  %2174 = vmatpush.msra.mxu0 %v2161
  %2175 = vmatpush.msra.mxu0 %v2160
  %2176 = vmatpush.msra.mxu0 %v2159
  %2177 = vmatpush.msra.mxu0 %v2158
  %2178 = vmatmul.f32.gmra.mxu0 %v2119
  %v2179 = vpop.f32.mrf.mxu0
  %v2180 = vadd.f32 0.0, %v2179
  %2181 = vmatmul.f32.gmra.mxu0 %v2122
  %v2182 = vpop.f32.mrf.mxu0
  %v2183 = vadd.f32 0.0, %v2182
  %2184 = vdwg.mxu0
  %v2187 = vrot.slane %v2180, 7
  %v2188 = vrot.slane %v2183, 7
  %v2191 = vsel %vm154, 0.0, %v2187
  %v2192 = vsel %vm154, 0.0, %v2188
  %v2193 = vadd.f32 %v2155, %v2191
  %v2194 = vadd.f32 %v2156, %v2192
  %s2195 = scalar_lea.vmem %s3, 864
  %v2196 = vld [vmem:[%s2195] sm:$0xff]
  %v2197 = vld [vmem:[%s2195 + $0x8] sm:$0xff]
  %v2198 = vld [vmem:[%s2195 + $0x10] sm:$0xff]
  %v2199 = vld [vmem:[%s2195 + $0x18] sm:$0xff]
  %2200 = vmatpush.msra.mxu0 0.0
  %2201 = vmatpush.msra.mxu0 0.0
  %2202 = vmatpush.msra.mxu0 0.0
  %2203 = vmatpush.msra.mxu0 0.0
  %2204 = vmatpush.msra.mxu0 0.0
  %2205 = vmatpush.msra.mxu0 0.0
  %2206 = vmatpush.msra.mxu0 0.0
  %2207 = vmatpush.msra.mxu0 0.0
  %2208 = vmatpush.msra.mxu0 0.0
  %2209 = vmatpush.msra.mxu0 0.0
  %2210 = vmatpush.msra.mxu0 0.0
  %2211 = vmatpush.msra.mxu0 0.0
  %2212 = vmatpush.msra.mxu0 %v2199
  %2213 = vmatpush.msra.mxu0 %v2198
  %2214 = vmatpush.msra.mxu0 %v2197
  %2215 = vmatpush.msra.mxu0 %v2196
  %2216 = vmatmul.f32.gmra.mxu0 %v2119
  %v2217 = vpop.f32.mrf.mxu0
  %v2218 = vadd.f32 0.0, %v2217
  %2219 = vmatmul.f32.gmra.mxu0 %v2122
  %v2220 = vpop.f32.mrf.mxu0
  %v2221 = vadd.f32 0.0, %v2220
  %2222 = vdwg.mxu0
  %v2223 = vadd.f32 %v2193, %v2218
  %v2224 = vadd.f32 %v2194, %v2221
  %s2225 = scalar_lea.vmem %s3, 896
  %v2226 = vld [vmem:[%s2225] sm:$0xff]
  %v2227 = vld [vmem:[%s2225 + $0x8] sm:$0xff]
  %v2228 = vld [vmem:[%s2225 + $0x10] sm:$0xff]
  %v2229 = vld [vmem:[%s2225 + $0x18] sm:$0xff]
  %2230 = vmatpush.msra.mxu0 0.0
  %2231 = vmatpush.msra.mxu0 0.0
  %2232 = vmatpush.msra.mxu0 0.0
  %2233 = vmatpush.msra.mxu0 0.0
  %2234 = vmatpush.msra.mxu0 0.0
  %2235 = vmatpush.msra.mxu0 0.0
  %2236 = vmatpush.msra.mxu0 0.0
  %2237 = vmatpush.msra.mxu0 0.0
  %2238 = vmatpush.msra.mxu0 0.0
  %2239 = vmatpush.msra.mxu0 0.0
  %2240 = vmatpush.msra.mxu0 0.0
  %2241 = vmatpush.msra.mxu0 0.0
  %2242 = vmatpush.msra.mxu0 %v2229
  %2243 = vmatpush.msra.mxu0 %v2228
  %2244 = vmatpush.msra.mxu0 %v2227
  %2245 = vmatpush.msra.mxu0 %v2226
  %2246 = vmatmul.f32.gmra.mxu0 %v2119
  %v2247 = vpop.f32.mrf.mxu0
  %v2248 = vadd.f32 0.0, %v2247
  %2249 = vmatmul.f32.gmra.mxu0 %v2122
  %v2250 = vpop.f32.mrf.mxu0
  %v2251 = vadd.f32 0.0, %v2250
  %2252 = vdwg.mxu0
  %v2255 = vrot.slane %v2248, 1
  %v2256 = vrot.slane %v2251, 1
  %v2259 = vsel %vm223, %v2255, 0.0
  %v2260 = vsel %vm223, %v2256, 0.0
  %v2261 = vadd.f32 %v2223, %v2259
  %v2262 = vadd.f32 %v2224, %v2260
  %s2263 = scalar_lea.vmem %s3, 928
  %v2264 = vld [vmem:[%s2263] sm:$0xff]
  %v2265 = vld [vmem:[%s2263 + $0x8] sm:$0xff]
  %v2266 = vld [vmem:[%s2263 + $0x10] sm:$0xff]
  %v2267 = vld [vmem:[%s2263 + $0x18] sm:$0xff]
  %2268 = vmatpush.msra.mxu0 0.0
  %2269 = vmatpush.msra.mxu0 0.0
  %2270 = vmatpush.msra.mxu0 0.0
  %2271 = vmatpush.msra.mxu0 0.0
  %2272 = vmatpush.msra.mxu0 0.0
  %2273 = vmatpush.msra.mxu0 0.0
  %2274 = vmatpush.msra.mxu0 0.0
  %2275 = vmatpush.msra.mxu0 0.0
  %2276 = vmatpush.msra.mxu0 0.0
  %2277 = vmatpush.msra.mxu0 0.0
  %2278 = vmatpush.msra.mxu0 0.0
  %2279 = vmatpush.msra.mxu0 0.0
  %2280 = vmatpush.msra.mxu0 %v2267
  %2281 = vmatpush.msra.mxu0 %v2266
  %2282 = vmatpush.msra.mxu0 %v2265
  %2283 = vmatpush.msra.mxu0 %v2264
  %2284 = vmatmul.f32.gmra.mxu0 %v2119
  %v2285 = vpop.f32.mrf.mxu0
  %v2286 = vadd.f32 0.0, %v2285
  %2287 = vmatmul.f32.gmra.mxu0 %v2122
  %v2288 = vpop.f32.mrf.mxu0
  %v2289 = vadd.f32 0.0, %v2288
  %2290 = vdwg.mxu0
  %v2293 = vrot.slane %v2286, 2
  %v2294 = vrot.slane %v2289, 2
  %v2297 = vsel %vm262, %v2293, 0.0
  %v2298 = vsel %vm262, %v2294, 0.0
  %v2299 = vadd.f32 %v2261, %v2297
  %v2300 = vadd.f32 %v2262, %v2298
  %s2301 = scalar_lea.vmem %s4, 5
  %v2302 = vld [vmem:[%s2301] sm:$0x1]
  %v2304 = vperm.slane %v2302, 0
  %v2306 = vadd.f32 %v2299, %v2304
  %v2307 = vadd.f32 %v2300, %v2304
  %vm2308 = vcmp.gt.f32.partialorder %v2306, 0.0
  %vm2309 = vcmp.gt.f32.partialorder %v2307, 0.0
  %v2310 = vmul.f32 %v2306, 0.2
  %v2311 = vmul.f32 %v2307, 0.2
  %v2312 = vsel %vm2308, %v2306, %v2310
  %v2313 = vsel %vm2309, %v2307, %v2311
  %v2316 = vrot.slane %v2312, 6
  %v2317 = vrot.slane %v2313, 6
  %v2320 = vsel %vm115, 0.0, %v2316
  %v2321 = vsel %vm115, 0.0, %v2317
  %v2322 = vsel %vm115, %v2316, 0.0
  %v2323 = vsel %vm115, %v2317, 0.0
  %s2324 = scalar_lea.vmem %s5, 200
  %v2325 = vld [vmem:[%s2324] sm:$0xff]
  %v2330 = vrot.slane %v2320, 1
  %v2331 = vrot.slane %v2322, 1
  %v2332 = vsel %vm223, %v2330, %v2331
  %v2333 = vrot.slane %v2321, 1
  %v2334 = vrot.slane %v2323, 1
  %v2335 = vsel %vm223, %v2333, %v2334
  %s2336 = scalar_lea.vmem %s5, 208
  %v2337 = vld [vmem:[%s2336] sm:$0xff]
  %v2338 = vsel %vm302, %v2332, 0
  %v2340 = vsel %vm302, %v2335, 0
  %2342 = vmatpush.msra.mxu0 0.0
  %2343 = vmatpush.msra.mxu0 0.0
  %2344 = vmatpush.msra.mxu0 0.0
  %2345 = vmatpush.msra.mxu0 0.0
  %2346 = vmatpush.msra.mxu0 0.0
  %2347 = vmatpush.msra.mxu0 0.0
  %2348 = vmatpush.msra.mxu0 0.0
  %2349 = vmatpush.msra.mxu0 0.0
  %2350 = vmatpush.msra.mxu0 0.0
  %2351 = vmatpush.msra.mxu0 0.0
  %2352 = vmatpush.msra.mxu0 0.0
  %2353 = vmatpush.msra.mxu0 0.0
  %2354 = vmatpush.msra.mxu0 0.0
  %2355 = vmatpush.msra.mxu0 0.0
  %2356 = vmatpush.msra.mxu0 0.0
  %2357 = vmatpush.msra.mxu0 %v2337
  %2358 = vmatmul.f32.gmra.mxu0 %v2338
  %v2359 = vpop.f32.mrf.mxu0
  %v2360 = vadd.f32 0.0, %v2359
  %2361 = vmatmul.f32.gmra.mxu0 %v2340
  %v2362 = vpop.f32.mrf.mxu0
  %v2363 = vadd.f32 0.0, %v2362
  %2364 = vdwg.mxu0
  %v2365 = vsel %vm302, %v2320, 0
  %v2367 = vsel %vm302, %v2321, 0
  %2369 = vmatpush.msra.mxu0 0.0
  %2370 = vmatpush.msra.mxu0 0.0
  %2371 = vmatpush.msra.mxu0 0.0
  %2372 = vmatpush.msra.mxu0 0.0
  %2373 = vmatpush.msra.mxu0 0.0
  %2374 = vmatpush.msra.mxu0 0.0
  %2375 = vmatpush.msra.mxu0 0.0
  %2376 = vmatpush.msra.mxu0 0.0
  %2377 = vmatpush.msra.mxu0 0.0
  %2378 = vmatpush.msra.mxu0 0.0
  %2379 = vmatpush.msra.mxu0 0.0
  %2380 = vmatpush.msra.mxu0 0.0
  %2381 = vmatpush.msra.mxu0 0.0
  %2382 = vmatpush.msra.mxu0 0.0
  %2383 = vmatpush.msra.mxu0 0.0
  %2384 = vmatpush.msra.mxu0 %v2325
  %2385 = vmatmul.f32.gmra.mxu0 %v2365
  %v2386 = vpop.f32.mrf.mxu0
  %v2387 = vadd.f32 %v2360, %v2386
  %2388 = vmatmul.f32.gmra.mxu0 %v2367
  %v2389 = vpop.f32.mrf.mxu0
  %v2390 = vadd.f32 %v2363, %v2389
  %2391 = vdwg.mxu0
  %v2392 = vrot.slane %v2320, 2
  %v2393 = vrot.slane %v2322, 2
  %v2394 = vsel %vm262, %v2392, %v2393
  %v2395 = vrot.slane %v2321, 2
  %v2396 = vrot.slane %v2323, 2
  %v2397 = vsel %vm262, %v2395, %v2396
  %s2398 = scalar_lea.vmem %s5, 216
  %v2399 = vld [vmem:[%s2398] sm:$0xff]
  %v2400 = vsel %vm302, %v2394, 0
  %v2402 = vsel %vm302, %v2397, 0
  %2404 = vmatpush.msra.mxu0 0.0
  %2405 = vmatpush.msra.mxu0 0.0
  %2406 = vmatpush.msra.mxu0 0.0
  %2407 = vmatpush.msra.mxu0 0.0
  %2408 = vmatpush.msra.mxu0 0.0
  %2409 = vmatpush.msra.mxu0 0.0
  %2410 = vmatpush.msra.mxu0 0.0
  %2411 = vmatpush.msra.mxu0 0.0
  %2412 = vmatpush.msra.mxu0 0.0
  %2413 = vmatpush.msra.mxu0 0.0
  %2414 = vmatpush.msra.mxu0 0.0
  %2415 = vmatpush.msra.mxu0 0.0
  %2416 = vmatpush.msra.mxu0 0.0
  %2417 = vmatpush.msra.mxu0 0.0
  %2418 = vmatpush.msra.mxu0 0.0
  %2419 = vmatpush.msra.mxu0 %v2399
  %2420 = vmatmul.f32.gmra.mxu0 %v2400
  %v2421 = vpop.f32.mrf.mxu0
  %v2422 = vadd.f32 0.0, %v2421
  %2423 = vmatmul.f32.gmra.mxu0 %v2402
  %v2424 = vpop.f32.mrf.mxu0
  %v2425 = vadd.f32 0.0, %v2424
  %2426 = vdwg.mxu0
  %v2427 = vadd.f32 %v2387, %v2422
  %v2428 = vadd.f32 %v2390, %v2425
  %v2429 = vrot.slane %v2320, 3
  %v2430 = vrot.slane %v2322, 3
  %v2431 = vsel %vm394, %v2429, %v2430
  %v2432 = vrot.slane %v2321, 3
  %v2433 = vrot.slane %v2323, 3
  %v2434 = vsel %vm394, %v2432, %v2433
  %s2435 = scalar_lea.vmem %s5, 224
  %v2436 = vld [vmem:[%s2435] sm:$0xff]
  %v2437 = vsel %vm302, %v2431, 0
  %v2439 = vsel %vm302, %v2434, 0
  %2441 = vmatpush.msra.mxu0 0.0
  %2442 = vmatpush.msra.mxu0 0.0
  %2443 = vmatpush.msra.mxu0 0.0
  %2444 = vmatpush.msra.mxu0 0.0
  %2445 = vmatpush.msra.mxu0 0.0
  %2446 = vmatpush.msra.mxu0 0.0
  %2447 = vmatpush.msra.mxu0 0.0
  %2448 = vmatpush.msra.mxu0 0.0
  %2449 = vmatpush.msra.mxu0 0.0
  %2450 = vmatpush.msra.mxu0 0.0
  %2451 = vmatpush.msra.mxu0 0.0
  %2452 = vmatpush.msra.mxu0 0.0
  %2453 = vmatpush.msra.mxu0 0.0
  %2454 = vmatpush.msra.mxu0 0.0
  %2455 = vmatpush.msra.mxu0 0.0
  %2456 = vmatpush.msra.mxu0 %v2436
  %2457 = vmatmul.f32.gmra.mxu0 %v2437
  %v2458 = vpop.f32.mrf.mxu0
  %v2459 = vadd.f32 0.0, %v2458
  %2460 = vmatmul.f32.gmra.mxu0 %v2439
  %v2461 = vpop.f32.mrf.mxu0
  %v2462 = vadd.f32 0.0, %v2461
  %2463 = vdwg.mxu0
  %v2464 = vadd.f32 %v2427, %v2459
  %v2465 = vadd.f32 %v2428, %v2462
  %v2466 = vrot.slane %v2320, 4
  %v2467 = vrot.slane %v2322, 4
  %v2468 = vsel %vm48, %v2466, %v2467
  %v2469 = vrot.slane %v2321, 4
  %v2470 = vrot.slane %v2323, 4
  %v2471 = vsel %vm48, %v2469, %v2470
  %s2472 = scalar_lea.vmem %s5, 232
  %v2473 = vld [vmem:[%s2472] sm:$0xff]
  %v2474 = vsel %vm302, %v2468, 0
  %v2476 = vsel %vm302, %v2471, 0
  %2478 = vmatpush.msra.mxu0 0.0
  %2479 = vmatpush.msra.mxu0 0.0
  %2480 = vmatpush.msra.mxu0 0.0
  %2481 = vmatpush.msra.mxu0 0.0
  %2482 = vmatpush.msra.mxu0 0.0
  %2483 = vmatpush.msra.mxu0 0.0
  %2484 = vmatpush.msra.mxu0 0.0
  %2485 = vmatpush.msra.mxu0 0.0
  %2486 = vmatpush.msra.mxu0 0.0
  %2487 = vmatpush.msra.mxu0 0.0
  %2488 = vmatpush.msra.mxu0 0.0
  %2489 = vmatpush.msra.mxu0 0.0
  %2490 = vmatpush.msra.mxu0 0.0
  %2491 = vmatpush.msra.mxu0 0.0
  %2492 = vmatpush.msra.mxu0 0.0
  %2493 = vmatpush.msra.mxu0 %v2473
  %2494 = vmatmul.f32.gmra.mxu0 %v2474
  %v2495 = vpop.f32.mrf.mxu0
  %v2496 = vadd.f32 0.0, %v2495
  %2497 = vmatmul.f32.gmra.mxu0 %v2476
  %v2498 = vpop.f32.mrf.mxu0
  %v2499 = vadd.f32 0.0, %v2498
  %2500 = vdwg.mxu0
  %v2501 = vadd.f32 %v2464, %v2496
  %v2502 = vadd.f32 %v2465, %v2499
  %s2503 = scalar_lea.vmem %s6, 5
  %v2504 = vld [vmem:[%s2503] sm:$0x1]
  %v2506 = vperm.slane %v2504, 0
  %v2508 = vadd.f32 %v2501, %v2506
  %v2509 = vadd.f32 %v2502, %v2506
  %vm2510 = vcmp.gt.f32.partialorder %v2508, 0.0
  %vm2511 = vcmp.gt.f32.partialorder %v2509, 0.0
  %v2512 = vmul.f32 %v2508, 0.2
  %v2513 = vmul.f32 %v2509, 0.2
  %v2514 = vsel %vm2510, %v2508, %v2512
  %v2515 = vsel %vm2511, %v2509, %v2513
  %v2516 = vmul.f32 %v2514, 0.1
  %v2517 = vmul.f32 %v2515, 0.1
  %v2518 = vadd.f32 %v2111, %v2516
  %v2519 = vadd.f32 %v2112, %v2517
  %v2520 = vld [vmem:[%s7] sm:$0xff]
  %v2521 = vmul.f32 %v2518, %v2520
  %v2522 = vmul.f32 %v2519, %v2520
  %v2523 = vsel %vm79, %v2521, 0.0
  %2524 = vadd.xlane.f32.xlu0 %v2523
  %v2525 = vpop.xlane.xlu0 %2524
  %v2526 = vsel %vm79, %v2522, 0.0
  %2527 = vadd.xlane.f32.xlu0 %v2526
  %v2528 = vpop.xlane.xlu0 %2527
  %v2531 = vlaneseq
  %v2532 = vand.u32 %v2531, 127
  %v2533 = vperm.slane %v2525, %v2532
  %v2534 = vperm.slane %v2528, %v2532
  %vm2535 = vcmask 1041409
  %v2536 = vsel %vm2535, %v2534, %v2533
  %vm2538 = vcmask 58368
  %v2539 = vsel %vm2538, %v2536, 0.0
  %2540 = vadd.xlane.f32.xlu0 %v2539
  %v2541 = vpop.xlane.xlu0 %2540
  %v2542 = vld [vmem:[#allocation2] sm:$0x1]
  %s2543 = vtos %v2542
  %v2544 = vstv %s2543
  %v2545 = vadd.f32 %v2541, %v2544
  %vm2546 = vcmask 1024
  %2547 = vst.msk [vmem:[%s9] sm:$0x3] %vm2546, %v2545
  // Predicated region
  $region38: #{tpu_custom_call.1} parent=0 // pred_check
    _
  $region39: #{tpu_custom_call.1} parent=0 // pred_check_branch
    %2549 = sbr.rel (0) target = $region41
  $region40: #{tpu_custom_call.1} parent=0 // pred_region
    _
  $region41: #{tpu_custom_call.1} parent=0 // pred_fallthru
    _
  // Predicated region
  $region42: #{tpu_custom_call.1} parent=0 // pred_check
    _
  $region43: #{tpu_custom_call.1} parent=0 // pred_check_branch
    %2551 = sbr.rel (0) target = $region45
  $region44: #{tpu_custom_call.1} parent=0 // pred_region
    _
  $region45: #{tpu_custom_call.1} parent=0 // pred_fallthru
    _

</llo_original>
